<compile_context>
chip_gen: v7x
topology: tpu7x:2x2x1
jax: 0.10.0
libtpu: 0.0.40
codegen_flags: <defaults>
</compile_context>

<pallas_src>
import jax
import jax.numpy as jnp
from jax.experimental import pallas as pl
from jax.experimental.pallas import tpu as pltpu


def _round_up(x, m):
    return ((x + m - 1) // m) * m


def _cdiv(a, b):
    return -(-a // b)


def _spec(shape, index_map, nbuf):
    """BlockSpec with an explicit pipeline buffer count (fallback if unsupported)."""
    try:
        return pl.BlockSpec(shape, index_map, pipeline_mode=pl.Buffered(nbuf))
    except Exception:  # older jax without pipeline_mode/Buffered: default double-buffering
        return pl.BlockSpec(shape, index_map)


def _clam_mb_kernel(n_ref,                                    # scalar prefetch: bag length N
                    h_ref, w1_ref, b1_ref, wabc_ref, babc_ref, wc_ref, bc_ref,
                    araw_ref, m_out, l_out, s_out, mn_out,
                    m_sc, l_sc, s_sc, mn_sc):
    i = pl.program_id(1)                                      # instance-tile step within this core

    @pl.when(i == 0)
    def _init():
        m_sc[...] = jnp.full_like(m_sc, -jnp.inf)             # running per-class max of A
        mn_sc[...] = jnp.full_like(mn_sc, jnp.inf)            # running per-class min of A
        l_sc[...] = jnp.zeros_like(l_sc)                      # running exp-sum
        s_sc[...] = jnp.zeros_like(s_sc)                      # running sum of exp(A)*hw

    # h is streamed in its HBM dtype; cast to bf16 per tile (no wrapper astype pass).
    h = h_ref[...].astype(jnp.bfloat16)                       # [T, L]

    # fc + ReLU (bf16 MXU operands, f32 accumulation)
    h1 = jnp.maximum(
        jnp.dot(h, w1_ref[...], preferred_element_type=jnp.float32) + b1_ref[...],
        0.0)                                                   # [T, D1] f32
    h1b = h1.astype(jnp.bfloat16)

    # one fused matmul: [attention_a | attention_b | per-class bag classifiers]
    abh = jnp.dot(h1b, wabc_ref[...], preferred_element_type=jnp.float32) + babc_ref[...]
    c = bc_ref.shape[1]
    d2 = (abh.shape[1] - c) // 2
    a = jnp.tanh(abh[:, :d2])
    g = jax.nn.sigmoid(abh[:, d2:2 * d2])
    hw = abh[:, 2 * d2:]                                       # [T, C] = h1 @ Wcls (bias added later)
    ag = (a * g).astype(jnp.bfloat16)                          # [T, D2]

    # attention logits per class
    A = jnp.dot(ag, wc_ref[...], preferred_element_type=jnp.float32) + bc_ref[...]  # [T, C]
    araw_ref[...] = A          # partial last block is clipped to the (N, C) out_shape

    # mask rows past the true bag length (ragged last tile / clamped duplicate tile)
    t = A.shape[0]
    gidx = pl.program_id(0) * pl.num_programs(1) + i           # unclamped global tile index
    row = jax.lax.broadcasted_iota(jnp.int32, (t, 1), 0) + gidx * t
    valid = row < n_ref[0]
    a_hi = jnp.where(valid, A, -jnp.inf)
    a_lo = jnp.where(valid, A, jnp.inf)

    # online softmax over instances (per class) + fused weighted sum for the bag logits
    m_prev = m_sc[...]
    m_new = jnp.maximum(m_prev, jnp.max(a_hi, axis=0, keepdims=True))   # [1, C]
    # a tile/core segment with zero valid rows keeps m_new == -inf: guard exp(-inf - -inf)
    alpha = jnp.where(m_new == -jnp.inf, 0.0, jnp.exp(m_prev - m_new))
    p = jnp.exp(A - m_new)                                              # [T, C]
    # where-mask p and p*hw (garbage rows in the un-padded tail may be inf/NaN)
    l_sc[...] = alpha * l_sc[...] + jnp.sum(jnp.where(valid, p, 0.0), axis=0, keepdims=True)
    s_sc[...] = alpha * s_sc[...] + jnp.sum(jnp.where(valid, p * hw, 0.0), axis=0, keepdims=True)
    m_sc[...] = m_new
    mn_sc[...] = jnp.minimum(mn_sc[...], jnp.min(a_lo, axis=0, keepdims=True))

    @pl.when(i == pl.num_programs(1) - 1)
    def _finalize():                                            # per-core partial stats
        m_out[0] = m_sc[...]
        l_out[0] = l_sc[...]
        s_out[0] = s_sc[...]
        mn_out[0] = mn_sc[...]


def clam_mb_forward(h, params, tile_n=None):
    """Returns (logits, Y_prob, Y_hat, A_score, results_dict) like CLAM_MB.forward."""
    N, L = h.shape
    C = params["bc"].shape[1]

    # fused RHS: gated-attention branches + the C per-class bag-classifier columns
    wabc = jnp.concatenate(
        [params["wa"], params["wb"], params["wcls"]], axis=1).astype(jnp.bfloat16)   # [D1, 2*D2+C]
    babc = jnp.concatenate(
        [params["ba"], params["bb"], jnp.zeros((1, C), jnp.float32)], axis=1)        # [1, 2*D2+C]
    w1 = params["w1"].astype(jnp.bfloat16)
    wc = params["wc"].astype(jnp.bfloat16)

    if tile_n is None:
        tile_n = min(1024, _round_up(N, 16))      # 1024: big enough to amortize grid overhead,
                                                  # small enough for v7x's 64 MiB VMEM
    nt = _cdiv(N, tile_n)                         # no jnp.pad of h: ragged last tile masked in-kernel
    ncores = 2 if nt >= 2 else 1                  # v7x: split instance axis across both TensorCores
    tpc = _cdiv(nt, ncores)                       # tiles per core (inner "arbitrary" axis)
    h_nbuf = 3 if tpc >= 3 else 2                 # triple-buffer h (v6e sits at the HBM/MXU knee)

    def tile_map(c, i, n):
        # clamp the trailing padded tile of an odd split; its rows are fully masked in-kernel
        return (jnp.minimum(c * tpc + i, nt - 1), 0)

    def w_map(c, i, n):
        return (0, 0)

    def stat_map(c, i, n):
        return (c, 0, 0)

    grid_spec = pltpu.PrefetchScalarGridSpec(
        num_scalar_prefetch=1,
        grid=(ncores, tpc),
        in_specs=[
            _spec((tile_n, L), tile_map, h_nbuf),             # h tile (streamed)
            _spec(w1.shape, w_map, 1),                        # resident weights: single-buffered
            _spec(params["b1"].shape, w_map, 1),
            _spec(wabc.shape, w_map, 1),
            _spec(babc.shape, w_map, 1),
            _spec(wc.shape, w_map, 1),
            _spec(params["bc"].shape, w_map, 1),
        ],
        out_specs=(
            pl.BlockSpec((tile_n, C), tile_map),              # raw A [N, C]
            pl.BlockSpec((1, 1, C), stat_map),                # per-core running max
            pl.BlockSpec((1, 1, C), stat_map),                # per-core exp-sum
            pl.BlockSpec((1, 1, C), stat_map),                # per-core sum exp(A)*hw
            pl.BlockSpec((1, 1, C), stat_map),                # per-core running min
        ),
        scratch_shapes=[pltpu.VMEM((1, C), jnp.float32)] * 4,
    )

    araw, m_p, l_p, s_p, mn_p = pl.pallas_call(
        _clam_mb_kernel,
        out_shape=(
            jax.ShapeDtypeStruct((N, C), jnp.float32),
            jax.ShapeDtypeStruct((ncores, 1, C), jnp.float32),
            jax.ShapeDtypeStruct((ncores, 1, C), jnp.float32),
            jax.ShapeDtypeStruct((ncores, 1, C), jnp.float32),
            jax.ShapeDtypeStruct((ncores, 1, C), jnp.float32),
        ),
        grid_spec=grid_spec,
        compiler_params=pltpu.CompilerParams(
            dimension_semantics=("parallel", "arbitrary"),    # cores x instance-tiles
            vmem_limit_bytes=48 * 1024 * 1024),
    )(jnp.array([N], jnp.int32), h, w1, params["b1"], wabc, babc, wc, params["bc"])

    # ---- tiny cross-core combine + presentation (O(C) / O(N*C) work only) ----
    m_p = m_p[:, 0, :]
    l_p = l_p[:, 0, :]
    s_p = s_p[:, 0, :]
    mn_p = mn_p[:, 0, :]
    m = jnp.max(m_p, axis=0, keepdims=True)                   # [1, C] global per-class max
    w = jnp.exp(m_p - m)                                       # empty core segment -> exp(-inf) = 0
    l = jnp.sum(w * l_p, axis=0, keepdims=True)
    s = jnp.sum(w * s_p, axis=0, keepdims=True)
    logits = s / l + params["bcls"]                            # [1, C]
    y_prob = jax.nn.softmax(logits, axis=1)
    y_hat = jnp.argmax(logits, axis=1).reshape(1, 1).astype(jnp.int32)

    mn = jnp.min(mn_p)                                         # global min(A)
    mx = jnp.max(m_p)                                          # global max(A)
    inv = 1.0 / (mx - mn)                                      # same 0/0 hazard as the torch reference
    a_new = (araw - mn) * inv                                  # [N, C], normalized once
    a_score = list(a_new.T)                                    # C arrays of shape [N] == A_new[i]
    results_dict = {}                                          # instance_eval=False path
    return logits, y_prob, y_hat, a_score, results_dict


def clam_mb_reference(h, params):
    """Pure-JAX f32 reference of the torch forward (default call path)."""
    h1 = jnp.maximum(h @ params["w1"] + params["b1"], 0.0)
    a = jnp.tanh(h1 @ params["wa"] + params["ba"])
    g = jax.nn.sigmoid(h1 @ params["wb"] + params["bb"])
    A = (a * g) @ params["wc"] + params["bc"]                  # [N, C]
    At = A.T                                                   # [C, N]
    mn, mx = At.min(), At.max()
    a_new = (At - mn) / (mx - mn)
    a_sm = jax.nn.softmax(At, axis=1)
    M = a_sm @ h1                                              # [C, D1]
    logits = (jnp.sum(M * params["wcls"].T, axis=1) + params["bcls"][0])[None, :]
    y_prob = jax.nn.softmax(logits, axis=1)
    y_hat = jnp.argmax(logits, axis=1).reshape(1, 1)
    return logits, y_prob, y_hat, [a_new[i] for i in range(A.shape[1])]


def init_params(key, L, D1, D2, C):
    ks = jax.random.split(key, 10)
    s = 0.02
    return {
        "w1":   s * jax.random.normal(ks[0], (L, D1), jnp.float32),
        "b1":   0.01 * jax.random.normal(ks[1], (1, D1), jnp.float32),
        "wa":   s * jax.random.normal(ks[2], (D1, D2), jnp.float32),
        "ba":   0.01 * jax.random.normal(ks[3], (1, D2), jnp.float32),
        "wb":   s * jax.random.normal(ks[4], (D1, D2), jnp.float32),
        "bb":   0.01 * jax.random.normal(ks[5], (1, D2), jnp.float32),
        "wc":   s * jax.random.normal(ks[6], (D2, C), jnp.float32),
        "bc":   0.01 * jax.random.normal(ks[7], (1, C), jnp.float32),
        # stacked per-class bag classifiers (each nn.Linear(D1, 1)) -> [D1, C]
        "wcls": s * jax.random.normal(ks[8], (D1, C), jnp.float32),
        "bcls": 0.01 * jax.random.normal(ks[9], (1, C), jnp.float32),
    }


if __name__ == "__main__":
    # module's native feature dims (size_arg='small': [1024, 512, 256]), n_classes=2
    L, D1, D2, C = 1024, 512, 256, 2
    key = jax.random.PRNGKey(0)
    k_h, k_p = jax.random.split(key)
    params = init_params(k_p, L, D1, D2, C)

    fwd = jax.jit(clam_mb_forward, static_argnames=("tile_n",))

    def check(N, tile_n=None):
        hN = jax.random.normal(jax.random.fold_in(k_h, N), (N, L), jnp.float32)
        if tile_n is None:
            out = fwd(hN, params)
        else:
            out = fwd(hN, params, tile_n=tile_n)
        logits, y_prob, y_hat, a_score, results = jax.block_until_ready(out)
        r_logits, r_prob, _, r_score = clam_mb_reference(hN, params)
        assert logits.shape == (1, C) and y_prob.shape == (1, C) and y_hat.shape == (1, 1)
        assert len(a_score) == C and a_score[0].shape == (N,)
        assert results == {}
        # bf16 MXU operands vs f32 torch reference: ~1e-2-level agreement expected
        assert float(jnp.max(jnp.abs(logits - r_logits))) < 5e-2
        assert float(jnp.max(jnp.abs(y_prob - r_prob))) < 5e-2
        assert float(jnp.max(jnp.abs(jnp.stack(a_score) - jnp.stack(r_score)))) < 1e-1

    # single-tile / single-core path (bag smaller than one tile)
    check(64)
    # streaming path: ragged last tile, odd tile count split across the 2-core grid
    check(200, tile_n=48)
    print("KERNEL_OK")
</pallas_src>

<mosaic_0001>
module attributes {stable_mosaic.version = 11 : i64} {
  func.func @_clam_mb_kernel(%arg0: i32, %arg1: i32, %arg2: memref<1xi32, #tpu.memory_space<smem>>, %arg3: memref<64x1024xf32, #tpu.memory_space<vmem>>, %arg4: memref<1024x512xbf16, #tpu.memory_space<vmem>>, %arg5: memref<1x512xf32, #tpu.memory_space<vmem>>, %arg6: memref<512x514xbf16, #tpu.memory_space<vmem>>, %arg7: memref<1x514xf32, #tpu.memory_space<vmem>>, %arg8: memref<256x2xbf16, #tpu.memory_space<vmem>>, %arg9: memref<1x2xf32, #tpu.memory_space<vmem>>, %arg10: memref<64x2xf32, #tpu.memory_space<vmem>>, %arg11: memref<1x1x2xf32, #tpu.memory_space<vmem>>, %arg12: memref<1x1x2xf32, #tpu.memory_space<vmem>>, %arg13: memref<1x1x2xf32, #tpu.memory_space<vmem>>, %arg14: memref<1x1x2xf32, #tpu.memory_space<vmem>>, %arg15: memref<1x2xf32, #tpu.memory_space<vmem>>, %arg16: memref<1x2xf32, #tpu.memory_space<vmem>>, %arg17: memref<1x2xf32, #tpu.memory_space<vmem>>, %arg18: memref<1x2xf32, #tpu.memory_space<vmem>>) attributes {dimension_semantics = [#tpu.dimension_semantics<parallel>, #tpu.dimension_semantics<arbitrary>], iteration_bounds = array<i64: 1, 1>, scalar_prefetch = 1 : i64, scratch_operands = 4 : i64, tpu.core_type = #tpu.core_type<tc>, window_params = [{pipeline_mode = #tpu.pipeline_mode<double_buffered>, transform_indices = @transform_0, window_bounds = array<i64: 64, 1024>}, {pipeline_mode = #tpu.pipeline_mode<synchronous>, transform_indices = @transform_1, window_bounds = array<i64: 1024, 512>}, {pipeline_mode = #tpu.pipeline_mode<synchronous>, transform_indices = @transform_2, window_bounds = array<i64: 1, 512>}, {pipeline_mode = #tpu.pipeline_mode<synchronous>, transform_indices = @transform_3, window_bounds = array<i64: 512, 514>}, {pipeline_mode = #tpu.pipeline_mode<synchronous>, transform_indices = @transform_4, window_bounds = array<i64: 1, 514>}, {pipeline_mode = #tpu.pipeline_mode<synchronous>, transform_indices = @transform_5, window_bounds = array<i64: 256, 2>}, {pipeline_mode = #tpu.pipeline_mode<synchronous>, transform_indices = @transform_6, window_bounds = array<i64: 1, 2>}, {transform_indices = @transform_7, window_bounds = array<i64: 64, 2>}, {transform_indices = @transform_8, window_bounds = array<i64: 1, 1, 2>}, {transform_indices = @transform_9, window_bounds = array<i64: 1, 1, 2>}, {transform_indices = @transform_10, window_bounds = array<i64: 1, 1, 2>}, {transform_indices = @transform_11, window_bounds = array<i64: 1, 1, 2>}]} {
    %c0_i32 = arith.constant 0 : i32
    %0 = arith.cmpi eq, %arg1, %c0_i32 : i32
    %1 = arith.extui %0 : i1 to i32
    %c0_i32_0 = arith.constant 0 : i32
    %2 = arith.cmpi ne, %1, %c0_i32_0 : i32
    scf.if %2 {
      %cst_49 = arith.constant 0xFF800000 : f32
      %95 = vector.broadcast %cst_49 : f32 to vector<1x2xf32>
      %c0_50 = arith.constant 0 : index
      %c0_51 = arith.constant 0 : index
      %96 = vector.load %arg15[%c0_50, %c0_51] : memref<1x2xf32, #tpu.memory_space<vmem>>, vector<1x2xf32>
      tpu.vector_store %arg15[%c0_50, %c0_51], %95 {strides = array<i32>} : memref<1x2xf32, #tpu.memory_space<vmem>>, vector<1x2xf32>,
      %cst_52 = arith.constant 0x7F800000 : f32
      %97 = vector.broadcast %cst_52 : f32 to vector<1x2xf32>
      %c0_53 = arith.constant 0 : index
      %c0_54 = arith.constant 0 : index
      %98 = vector.load %arg18[%c0_53, %c0_54] : memref<1x2xf32, #tpu.memory_space<vmem>>, vector<1x2xf32>
      tpu.vector_store %arg18[%c0_53, %c0_54], %97 {strides = array<i32>} : memref<1x2xf32, #tpu.memory_space<vmem>>, vector<1x2xf32>,
      %cst_55 = arith.constant 0.000000e+00 : f32
      %99 = vector.broadcast %cst_55 : f32 to vector<1x2xf32>
      %c0_56 = arith.constant 0 : index
      %c0_57 = arith.constant 0 : index
      %100 = vector.load %arg16[%c0_56, %c0_57] : memref<1x2xf32, #tpu.memory_space<vmem>>, vector<1x2xf32>
      tpu.vector_store %arg16[%c0_56, %c0_57], %99 {strides = array<i32>} : memref<1x2xf32, #tpu.memory_space<vmem>>, vector<1x2xf32>,
      %cst_58 = arith.constant 0.000000e+00 : f32
      %101 = vector.broadcast %cst_58 : f32 to vector<1x2xf32>
      %c0_59 = arith.constant 0 : index
      %c0_60 = arith.constant 0 : index
      %102 = vector.load %arg17[%c0_59, %c0_60] : memref<1x2xf32, #tpu.memory_space<vmem>>, vector<1x2xf32>
      tpu.vector_store %arg17[%c0_59, %c0_60], %101 {strides = array<i32>} : memref<1x2xf32, #tpu.memory_space<vmem>>, vector<1x2xf32>,
    } else {
    }
    %c0 = arith.constant 0 : index
    %c0_1 = arith.constant 0 : index
    %3 = vector.load %arg3[%c0, %c0_1] : memref<64x1024xf32, #tpu.memory_space<vmem>>, vector<64x1024xf32>
    %4 = arith.truncf %3 : vector<64x1024xf32> to vector<64x1024xbf16>
    %c0_2 = arith.constant 0 : index
    %c0_3 = arith.constant 0 : index
    %5 = vector.load %arg4[%c0_2, %c0_3] : memref<1024x512xbf16, #tpu.memory_space<vmem>>, vector<1024x512xbf16>
    %cst = arith.constant dense<0.000000e+00> : vector<64x512xf32>
    %6 = tpu.matmul %4, %5, %cst {dimension_numbers = #tpu.dot_dimension_numbers<[1], [0], [0], [1], [0, 0, 1, 1], [], []>} : vector<64x1024xbf16>, vector<1024x512xbf16>, vector<64x512xf32> -> vector<64x512xf32>
    %c0_4 = arith.constant 0 : index
    %c0_5 = arith.constant 0 : index
    %7 = vector.load %arg5[%c0_4, %c0_5] : memref<1x512xf32, #tpu.memory_space<vmem>>, vector<1x512xf32>
    %8 = vector.broadcast %7 : vector<1x512xf32> to vector<64x512xf32>
    %9 = arith.addf %6, %8 : vector<64x512xf32>
    %cst_6 = arith.constant 0.000000e+00 : f32
    %10 = vector.broadcast %cst_6 : f32 to vector<64x512xf32>
    %11 = arith.maximumf %9, %10 : vector<64x512xf32>
    %12 = arith.truncf %11 : vector<64x512xf32> to vector<64x512xbf16>
    %c0_7 = arith.constant 0 : index
    %c0_8 = arith.constant 0 : index
    %13 = vector.load %arg6[%c0_7, %c0_8] : memref<512x514xbf16, #tpu.memory_space<vmem>>, vector<512x514xbf16>
    %cst_9 = arith.constant dense<0.000000e+00> : vector<64x514xf32>
    %14 = tpu.matmul %12, %13, %cst_9 {dimension_numbers = #tpu.dot_dimension_numbers<[1], [0], [0], [1], [0, 0, 1, 1], [], []>} : vector<64x512xbf16>, vector<512x514xbf16>, vector<64x514xf32> -> vector<64x514xf32>
    %c0_10 = arith.constant 0 : index
    %c0_11 = arith.constant 0 : index
    %15 = vector.load %arg7[%c0_10, %c0_11] : memref<1x514xf32, #tpu.memory_space<vmem>>, vector<1x514xf32>
    %16 = vector.broadcast %15 : vector<1x514xf32> to vector<64x514xf32>
    %17 = arith.addf %14, %16 : vector<64x514xf32>
    %18 = vector.extract_strided_slice %17 {offsets = [0, 0], sizes = [64, 256], strides = [1, 1]} : vector<64x514xf32> to vector<64x256xf32>
    %19 = math.tanh %18 : vector<64x256xf32>
    %20 = vector.extract_strided_slice %17 {offsets = [0, 256], sizes = [64, 256], strides = [1, 1]} : vector<64x514xf32> to vector<64x256xf32>
    %21 = arith.negf %20 : vector<64x256xf32>
    %22 = math.exp %21 : vector<64x256xf32>
    %cst_12 = arith.constant 1.000000e+00 : f32
    %23 = vector.broadcast %cst_12 : f32 to vector<64x256xf32>
    %24 = arith.addf %23, %22 : vector<64x256xf32>
    %25 = arith.divf %23, %24 : vector<64x256xf32>
    %26 = vector.extract_strided_slice %17 {offsets = [0, 512], sizes = [64, 2], strides = [1, 1]} : vector<64x514xf32> to vector<64x2xf32>
    %27 = arith.mulf %19, %25 : vector<64x256xf32>
    %28 = arith.truncf %27 : vector<64x256xf32> to vector<64x256xbf16>
    %c0_13 = arith.constant 0 : index
    %c0_14 = arith.constant 0 : index
    %29 = vector.load %arg8[%c0_13, %c0_14] : memref<256x2xbf16, #tpu.memory_space<vmem>>, vector<256x2xbf16>
    %cst_15 = arith.constant dense<0.000000e+00> : vector<64x2xf32>
    %30 = tpu.matmul %28, %29, %cst_15 {dimension_numbers = #tpu.dot_dimension_numbers<[1], [0], [0], [1], [0, 0, 1, 1], [], []>} : vector<64x256xbf16>, vector<256x2xbf16>, vector<64x2xf32> -> vector<64x2xf32>
    %c0_16 = arith.constant 0 : index
    %c0_17 = arith.constant 0 : index
    %31 = vector.load %arg9[%c0_16, %c0_17] : memref<1x2xf32, #tpu.memory_space<vmem>>, vector<1x2xf32>
    %32 = vector.broadcast %31 : vector<1x2xf32> to vector<64x2xf32>
    %33 = arith.addf %30, %32 : vector<64x2xf32>
    %c0_18 = arith.constant 0 : index
    %c0_19 = arith.constant 0 : index
    %34 = vector.load %arg10[%c0_18, %c0_19] : memref<64x2xf32, #tpu.memory_space<vmem>>, vector<64x2xf32>
    tpu.vector_store %arg10[%c0_18, %c0_19], %33 {strides = array<i32>} : memref<64x2xf32, #tpu.memory_space<vmem>>, vector<64x2xf32>,
    %c1_i32 = arith.constant 1 : i32
    %35 = arith.muli %arg0, %c1_i32 : i32
    %36 = arith.addi %35, %arg1 : i32
    %37 = tpu.iota {dimensions = array<i32: 0>} : vector<64x1xi32>
    %c64_i32 = arith.constant 64 : i32
    %38 = arith.muli %36, %c64_i32 : i32
    %39 = vector.broadcast %38 : i32 to vector<64x1xi32>
    %40 = arith.addi %37, %39 : vector<64x1xi32>
    %c0_20 = arith.constant 0 : index
    %41 = memref.load %arg2[%c0_20] : memref<1xi32, #tpu.memory_space<smem>>
    %42 = vector.broadcast %41 : i32 to vector<64x1xi32>
    %43 = arith.cmpi slt, %40, %42 : vector<64x1xi32>
    %cst_21 = arith.constant 0xFF800000 : f32
    %44 = vector.shape_cast %43 : vector<64x1xi1> to vector<64x1xi1>
    %45 = vector.broadcast %44 : vector<64x1xi1> to vector<64x2xi1>
    %46 = vector.broadcast %cst_21 : f32 to vector<64x2xf32>
    %47 = arith.select %45, %33, %46 : vector<64x2xi1>, vector<64x2xf32>
    %cst_22 = arith.constant 0x7F800000 : f32
    %48 = vector.shape_cast %43 : vector<64x1xi1> to vector<64x1xi1>
    %49 = vector.broadcast %48 : vector<64x1xi1> to vector<64x2xi1>
    %50 = vector.broadcast %cst_22 : f32 to vector<64x2xf32>
    %51 = arith.select %49, %33, %50 : vector<64x2xi1>, vector<64x2xf32>
    %c0_23 = arith.constant 0 : index
    %c0_24 = arith.constant 0 : index
    %52 = vector.load %arg15[%c0_23, %c0_24] : memref<1x2xf32, #tpu.memory_space<vmem>>, vector<1x2xf32>
    %cst_25 = arith.constant dense<0xFF800000> : vector<2xf32>
    %53 = vector.multi_reduction <maximumf>, %47, %cst_25 [0] : vector<64x2xf32> to vector<2xf32>
    %54 = vector.shape_cast %53 : vector<2xf32> to vector<1x2xf32>
    %55 = arith.maximumf %52, %54 : vector<1x2xf32>
    %cst_26 = arith.constant 0xFF800000 : f32
    %56 = vector.broadcast %cst_26 : f32 to vector<1x2xf32>
    %57 = arith.cmpf oeq, %55, %56 : vector<1x2xf32>
    %58 = arith.subf %52, %55 : vector<1x2xf32>
    %59 = math.exp %58 : vector<1x2xf32>
    %cst_27 = arith.constant 0.000000e+00 : f32
    %60 = vector.broadcast %cst_27 : f32 to vector<1x2xf32>
    %61 = arith.select %57, %60, %59 : vector<1x2xi1>, vector<1x2xf32>
    %62 = vector.broadcast %55 : vector<1x2xf32> to vector<64x2xf32>
    %63 = arith.subf %33, %62 : vector<64x2xf32>
    %64 = math.exp %63 : vector<64x2xf32>
    %c0_28 = arith.constant 0 : index
    %c0_29 = arith.constant 0 : index
    %65 = vector.load %arg16[%c0_28, %c0_29] : memref<1x2xf32, #tpu.memory_space<vmem>>, vector<1x2xf32>
    %66 = arith.mulf %61, %65 : vector<1x2xf32>
    %cst_30 = arith.constant 0.000000e+00 : f32
    %67 = vector.shape_cast %43 : vector<64x1xi1> to vector<64x1xi1>
    %68 = vector.broadcast %67 : vector<64x1xi1> to vector<64x2xi1>
    %69 = vector.broadcast %cst_30 : f32 to vector<64x2xf32>
    %70 = arith.select %68, %64, %69 : vector<64x2xi1>, vector<64x2xf32>
    %cst_31 = arith.constant dense<0.000000e+00> : vector<2xf32>
    %71 = vector.multi_reduction <add>, %70, %cst_31 [0] : vector<64x2xf32> to vector<2xf32>
    %72 = vector.shape_cast %71 : vector<2xf32> to vector<1x2xf32>
    %73 = arith.addf %66, %72 : vector<1x2xf32>
    %c0_32 = arith.constant 0 : index
    %c0_33 = arith.constant 0 : index
    %74 = vector.load %arg16[%c0_32, %c0_33] : memref<1x2xf32, #tpu.memory_space<vmem>>, vector<1x2xf32>
    tpu.vector_store %arg16[%c0_32, %c0_33], %73 {strides = array<i32>} : memref<1x2xf32, #tpu.memory_space<vmem>>, vector<1x2xf32>,
    %c0_34 = arith.constant 0 : index
    %c0_35 = arith.constant 0 : index
    %75 = vector.load %arg17[%c0_34, %c0_35] : memref<1x2xf32, #tpu.memory_space<vmem>>, vector<1x2xf32>
    %76 = arith.mulf %61, %75 : vector<1x2xf32>
    %77 = arith.mulf %64, %26 : vector<64x2xf32>
    %cst_36 = arith.constant 0.000000e+00 : f32
    %78 = vector.shape_cast %43 : vector<64x1xi1> to vector<64x1xi1>
    %79 = vector.broadcast %78 : vector<64x1xi1> to vector<64x2xi1>
    %80 = vector.broadcast %cst_36 : f32 to vector<64x2xf32>
    %81 = arith.select %79, %77, %80 : vector<64x2xi1>, vector<64x2xf32>
    %cst_37 = arith.constant dense<0.000000e+00> : vector<2xf32>
    %82 = vector.multi_reduction <add>, %81, %cst_37 [0] : vector<64x2xf32> to vector<2xf32>
    %83 = vector.shape_cast %82 : vector<2xf32> to vector<1x2xf32>
    %84 = arith.addf %76, %83 : vector<1x2xf32>
    %c0_38 = arith.constant 0 : index
    %c0_39 = arith.constant 0 : index
    %85 = vector.load %arg17[%c0_38, %c0_39] : memref<1x2xf32, #tpu.memory_space<vmem>>, vector<1x2xf32>
    tpu.vector_store %arg17[%c0_38, %c0_39], %84 {strides = array<i32>} : memref<1x2xf32, #tpu.memory_space<vmem>>, vector<1x2xf32>,
    %c0_40 = arith.constant 0 : index
    %c0_41 = arith.constant 0 : index
    %86 = vector.load %arg15[%c0_40, %c0_41] : memref<1x2xf32, #tpu.memory_space<vmem>>, vector<1x2xf32>
    tpu.vector_store %arg15[%c0_40, %c0_41], %55 {strides = array<i32>} : memref<1x2xf32, #tpu.memory_space<vmem>>, vector<1x2xf32>,
    %c0_42 = arith.constant 0 : index
    %c0_43 = arith.constant 0 : index
    %87 = vector.load %arg18[%c0_42, %c0_43] : memref<1x2xf32, #tpu.memory_space<vmem>>, vector<1x2xf32>
    %cst_44 = arith.constant dense<0x7F800000> : vector<2xf32>
    %88 = vector.multi_reduction <minimumf>, %51, %cst_44 [0] : vector<64x2xf32> to vector<2xf32>
    %89 = vector.shape_cast %88 : vector<2xf32> to vector<1x2xf32>
    %90 = arith.minimumf %87, %89 : vector<1x2xf32>
    %c0_45 = arith.constant 0 : index
    %c0_46 = arith.constant 0 : index
    %91 = vector.load %arg18[%c0_45, %c0_46] : memref<1x2xf32, #tpu.memory_space<vmem>>, vector<1x2xf32>
    tpu.vector_store %arg18[%c0_45, %c0_46], %90 {strides = array<i32>} : memref<1x2xf32, #tpu.memory_space<vmem>>, vector<1x2xf32>,
    %c0_i32_47 = arith.constant 0 : i32
    %92 = arith.cmpi eq, %arg1, %c0_i32_47 : i32
    %93 = arith.extui %92 : i1 to i32
    %c0_i32_48 = arith.constant 0 : i32
    %94 = arith.cmpi ne, %93, %c0_i32_48 : i32
    scf.if %94 {
      %c0_49 = arith.constant 0 : index
      %c0_50 = arith.constant 0 : index
      %95 = vector.load %arg15[%c0_49, %c0_50] : memref<1x2xf32, #tpu.memory_space<vmem>>, vector<1x2xf32>
      %c0_51 = arith.constant 0 : index
      %c0_52 = arith.constant 0 : index
      %c0_53 = arith.constant 0 : index
      %96 = vector.load %arg11[%c0_51, %c0_52, %c0_53] : memref<1x1x2xf32, #tpu.memory_space<vmem>>, vector<1x1x2xf32>
      %97 = vector.shape_cast %96 : vector<1x1x2xf32> to vector<1x2xf32>
      %98 = vector.shape_cast %95 : vector<1x2xf32> to vector<1x1x2xf32>
      tpu.vector_store %arg11[%c0_51, %c0_52, %c0_53], %98 {strides = array<i32>} : memref<1x1x2xf32, #tpu.memory_space<vmem>>, vector<1x1x2xf32>,
      %c0_54 = arith.constant 0 : index
      %c0_55 = arith.constant 0 : index
      %99 = vector.load %arg16[%c0_54, %c0_55] : memref<1x2xf32, #tpu.memory_space<vmem>>, vector<1x2xf32>
      %c0_56 = arith.constant 0 : index
      %c0_57 = arith.constant 0 : index
      %c0_58 = arith.constant 0 : index
      %100 = vector.load %arg12[%c0_56, %c0_57, %c0_58] : memref<1x1x2xf32, #tpu.memory_space<vmem>>, vector<1x1x2xf32>
      %101 = vector.shape_cast %100 : vector<1x1x2xf32> to vector<1x2xf32>
      %102 = vector.shape_cast %99 : vector<1x2xf32> to vector<1x1x2xf32>
      tpu.vector_store %arg12[%c0_56, %c0_57, %c0_58], %102 {strides = array<i32>} : memref<1x1x2xf32, #tpu.memory_space<vmem>>, vector<1x1x2xf32>,
      %c0_59 = arith.constant 0 : index
      %c0_60 = arith.constant 0 : index
      %103 = vector.load %arg17[%c0_59, %c0_60] : memref<1x2xf32, #tpu.memory_space<vmem>>, vector<1x2xf32>
      %c0_61 = arith.constant 0 : index
      %c0_62 = arith.constant 0 : index
      %c0_63 = arith.constant 0 : index
      %104 = vector.load %arg13[%c0_61, %c0_62, %c0_63] : memref<1x1x2xf32, #tpu.memory_space<vmem>>, vector<1x1x2xf32>
      %105 = vector.shape_cast %104 : vector<1x1x2xf32> to vector<1x2xf32>
      %106 = vector.shape_cast %103 : vector<1x2xf32> to vector<1x1x2xf32>
      tpu.vector_store %arg13[%c0_61, %c0_62, %c0_63], %106 {strides = array<i32>} : memref<1x1x2xf32, #tpu.memory_space<vmem>>, vector<1x1x2xf32>,
      %c0_64 = arith.constant 0 : index
      %c0_65 = arith.constant 0 : index
      %107 = vector.load %arg18[%c0_64, %c0_65] : memref<1x2xf32, #tpu.memory_space<vmem>>, vector<1x2xf32>
      %c0_66 = arith.constant 0 : index
      %c0_67 = arith.constant 0 : index
      %c0_68 = arith.constant 0 : index
      %108 = vector.load %arg14[%c0_66, %c0_67, %c0_68] : memref<1x1x2xf32, #tpu.memory_space<vmem>>, vector<1x1x2xf32>
      %109 = vector.shape_cast %108 : vector<1x1x2xf32> to vector<1x2xf32>
      %110 = vector.shape_cast %107 : vector<1x2xf32> to vector<1x1x2xf32>
      tpu.vector_store %arg14[%c0_66, %c0_67, %c0_68], %110 {strides = array<i32>} : memref<1x1x2xf32, #tpu.memory_space<vmem>>, vector<1x1x2xf32>,
    } else {
    }
    return
  }
  func.func @transform_0(%arg0: i32, %arg1: i32, %arg2: memref<1xi32, #tpu.memory_space<smem>>) -> (i32, i32) {
    %c1_i32 = arith.constant 1 : i32
    %0 = arith.muli %arg0, %c1_i32 : i32
    %1 = arith.addi %0, %arg1 : i32
    %c0_i32 = arith.constant 0 : i32
    %2 = arith.minsi %1, %c0_i32 : i32
    %c0_i32_0 = arith.constant 0 : i32
    %c0_i32_1 = arith.constant 0 : i32
    return %2, %c0_i32_0 : i32, i32
  }
  func.func @transform_1(%arg0: i32, %arg1: i32, %arg2: memref<1xi32, #tpu.memory_space<smem>>) -> (i32, i32) {
    %c0_i32 = arith.constant 0 : i32
    %c0_i32_0 = arith.constant 0 : i32
    %c0_i32_1 = arith.constant 0 : i32
    return %c0_i32, %c0_i32_0 : i32, i32
  }
  func.func @transform_2(%arg0: i32, %arg1: i32, %arg2: memref<1xi32, #tpu.memory_space<smem>>) -> (i32, i32) {
    %c0_i32 = arith.constant 0 : i32
    %c0_i32_0 = arith.constant 0 : i32
    %c0_i32_1 = arith.constant 0 : i32
    return %c0_i32, %c0_i32_0 : i32, i32
  }
  func.func @transform_3(%arg0: i32, %arg1: i32, %arg2: memref<1xi32, #tpu.memory_space<smem>>) -> (i32, i32) {
    %c0_i32 = arith.constant 0 : i32
    %c0_i32_0 = arith.constant 0 : i32
    %c0_i32_1 = arith.constant 0 : i32
    return %c0_i32, %c0_i32_0 : i32, i32
  }
  func.func @transform_4(%arg0: i32, %arg1: i32, %arg2: memref<1xi32, #tpu.memory_space<smem>>) -> (i32, i32) {
    %c0_i32 = arith.constant 0 : i32
    %c0_i32_0 = arith.constant 0 : i32
    %c0_i32_1 = arith.constant 0 : i32
    return %c0_i32, %c0_i32_0 : i32, i32
  }
  func.func @transform_5(%arg0: i32, %arg1: i32, %arg2: memref<1xi32, #tpu.memory_space<smem>>) -> (i32, i32) {
    %c0_i32 = arith.constant 0 : i32
    %c0_i32_0 = arith.constant 0 : i32
    %c0_i32_1 = arith.constant 0 : i32
    return %c0_i32, %c0_i32_0 : i32, i32
  }
  func.func @transform_6(%arg0: i32, %arg1: i32, %arg2: memref<1xi32, #tpu.memory_space<smem>>) -> (i32, i32) {
    %c0_i32 = arith.constant 0 : i32
    %c0_i32_0 = arith.constant 0 : i32
    %c0_i32_1 = arith.constant 0 : i32
    return %c0_i32, %c0_i32_0 : i32, i32
  }
  func.func @transform_7(%arg0: i32, %arg1: i32, %arg2: memref<1xi32, #tpu.memory_space<smem>>) -> (i32, i32) {
    %c1_i32 = arith.constant 1 : i32
    %0 = arith.muli %arg0, %c1_i32 : i32
    %1 = arith.addi %0, %arg1 : i32
    %c0_i32 = arith.constant 0 : i32
    %2 = arith.minsi %1, %c0_i32 : i32
    %c0_i32_0 = arith.constant 0 : i32
    %c0_i32_1 = arith.constant 0 : i32
    return %2, %c0_i32_0 : i32, i32
  }
  func.func @transform_8(%arg0: i32, %arg1: i32, %arg2: memref<1xi32, #tpu.memory_space<smem>>) -> (i32, i32, i32) {
    %c0_i32 = arith.constant 0 : i32
    %c0_i32_0 = arith.constant 0 : i32
    %c0_i32_1 = arith.constant 0 : i32
    return %arg0, %c0_i32, %c0_i32_0 : i32, i32, i32
  }
  func.func @transform_9(%arg0: i32, %arg1: i32, %arg2: memref<1xi32, #tpu.memory_space<smem>>) -> (i32, i32, i32) {
    %c0_i32 = arith.constant 0 : i32
    %c0_i32_0 = arith.constant 0 : i32
    %c0_i32_1 = arith.constant 0 : i32
    return %arg0, %c0_i32, %c0_i32_0 : i32, i32, i32
  }
  func.func @transform_10(%arg0: i32, %arg1: i32, %arg2: memref<1xi32, #tpu.memory_space<smem>>) -> (i32, i32, i32) {
    %c0_i32 = arith.constant 0 : i32
    %c0_i32_0 = arith.constant 0 : i32
    %c0_i32_1 = arith.constant 0 : i32
    return %arg0, %c0_i32, %c0_i32_0 : i32, i32, i32
  }
  func.func @transform_11(%arg0: i32, %arg1: i32, %arg2: memref<1xi32, #tpu.memory_space<smem>>) -> (i32, i32, i32) {
    %c0_i32 = arith.constant 0 : i32
    %c0_i32_0 = arith.constant 0 : i32
    %c0_i32_1 = arith.constant 0 : i32
    return %arg0, %c0_i32, %c0_i32_0 : i32, i32, i32
  }
}

</mosaic_0001>

<llo_original>
// kernel: clam_mb_forward.1
$region0: #{clam_mb_forward.1}
  #allocation0 [shape = 'u32[]', space=smem, size = 0x4, offset = 0x4, fixed_abs, tag = 'smem constant byte address 0x4 - core index']
  #allocation1 [shape = 'u32[144,128]{1,0:T(1,128)}', space=vmem, size = 0x12000, scoped, tag = 'internal scratch']
  #allocation2 [shape = 'f32[1,2]{1,0:T(1,128)}', space=vmem, size = 0x200, scoped, tag = 'scratch operand']
  #allocation3 [shape = 'f32[1,2]{1,0:T(1,128)}', space=vmem, size = 0x200, scoped, tag = 'scratch operand']
  #allocation4 [shape = 'f32[1,2]{1,0:T(1,128)}', space=vmem, size = 0x200, scoped, tag = 'scratch operand']
  #allocation5 [shape = 'f32[1,2]{1,0:T(1,128)}', space=vmem, size = 0x200, scoped, tag = 'scratch operand']
  #allocation6 [shape = 's32[1]{0}', space=sflag, size = 0x4, scoped, tag = 'scoped memory for clam_mb_forward.1']
  #allocation7 [shape = 's32[1]{0:T(128)S(6)}', space=smem, size = 0x200, scoped, tag = 'prefetched SMEM operand 0']
  %s0 = inlined_call_operand.<no memory space> [shape: s32[1], index: 0, kind: input, shape index: {}]
  %s1 = inlined_call_operand.vmem [shape: f32[64,1024], index: 1, kind: input, shape index: {}]
  %s2 = inlined_call_operand.vmem [shape: bf16[1024,512], index: 2, kind: input, shape index: {}]
  %s3 = inlined_call_operand.vmem [shape: f32[1,512], index: 3, kind: input, shape index: {}]
  %s4 = inlined_call_operand.vmem [shape: bf16[512,514], index: 4, kind: input, shape index: {}]
  %s5 = inlined_call_operand.vmem [shape: f32[1,514], index: 5, kind: input, shape index: {}]
  %s6 = inlined_call_operand.vmem [shape: bf16[256,2], index: 6, kind: input, shape index: {}]
  %s7 = inlined_call_operand.vmem [shape: f32[1,2], index: 7, kind: input, shape index: {}]
  %s8 = inlined_call_operand.vmem [shape: f32[64,2], index: 8, kind: output, shape index: {0}]
  %s9 = inlined_call_operand.vmem [shape: f32[1,1,2], index: 9, kind: output, shape index: {1}]
  %s10 = inlined_call_operand.vmem [shape: f32[1,1,2], index: 10, kind: output, shape index: {2}]
  %s11 = inlined_call_operand.vmem [shape: f32[1,1,2], index: 11, kind: output, shape index: {3}]
  %s12 = inlined_call_operand.vmem [shape: f32[1,1,2], index: 12, kind: output, shape index: {4}]
  %13 = xla_tuple %s8, %s9, %s10, %s11, %s12
  %s14 = sld [smem:[#allocation0]]
  $region78: #{clam_mb_forward.1} parent=0
    _
  %s16 = ssub.s32 1, %s14
  %s17 = scalar_select 0, %s16, %s14
  %18 = sst [smem:[#allocation7]] %s0
  // Predicated region
  $region2: #{clam_mb_forward.1} parent=0 // pred_check
    _
  $region3: #{clam_mb_forward.1} parent=0 // pred_check_branch
    %20 = sbr.rel (0) target = $region5
  $region4: #{clam_mb_forward.1} parent=0 // pred_region
    %s21 = sadd.s32 0, 0
    %p22 = scmp.lt.s32.totalorder %s21, 0
    %s23 = scalar_select %p22, %s21, 0
    %s24 = smul.u32 8, %s23
    %p25 = scmp.lt.s32.totalorder %s24, 7
    %s26 = scalar_select %p25, %s24, 7
    %s27 = smul.addr %s26, 8
    %s28 = smul.addr %s27, 8
    %s29 = scalar_lea.vmem %s1, %s28
    %s30 = sadd.s32 0, 0
    %p31 = scmp.lt.s32.totalorder %s30, 0
    %s32 = scalar_select %p31, %s30, 0
    %s33 = smul.u32 8, %s32
  $region5: #{clam_mb_forward.1} parent=0 // pred_fallthru
    _
  // Predicated region
  $region6: #{clam_mb_forward.1} parent=0 // pred_check
    _
  $region7: #{clam_mb_forward.1} parent=0 // pred_check_branch
    %35 = sbr.rel (0) target = $region9
  $region8: #{clam_mb_forward.1} parent=0 // pred_region
    _
  $region9: #{clam_mb_forward.1} parent=0 // pred_fallthru
    _
  // Predicated region
  $region10: #{clam_mb_forward.1} parent=0 // pred_check
    _
  $region11: #{clam_mb_forward.1} parent=0 // pred_check_branch
    %37 = sbr.rel (0) target = $region13
  $region12: #{clam_mb_forward.1} parent=0 // pred_region
    _
  $region13: #{clam_mb_forward.1} parent=0 // pred_fallthru
    _
  // Predicated region
  $region14: #{clam_mb_forward.1} parent=0 // pred_check
    _
  $region15: #{clam_mb_forward.1} parent=0 // pred_check_branch
    %39 = sbr.rel (0) target = $region17
  $region16: #{clam_mb_forward.1} parent=0 // pred_region
    _
  $region17: #{clam_mb_forward.1} parent=0 // pred_fallthru
    _
  // Predicated region
  $region18: #{clam_mb_forward.1} parent=0 // pred_check
    _
  $region19: #{clam_mb_forward.1} parent=0 // pred_check_branch
    %41 = sbr.rel (0) target = $region21
  $region20: #{clam_mb_forward.1} parent=0 // pred_region
    _
  $region21: #{clam_mb_forward.1} parent=0 // pred_fallthru
    _
  // Predicated region
  $region22: #{clam_mb_forward.1} parent=0 // pred_check
    _
  $region23: #{clam_mb_forward.1} parent=0 // pred_check_branch
    %43 = sbr.rel (0) target = $region25
  $region24: #{clam_mb_forward.1} parent=0 // pred_region
    _
  $region25: #{clam_mb_forward.1} parent=0 // pred_fallthru
    _
  // Predicated region
  $region26: #{clam_mb_forward.1} parent=0 // pred_check
    _
  $region27: #{clam_mb_forward.1} parent=0 // pred_check_branch
    %45 = sbr.rel (0) target = $region29
  $region28: #{clam_mb_forward.1} parent=0 // pred_region
    _
  $region29: #{clam_mb_forward.1} parent=0 // pred_fallthru
    _
  %s46 = sadd.s32 0, 0
  %p47 = scmp.lt.s32.totalorder %s46, 0
  %s48 = scalar_select %p47, %s46, 0
  %s49 = smul.u32 8, %s48
  %p50 = scmp.lt.s32.totalorder %s49, 7
  %s51 = scalar_select %p50, %s49, 7
  %s52 = smul.addr %s51, 8
  %s53 = smul.addr %s52, 8
  %s54 = scalar_lea.vmem %s1, %s53
  %s55 = sadd.s32 0, 0
  %p56 = scmp.lt.s32.totalorder %s55, 0
  %s57 = scalar_select %p56, %s55, 0
  %s58 = smul.u32 8, %s57
  %p59 = scmp.lt.s32.totalorder %s58, 7
  %s60 = scalar_select %p59, %s58, 7
  %s61 = smul.addr %s60, 8
  %s62 = scalar_lea.vmem %s8, %s61
  %s63 = sadd.s32 0, 0
  %p64 = scmp.lt.s32.totalorder %s63, 0
  %s65 = scalar_select %p64, %s63, 0
  %s66 = smul.u32 8, %s65
  %p67 = scmp.lt.s32.totalorder %s66, 7
  %s68 = scalar_select %p67, %s66, 7
  %s69 = smul.addr %s68, 8
  %s70 = smul.addr %s69, 8
  %s71 = scalar_lea.vmem %s1, %s70
  %s72 = sadd.s32 0, 0
  %p73 = scmp.lt.s32.totalorder %s72, 0
  %s74 = scalar_select %p73, %s72, 0
  %s75 = smul.u32 8, %s74
  %s76 = sadd.s32 0, 0
  %p77 = scmp.lt.s32.totalorder %s76, 0
  %s78 = scalar_select %p77, %s76, 0
  %s79 = smul.u32 8, %s78
  %p80 = scmp.lt.s32.totalorder %s79, 7
  %s81 = scalar_select %p80, %s79, 7
  %s82 = smul.addr %s81, 8
  %s83 = scalar_lea.vmem %s8, %s82
  %s84 = sadd.s32 0, 0
  %p85 = scmp.lt.s32.totalorder %s84, 0
  %s86 = scalar_select %p85, %s84, 0
  %s87 = smul.u32 8, %s86
  %p89 = scmp.eq.s32.totalorder 0, 0
  // Predicated region
  $region30: #{clam_mb_forward.1} parent=0 // pred_check
    %p90 = pneg %p89
  $region31: #{clam_mb_forward.1} parent=0 // pred_check_branch
    %92 = sbr.rel (%p90) target = $region33
  $region32: #{clam_mb_forward.1} parent=0 // pred_region
    %vm93 = vcmask 8192
    %94 = vst.msk [vmem:[#allocation2] sm:$0x1] %vm93, -inf
    %95 = vst.msk [vmem:[#allocation5] sm:$0x1] %vm93, inf
    %96 = vst.msk [vmem:[#allocation3] sm:$0x1] %vm93, 0.0
    %97 = vst.msk [vmem:[#allocation4] sm:$0x1] %vm93, 0.0
  $region33: #{clam_mb_forward.1} parent=0 // pred_fallthru
    _
  %v98 = vld [vmem:[%s71] sm:$0xff]
  %v99 = vld [vmem:[%s71 + $0x8] sm:$0xff]
  %v100 = vld [vmem:[%s71 + $0x10] sm:$0xff]
  %v101 = vld [vmem:[%s71 + $0x18] sm:$0xff]
  %v102 = vld [vmem:[%s71 + $0x20] sm:$0xff]
  %v103 = vld [vmem:[%s71 + $0x28] sm:$0xff]
  %v104 = vld [vmem:[%s71 + $0x30] sm:$0xff]
  %v105 = vld [vmem:[%s71 + $0x38] sm:$0xff]
  %v106 = vld [vmem:[%s71 + $0x40] sm:$0xff]
  %v107 = vld [vmem:[%s71 + $0x48] sm:$0xff]
  %v108 = vld [vmem:[%s71 + $0x50] sm:$0xff]
  %v109 = vld [vmem:[%s71 + $0x58] sm:$0xff]
  %v110 = vld [vmem:[%s71 + $0x60] sm:$0xff]
  %v111 = vld [vmem:[%s71 + $0x68] sm:$0xff]
  %v112 = vld [vmem:[%s71 + $0x70] sm:$0xff]
  %v113 = vld [vmem:[%s71 + $0x78] sm:$0xff]
  %v114 = vld [vmem:[%s71 + $0x80] sm:$0xff]
  %v115 = vld [vmem:[%s71 + $0x88] sm:$0xff]
  %v116 = vld [vmem:[%s71 + $0x90] sm:$0xff]
  %v117 = vld [vmem:[%s71 + $0x98] sm:$0xff]
  %v118 = vld [vmem:[%s71 + $0xa0] sm:$0xff]
  %v119 = vld [vmem:[%s71 + $0xa8] sm:$0xff]
  %v120 = vld [vmem:[%s71 + $0xb0] sm:$0xff]
  %v121 = vld [vmem:[%s71 + $0xb8] sm:$0xff]
  %v122 = vld [vmem:[%s71 + $0xc0] sm:$0xff]
  %v123 = vld [vmem:[%s71 + $0xc8] sm:$0xff]
  %v124 = vld [vmem:[%s71 + $0xd0] sm:$0xff]
  %v125 = vld [vmem:[%s71 + $0xd8] sm:$0xff]
  %v126 = vld [vmem:[%s71 + $0xe0] sm:$0xff]
  %v127 = vld [vmem:[%s71 + $0xe8] sm:$0xff]
  %v128 = vld [vmem:[%s71 + $0xf0] sm:$0xff]
  %v129 = vld [vmem:[%s71 + $0xf8] sm:$0xff]
  %v130 = vld [vmem:[%s71 + $0x100] sm:$0xff]
  %v131 = vld [vmem:[%s71 + $0x108] sm:$0xff]
  %v132 = vld [vmem:[%s71 + $0x110] sm:$0xff]
  %v133 = vld [vmem:[%s71 + $0x118] sm:$0xff]
  %v134 = vld [vmem:[%s71 + $0x120] sm:$0xff]
  %v135 = vld [vmem:[%s71 + $0x128] sm:$0xff]
  %v136 = vld [vmem:[%s71 + $0x130] sm:$0xff]
  %v137 = vld [vmem:[%s71 + $0x138] sm:$0xff]
  %v138 = vld [vmem:[%s71 + $0x140] sm:$0xff]
  %v139 = vld [vmem:[%s71 + $0x148] sm:$0xff]
  %v140 = vld [vmem:[%s71 + $0x150] sm:$0xff]
  %v141 = vld [vmem:[%s71 + $0x158] sm:$0xff]
  %v142 = vld [vmem:[%s71 + $0x160] sm:$0xff]
  %v143 = vld [vmem:[%s71 + $0x168] sm:$0xff]
  %v144 = vld [vmem:[%s71 + $0x170] sm:$0xff]
  %v145 = vld [vmem:[%s71 + $0x178] sm:$0xff]
  %v146 = vld [vmem:[%s71 + $0x180] sm:$0xff]
  %v147 = vld [vmem:[%s71 + $0x188] sm:$0xff]
  %v148 = vld [vmem:[%s71 + $0x190] sm:$0xff]
  %v149 = vld [vmem:[%s71 + $0x198] sm:$0xff]
  %v150 = vld [vmem:[%s71 + $0x1a0] sm:$0xff]
  %v151 = vld [vmem:[%s71 + $0x1a8] sm:$0xff]
  %v152 = vld [vmem:[%s71 + $0x1b0] sm:$0xff]
  %v153 = vld [vmem:[%s71 + $0x1b8] sm:$0xff]
  %v154 = vld [vmem:[%s71 + $0x1c0] sm:$0xff]
  %v155 = vld [vmem:[%s71 + $0x1c8] sm:$0xff]
  %v156 = vld [vmem:[%s71 + $0x1d0] sm:$0xff]
  %v157 = vld [vmem:[%s71 + $0x1d8] sm:$0xff]
  %v158 = vld [vmem:[%s71 + $0x1e0] sm:$0xff]
  %v159 = vld [vmem:[%s71 + $0x1e8] sm:$0xff]
  %v160 = vld [vmem:[%s71 + $0x1f0] sm:$0xff]
  %v161 = vld [vmem:[%s71 + $0x1f8] sm:$0xff]
  %v162 = vpack.c.bf16 %v106, %v98
  %v163 = vpack.c.bf16 %v107, %v99
  %v164 = vpack.c.bf16 %v108, %v100
  %v165 = vpack.c.bf16 %v109, %v101
  %v166 = vpack.c.bf16 %v110, %v102
  %v167 = vpack.c.bf16 %v111, %v103
  %v168 = vpack.c.bf16 %v112, %v104
  %v169 = vpack.c.bf16 %v113, %v105
  %v170 = vpack.c.bf16 %v122, %v114
  %v171 = vpack.c.bf16 %v123, %v115
  %v172 = vpack.c.bf16 %v124, %v116
  %v173 = vpack.c.bf16 %v125, %v117
  %v174 = vpack.c.bf16 %v126, %v118
  %v175 = vpack.c.bf16 %v127, %v119
  %v176 = vpack.c.bf16 %v128, %v120
  %v177 = vpack.c.bf16 %v129, %v121
  %v178 = vpack.c.bf16 %v138, %v130
  %v179 = vpack.c.bf16 %v139, %v131
  %v180 = vpack.c.bf16 %v140, %v132
  %v181 = vpack.c.bf16 %v141, %v133
  %v182 = vpack.c.bf16 %v142, %v134
  %v183 = vpack.c.bf16 %v143, %v135
  %v184 = vpack.c.bf16 %v144, %v136
  %v185 = vpack.c.bf16 %v145, %v137
  %v186 = vpack.c.bf16 %v154, %v146
  %v187 = vpack.c.bf16 %v155, %v147
  %v188 = vpack.c.bf16 %v156, %v148
  %v189 = vpack.c.bf16 %v157, %v149
  %v190 = vpack.c.bf16 %v158, %v150
  %v191 = vpack.c.bf16 %v159, %v151
  %v192 = vpack.c.bf16 %v160, %v152
  %v193 = vpack.c.bf16 %v161, %v153
  %v194 = vld [vmem:[%s2] sm:$0xff]
  %v195 = vld [vmem:[%s2 + $0x8] sm:$0xff]
  %v196 = vld [vmem:[%s2 + $0x10] sm:$0xff]
  %v197 = vld [vmem:[%s2 + $0x18] sm:$0xff]
  %v198 = vld [vmem:[%s2 + $0x20] sm:$0xff]
  %v199 = vld [vmem:[%s2 + $0x28] sm:$0xff]
  %v200 = vld [vmem:[%s2 + $0x30] sm:$0xff]
  %v201 = vld [vmem:[%s2 + $0x38] sm:$0xff]
  %v202 = vld [vmem:[%s2 + $0x40] sm:$0xff]
  %v203 = vld [vmem:[%s2 + $0x48] sm:$0xff]
  %v204 = vld [vmem:[%s2 + $0x50] sm:$0xff]
  %v205 = vld [vmem:[%s2 + $0x58] sm:$0xff]
  %v206 = vld [vmem:[%s2 + $0x60] sm:$0xff]
  %v207 = vld [vmem:[%s2 + $0x68] sm:$0xff]
  %v208 = vld [vmem:[%s2 + $0x70] sm:$0xff]
  %v209 = vld [vmem:[%s2 + $0x78] sm:$0xff]
  %v210 = vld [vmem:[%s2 + $0x80] sm:$0xff]
  %v211 = vld [vmem:[%s2 + $0x88] sm:$0xff]
  %v212 = vld [vmem:[%s2 + $0x90] sm:$0xff]
  %v213 = vld [vmem:[%s2 + $0x98] sm:$0xff]
  %v214 = vld [vmem:[%s2 + $0xa0] sm:$0xff]
  %v215 = vld [vmem:[%s2 + $0xa8] sm:$0xff]
  %v216 = vld [vmem:[%s2 + $0xb0] sm:$0xff]
  %v217 = vld [vmem:[%s2 + $0xb8] sm:$0xff]
  %v218 = vld [vmem:[%s2 + $0xc0] sm:$0xff]
  %v219 = vld [vmem:[%s2 + $0xc8] sm:$0xff]
  %v220 = vld [vmem:[%s2 + $0xd0] sm:$0xff]
  %v221 = vld [vmem:[%s2 + $0xd8] sm:$0xff]
  %v222 = vld [vmem:[%s2 + $0xe0] sm:$0xff]
  %v223 = vld [vmem:[%s2 + $0xe8] sm:$0xff]
  %v224 = vld [vmem:[%s2 + $0xf0] sm:$0xff]
  %v225 = vld [vmem:[%s2 + $0xf8] sm:$0xff]
  %v226 = vld [vmem:[%s2 + $0x100] sm:$0xff]
  %v227 = vld [vmem:[%s2 + $0x108] sm:$0xff]
  %v228 = vld [vmem:[%s2 + $0x110] sm:$0xff]
  %v229 = vld [vmem:[%s2 + $0x118] sm:$0xff]
  %v230 = vld [vmem:[%s2 + $0x120] sm:$0xff]
  %v231 = vld [vmem:[%s2 + $0x128] sm:$0xff]
  %v232 = vld [vmem:[%s2 + $0x130] sm:$0xff]
  %v233 = vld [vmem:[%s2 + $0x138] sm:$0xff]
  %v234 = vld [vmem:[%s2 + $0x140] sm:$0xff]
  %v235 = vld [vmem:[%s2 + $0x148] sm:$0xff]
  %v236 = vld [vmem:[%s2 + $0x150] sm:$0xff]
  %v237 = vld [vmem:[%s2 + $0x158] sm:$0xff]
  %v238 = vld [vmem:[%s2 + $0x160] sm:$0xff]
  %v239 = vld [vmem:[%s2 + $0x168] sm:$0xff]
  %v240 = vld [vmem:[%s2 + $0x170] sm:$0xff]
  %v241 = vld [vmem:[%s2 + $0x178] sm:$0xff]
  %v242 = vld [vmem:[%s2 + $0x180] sm:$0xff]
  %v243 = vld [vmem:[%s2 + $0x188] sm:$0xff]
  %v244 = vld [vmem:[%s2 + $0x190] sm:$0xff]
  %v245 = vld [vmem:[%s2 + $0x198] sm:$0xff]
  %v246 = vld [vmem:[%s2 + $0x1a0] sm:$0xff]
  %v247 = vld [vmem:[%s2 + $0x1a8] sm:$0xff]
  %v248 = vld [vmem:[%s2 + $0x1b0] sm:$0xff]
  %v249 = vld [vmem:[%s2 + $0x1b8] sm:$0xff]
  %v250 = vld [vmem:[%s2 + $0x1c0] sm:$0xff]
  %v251 = vld [vmem:[%s2 + $0x1c8] sm:$0xff]
  %v252 = vld [vmem:[%s2 + $0x1d0] sm:$0xff]
  %v253 = vld [vmem:[%s2 + $0x1d8] sm:$0xff]
  %v254 = vld [vmem:[%s2 + $0x1e0] sm:$0xff]
  %v255 = vld [vmem:[%s2 + $0x1e8] sm:$0xff]
  %v256 = vld [vmem:[%s2 + $0x1f0] sm:$0xff]
  %v257 = vld [vmem:[%s2 + $0x1f8] sm:$0xff]
  %v258 = vld [vmem:[%s2 + $0x200] sm:$0xff]
  %v259 = vld [vmem:[%s2 + $0x208] sm:$0xff]
  %v260 = vld [vmem:[%s2 + $0x210] sm:$0xff]
  %v261 = vld [vmem:[%s2 + $0x218] sm:$0xff]
  %v262 = vld [vmem:[%s2 + $0x220] sm:$0xff]
  %v263 = vld [vmem:[%s2 + $0x228] sm:$0xff]
  %v264 = vld [vmem:[%s2 + $0x230] sm:$0xff]
  %v265 = vld [vmem:[%s2 + $0x238] sm:$0xff]
  %v266 = vld [vmem:[%s2 + $0x240] sm:$0xff]
  %v267 = vld [vmem:[%s2 + $0x248] sm:$0xff]
  %v268 = vld [vmem:[%s2 + $0x250] sm:$0xff]
  %v269 = vld [vmem:[%s2 + $0x258] sm:$0xff]
  %v270 = vld [vmem:[%s2 + $0x260] sm:$0xff]
  %v271 = vld [vmem:[%s2 + $0x268] sm:$0xff]
  %v272 = vld [vmem:[%s2 + $0x270] sm:$0xff]
  %v273 = vld [vmem:[%s2 + $0x278] sm:$0xff]
  %v274 = vld [vmem:[%s2 + $0x280] sm:$0xff]
  %v275 = vld [vmem:[%s2 + $0x288] sm:$0xff]
  %v276 = vld [vmem:[%s2 + $0x290] sm:$0xff]
  %v277 = vld [vmem:[%s2 + $0x298] sm:$0xff]
  %v278 = vld [vmem:[%s2 + $0x2a0] sm:$0xff]
  %v279 = vld [vmem:[%s2 + $0x2a8] sm:$0xff]
  %v280 = vld [vmem:[%s2 + $0x2b0] sm:$0xff]
  %v281 = vld [vmem:[%s2 + $0x2b8] sm:$0xff]
  %v282 = vld [vmem:[%s2 + $0x2c0] sm:$0xff]
  %v283 = vld [vmem:[%s2 + $0x2c8] sm:$0xff]
  %v284 = vld [vmem:[%s2 + $0x2d0] sm:$0xff]
  %v285 = vld [vmem:[%s2 + $0x2d8] sm:$0xff]
  %v286 = vld [vmem:[%s2 + $0x2e0] sm:$0xff]
  %v287 = vld [vmem:[%s2 + $0x2e8] sm:$0xff]
  %v288 = vld [vmem:[%s2 + $0x2f0] sm:$0xff]
  %v289 = vld [vmem:[%s2 + $0x2f8] sm:$0xff]
  %v290 = vld [vmem:[%s2 + $0x300] sm:$0xff]
  %v291 = vld [vmem:[%s2 + $0x308] sm:$0xff]
  %v292 = vld [vmem:[%s2 + $0x310] sm:$0xff]
  %v293 = vld [vmem:[%s2 + $0x318] sm:$0xff]
  %v294 = vld [vmem:[%s2 + $0x320] sm:$0xff]
  %v295 = vld [vmem:[%s2 + $0x328] sm:$0xff]
  %v296 = vld [vmem:[%s2 + $0x330] sm:$0xff]
  %v297 = vld [vmem:[%s2 + $0x338] sm:$0xff]
  %v298 = vld [vmem:[%s2 + $0x340] sm:$0xff]
  %v299 = vld [vmem:[%s2 + $0x348] sm:$0xff]
  %v300 = vld [vmem:[%s2 + $0x350] sm:$0xff]
  %v301 = vld [vmem:[%s2 + $0x358] sm:$0xff]
  %v302 = vld [vmem:[%s2 + $0x360] sm:$0xff]
  %v303 = vld [vmem:[%s2 + $0x368] sm:$0xff]
  %v304 = vld [vmem:[%s2 + $0x370] sm:$0xff]
  %v305 = vld [vmem:[%s2 + $0x378] sm:$0xff]
  %v306 = vld [vmem:[%s2 + $0x380] sm:$0xff]
  %v307 = vld [vmem:[%s2 + $0x388] sm:$0xff]
  %v308 = vld [vmem:[%s2 + $0x390] sm:$0xff]
  %v309 = vld [vmem:[%s2 + $0x398] sm:$0xff]
  %v310 = vld [vmem:[%s2 + $0x3a0] sm:$0xff]
  %v311 = vld [vmem:[%s2 + $0x3a8] sm:$0xff]
  %v312 = vld [vmem:[%s2 + $0x3b0] sm:$0xff]
  %v313 = vld [vmem:[%s2 + $0x3b8] sm:$0xff]
  %v314 = vld [vmem:[%s2 + $0x3c0] sm:$0xff]
  %v315 = vld [vmem:[%s2 + $0x3c8] sm:$0xff]
  %v316 = vld [vmem:[%s2 + $0x3d0] sm:$0xff]
  %v317 = vld [vmem:[%s2 + $0x3d8] sm:$0xff]
  %v318 = vld [vmem:[%s2 + $0x3e0] sm:$0xff]
  %v319 = vld [vmem:[%s2 + $0x3e8] sm:$0xff]
  %v320 = vld [vmem:[%s2 + $0x3f0] sm:$0xff]
  %v321 = vld [vmem:[%s2 + $0x3f8] sm:$0xff]
  %v322 = vld [vmem:[%s2 + $0x400] sm:$0xff]
  %v323 = vld [vmem:[%s2 + $0x408] sm:$0xff]
  %v324 = vld [vmem:[%s2 + $0x410] sm:$0xff]
  %v325 = vld [vmem:[%s2 + $0x418] sm:$0xff]
  %v326 = vld [vmem:[%s2 + $0x420] sm:$0xff]
  %v327 = vld [vmem:[%s2 + $0x428] sm:$0xff]
  %v328 = vld [vmem:[%s2 + $0x430] sm:$0xff]
  %v329 = vld [vmem:[%s2 + $0x438] sm:$0xff]
  %v330 = vld [vmem:[%s2 + $0x440] sm:$0xff]
  %v331 = vld [vmem:[%s2 + $0x448] sm:$0xff]
  %v332 = vld [vmem:[%s2 + $0x450] sm:$0xff]
  %v333 = vld [vmem:[%s2 + $0x458] sm:$0xff]
  %v334 = vld [vmem:[%s2 + $0x460] sm:$0xff]
  %v335 = vld [vmem:[%s2 + $0x468] sm:$0xff]
  %v336 = vld [vmem:[%s2 + $0x470] sm:$0xff]
  %v337 = vld [vmem:[%s2 + $0x478] sm:$0xff]
  %v338 = vld [vmem:[%s2 + $0x480] sm:$0xff]
  %v339 = vld [vmem:[%s2 + $0x488] sm:$0xff]
  %v340 = vld [vmem:[%s2 + $0x490] sm:$0xff]
  %v341 = vld [vmem:[%s2 + $0x498] sm:$0xff]
  %v342 = vld [vmem:[%s2 + $0x4a0] sm:$0xff]
  %v343 = vld [vmem:[%s2 + $0x4a8] sm:$0xff]
  %v344 = vld [vmem:[%s2 + $0x4b0] sm:$0xff]
  %v345 = vld [vmem:[%s2 + $0x4b8] sm:$0xff]
  %v346 = vld [vmem:[%s2 + $0x4c0] sm:$0xff]
  %v347 = vld [vmem:[%s2 + $0x4c8] sm:$0xff]
  %v348 = vld [vmem:[%s2 + $0x4d0] sm:$0xff]
  %v349 = vld [vmem:[%s2 + $0x4d8] sm:$0xff]
  %v350 = vld [vmem:[%s2 + $0x4e0] sm:$0xff]
  %v351 = vld [vmem:[%s2 + $0x4e8] sm:$0xff]
  %v352 = vld [vmem:[%s2 + $0x4f0] sm:$0xff]
  %v353 = vld [vmem:[%s2 + $0x4f8] sm:$0xff]
  %v354 = vld [vmem:[%s2 + $0x500] sm:$0xff]
  %v355 = vld [vmem:[%s2 + $0x508] sm:$0xff]
  %v356 = vld [vmem:[%s2 + $0x510] sm:$0xff]
  %v357 = vld [vmem:[%s2 + $0x518] sm:$0xff]
  %v358 = vld [vmem:[%s2 + $0x520] sm:$0xff]
  %v359 = vld [vmem:[%s2 + $0x528] sm:$0xff]
  %v360 = vld [vmem:[%s2 + $0x530] sm:$0xff]
  %v361 = vld [vmem:[%s2 + $0x538] sm:$0xff]
  %v362 = vld [vmem:[%s2 + $0x540] sm:$0xff]
  %v363 = vld [vmem:[%s2 + $0x548] sm:$0xff]
  %v364 = vld [vmem:[%s2 + $0x550] sm:$0xff]
  %v365 = vld [vmem:[%s2 + $0x558] sm:$0xff]
  %v366 = vld [vmem:[%s2 + $0x560] sm:$0xff]
  %v367 = vld [vmem:[%s2 + $0x568] sm:$0xff]
  %v368 = vld [vmem:[%s2 + $0x570] sm:$0xff]
  %v369 = vld [vmem:[%s2 + $0x578] sm:$0xff]
  %v370 = vld [vmem:[%s2 + $0x580] sm:$0xff]
  %v371 = vld [vmem:[%s2 + $0x588] sm:$0xff]
  %v372 = vld [vmem:[%s2 + $0x590] sm:$0xff]
  %v373 = vld [vmem:[%s2 + $0x598] sm:$0xff]
  %v374 = vld [vmem:[%s2 + $0x5a0] sm:$0xff]
  %v375 = vld [vmem:[%s2 + $0x5a8] sm:$0xff]
  %v376 = vld [vmem:[%s2 + $0x5b0] sm:$0xff]
  %v377 = vld [vmem:[%s2 + $0x5b8] sm:$0xff]
  %v378 = vld [vmem:[%s2 + $0x5c0] sm:$0xff]
  %v379 = vld [vmem:[%s2 + $0x5c8] sm:$0xff]
  %v380 = vld [vmem:[%s2 + $0x5d0] sm:$0xff]
  %v381 = vld [vmem:[%s2 + $0x5d8] sm:$0xff]
  %v382 = vld [vmem:[%s2 + $0x5e0] sm:$0xff]
  %v383 = vld [vmem:[%s2 + $0x5e8] sm:$0xff]
  %v384 = vld [vmem:[%s2 + $0x5f0] sm:$0xff]
  %v385 = vld [vmem:[%s2 + $0x5f8] sm:$0xff]
  %v386 = vld [vmem:[%s2 + $0x600] sm:$0xff]
  %v387 = vld [vmem:[%s2 + $0x608] sm:$0xff]
  %v388 = vld [vmem:[%s2 + $0x610] sm:$0xff]
  %v389 = vld [vmem:[%s2 + $0x618] sm:$0xff]
  %v390 = vld [vmem:[%s2 + $0x620] sm:$0xff]
  %v391 = vld [vmem:[%s2 + $0x628] sm:$0xff]
  %v392 = vld [vmem:[%s2 + $0x630] sm:$0xff]
  %v393 = vld [vmem:[%s2 + $0x638] sm:$0xff]
  %v394 = vld [vmem:[%s2 + $0x640] sm:$0xff]
  %v395 = vld [vmem:[%s2 + $0x648] sm:$0xff]
  %v396 = vld [vmem:[%s2 + $0x650] sm:$0xff]
  %v397 = vld [vmem:[%s2 + $0x658] sm:$0xff]
  %v398 = vld [vmem:[%s2 + $0x660] sm:$0xff]
  %v399 = vld [vmem:[%s2 + $0x668] sm:$0xff]
  %v400 = vld [vmem:[%s2 + $0x670] sm:$0xff]
  %v401 = vld [vmem:[%s2 + $0x678] sm:$0xff]
  %v402 = vld [vmem:[%s2 + $0x680] sm:$0xff]
  %v403 = vld [vmem:[%s2 + $0x688] sm:$0xff]
  %v404 = vld [vmem:[%s2 + $0x690] sm:$0xff]
  %v405 = vld [vmem:[%s2 + $0x698] sm:$0xff]
  %v406 = vld [vmem:[%s2 + $0x6a0] sm:$0xff]
  %v407 = vld [vmem:[%s2 + $0x6a8] sm:$0xff]
  %v408 = vld [vmem:[%s2 + $0x6b0] sm:$0xff]
  %v409 = vld [vmem:[%s2 + $0x6b8] sm:$0xff]
  %v410 = vld [vmem:[%s2 + $0x6c0] sm:$0xff]
  %v411 = vld [vmem:[%s2 + $0x6c8] sm:$0xff]
  %v412 = vld [vmem:[%s2 + $0x6d0] sm:$0xff]
  %v413 = vld [vmem:[%s2 + $0x6d8] sm:$0xff]
  %v414 = vld [vmem:[%s2 + $0x6e0] sm:$0xff]
  %v415 = vld [vmem:[%s2 + $0x6e8] sm:$0xff]
  %v416 = vld [vmem:[%s2 + $0x6f0] sm:$0xff]
  %v417 = vld [vmem:[%s2 + $0x6f8] sm:$0xff]
  %v418 = vld [vmem:[%s2 + $0x700] sm:$0xff]
  %v419 = vld [vmem:[%s2 + $0x708] sm:$0xff]
  %v420 = vld [vmem:[%s2 + $0x710] sm:$0xff]
  %v421 = vld [vmem:[%s2 + $0x718] sm:$0xff]
  %v422 = vld [vmem:[%s2 + $0x720] sm:$0xff]
  %v423 = vld [vmem:[%s2 + $0x728] sm:$0xff]
  %v424 = vld [vmem:[%s2 + $0x730] sm:$0xff]
  %v425 = vld [vmem:[%s2 + $0x738] sm:$0xff]
  %v426 = vld [vmem:[%s2 + $0x740] sm:$0xff]
  %v427 = vld [vmem:[%s2 + $0x748] sm:$0xff]
  %v428 = vld [vmem:[%s2 + $0x750] sm:$0xff]
  %v429 = vld [vmem:[%s2 + $0x758] sm:$0xff]
  %v430 = vld [vmem:[%s2 + $0x760] sm:$0xff]
  %v431 = vld [vmem:[%s2 + $0x768] sm:$0xff]
  %v432 = vld [vmem:[%s2 + $0x770] sm:$0xff]
  %v433 = vld [vmem:[%s2 + $0x778] sm:$0xff]
  %v434 = vld [vmem:[%s2 + $0x780] sm:$0xff]
  %v435 = vld [vmem:[%s2 + $0x788] sm:$0xff]
  %v436 = vld [vmem:[%s2 + $0x790] sm:$0xff]
  %v437 = vld [vmem:[%s2 + $0x798] sm:$0xff]
  %v438 = vld [vmem:[%s2 + $0x7a0] sm:$0xff]
  %v439 = vld [vmem:[%s2 + $0x7a8] sm:$0xff]
  %v440 = vld [vmem:[%s2 + $0x7b0] sm:$0xff]
  %v441 = vld [vmem:[%s2 + $0x7b8] sm:$0xff]
  %v442 = vld [vmem:[%s2 + $0x7c0] sm:$0xff]
  %v443 = vld [vmem:[%s2 + $0x7c8] sm:$0xff]
  %v444 = vld [vmem:[%s2 + $0x7d0] sm:$0xff]
  %v445 = vld [vmem:[%s2 + $0x7d8] sm:$0xff]
  %v446 = vld [vmem:[%s2 + $0x7e0] sm:$0xff]
  %v447 = vld [vmem:[%s2 + $0x7e8] sm:$0xff]
  %v448 = vld [vmem:[%s2 + $0x7f0] sm:$0xff]
  %v449 = vld [vmem:[%s2 + $0x7f8] sm:$0xff]
  %v450 = vld [vmem:[%s3] sm:$0xf]
  %v452 = vlaneseq
  %v453 = vshrl.u32 %v452, 7
  %v454 = vsub.s32 0, %v453
  %v455 = vrot.slane %v450, %v454
  %v456 = vlaneseq
  %v457 = vshrl.u32 %v456, 7
  %v458 = vsub.s32 1, %v457
  %v459 = vrot.slane %v450, %v458
  %v460 = vlaneseq
  %v461 = vshrl.u32 %v460, 7
  %v462 = vsub.s32 2, %v461
  %v463 = vrot.slane %v450, %v462
  %v464 = vlaneseq
  %v465 = vshrl.u32 %v464, 7
  %v466 = vsub.s32 3, %v465
  %v467 = vrot.slane %v450, %v466
  %v728 = vunpack.c.l.b16 %v194
  %v729 = vunpack.c.h.b16 %v194
  %v730 = vunpack.c.l.b16 %v195
  %v731 = vunpack.c.h.b16 %v195
  %v732 = vunpack.c.l.b16 %v196
  %v733 = vunpack.c.h.b16 %v196
  %v734 = vunpack.c.l.b16 %v197
  %v735 = vunpack.c.h.b16 %v197
  %v736 = vunpack.c.l.b16 %v198
  %v737 = vunpack.c.h.b16 %v198
  %v738 = vunpack.c.l.b16 %v199
  %v739 = vunpack.c.h.b16 %v199
  %v740 = vunpack.c.l.b16 %v200
  %v741 = vunpack.c.h.b16 %v200
  %v742 = vunpack.c.l.b16 %v201
  %v743 = vunpack.c.h.b16 %v201
  %v744 = vunpack.c.l.b16 %v202
  %v745 = vunpack.c.h.b16 %v202
  %v746 = vunpack.c.l.b16 %v203
  %v747 = vunpack.c.h.b16 %v203
  %v748 = vunpack.c.l.b16 %v204
  %v749 = vunpack.c.h.b16 %v204
  %v750 = vunpack.c.l.b16 %v205
  %v751 = vunpack.c.h.b16 %v205
  %v752 = vunpack.c.l.b16 %v206
  %v753 = vunpack.c.h.b16 %v206
  %v754 = vunpack.c.l.b16 %v207
  %v755 = vunpack.c.h.b16 %v207
  %v756 = vunpack.c.l.b16 %v208
  %v757 = vunpack.c.h.b16 %v208
  %v758 = vunpack.c.l.b16 %v209
  %v759 = vunpack.c.h.b16 %v209
  %v760 = vunpack.c.l.b16 %v210
  %v761 = vunpack.c.h.b16 %v210
  %v762 = vunpack.c.l.b16 %v211
  %v763 = vunpack.c.h.b16 %v211
  %v764 = vunpack.c.l.b16 %v212
  %v765 = vunpack.c.h.b16 %v212
  %v766 = vunpack.c.l.b16 %v213
  %v767 = vunpack.c.h.b16 %v213
  %v768 = vunpack.c.l.b16 %v214
  %v769 = vunpack.c.h.b16 %v214
  %v770 = vunpack.c.l.b16 %v215
  %v771 = vunpack.c.h.b16 %v215
  %v772 = vunpack.c.l.b16 %v216
  %v773 = vunpack.c.h.b16 %v216
  %v774 = vunpack.c.l.b16 %v217
  %v775 = vunpack.c.h.b16 %v217
  %v776 = vunpack.c.l.b16 %v218
  %v777 = vunpack.c.h.b16 %v218
  %v778 = vunpack.c.l.b16 %v219
  %v779 = vunpack.c.h.b16 %v219
  %v780 = vunpack.c.l.b16 %v220
  %v781 = vunpack.c.h.b16 %v220
  %v782 = vunpack.c.l.b16 %v221
  %v783 = vunpack.c.h.b16 %v221
  %v784 = vunpack.c.l.b16 %v222
  %v785 = vunpack.c.h.b16 %v222
  %v786 = vunpack.c.l.b16 %v223
  %v787 = vunpack.c.h.b16 %v223
  %v788 = vunpack.c.l.b16 %v224
  %v789 = vunpack.c.h.b16 %v224
  %v790 = vunpack.c.l.b16 %v225
  %v791 = vunpack.c.h.b16 %v225
  %v792 = vunpack.c.l.b16 %v226
  %v793 = vunpack.c.h.b16 %v226
  %v794 = vunpack.c.l.b16 %v227
  %v795 = vunpack.c.h.b16 %v227
  %v796 = vunpack.c.l.b16 %v228
  %v797 = vunpack.c.h.b16 %v228
  %v798 = vunpack.c.l.b16 %v229
  %v799 = vunpack.c.h.b16 %v229
  %v800 = vunpack.c.l.b16 %v230
  %v801 = vunpack.c.h.b16 %v230
  %v802 = vunpack.c.l.b16 %v231
  %v803 = vunpack.c.h.b16 %v231
  %v804 = vunpack.c.l.b16 %v232
  %v805 = vunpack.c.h.b16 %v232
  %v806 = vunpack.c.l.b16 %v233
  %v807 = vunpack.c.h.b16 %v233
  %v808 = vunpack.c.l.b16 %v234
  %v809 = vunpack.c.h.b16 %v234
  %v810 = vunpack.c.l.b16 %v235
  %v811 = vunpack.c.h.b16 %v235
  %v812 = vunpack.c.l.b16 %v236
  %v813 = vunpack.c.h.b16 %v236
  %v814 = vunpack.c.l.b16 %v237
  %v815 = vunpack.c.h.b16 %v237
  %v816 = vunpack.c.l.b16 %v238
  %v817 = vunpack.c.h.b16 %v238
  %v818 = vunpack.c.l.b16 %v239
  %v819 = vunpack.c.h.b16 %v239
  %v820 = vunpack.c.l.b16 %v240
  %v821 = vunpack.c.h.b16 %v240
  %v822 = vunpack.c.l.b16 %v241
  %v823 = vunpack.c.h.b16 %v241
  %v824 = vunpack.c.l.b16 %v242
  %v825 = vunpack.c.h.b16 %v242
  %v826 = vunpack.c.l.b16 %v243
  %v827 = vunpack.c.h.b16 %v243
  %v828 = vunpack.c.l.b16 %v244
  %v829 = vunpack.c.h.b16 %v244
  %v830 = vunpack.c.l.b16 %v245
  %v831 = vunpack.c.h.b16 %v245
  %v832 = vunpack.c.l.b16 %v246
  %v833 = vunpack.c.h.b16 %v246
  %v834 = vunpack.c.l.b16 %v247
  %v835 = vunpack.c.h.b16 %v247
  %v836 = vunpack.c.l.b16 %v248
  %v837 = vunpack.c.h.b16 %v248
  %v838 = vunpack.c.l.b16 %v249
  %v839 = vunpack.c.h.b16 %v249
  %v840 = vunpack.c.l.b16 %v250
  %v841 = vunpack.c.h.b16 %v250
  %v842 = vunpack.c.l.b16 %v251
  %v843 = vunpack.c.h.b16 %v251
  %v844 = vunpack.c.l.b16 %v252
  %v845 = vunpack.c.h.b16 %v252
  %v846 = vunpack.c.l.b16 %v253
  %v847 = vunpack.c.h.b16 %v253
  %v848 = vunpack.c.l.b16 %v254
  %v849 = vunpack.c.h.b16 %v254
  %v850 = vunpack.c.l.b16 %v255
  %v851 = vunpack.c.h.b16 %v255
  %v852 = vunpack.c.l.b16 %v256
  %v853 = vunpack.c.h.b16 %v256
  %v854 = vunpack.c.l.b16 %v257
  %v855 = vunpack.c.h.b16 %v257
  %v856 = vunpack.c.l.b16 %v258
  %v857 = vunpack.c.h.b16 %v258
  %v858 = vunpack.c.l.b16 %v259
  %v859 = vunpack.c.h.b16 %v259
  %v860 = vunpack.c.l.b16 %v260
  %v861 = vunpack.c.h.b16 %v260
  %v862 = vunpack.c.l.b16 %v261
  %v863 = vunpack.c.h.b16 %v261
  %v864 = vunpack.c.l.b16 %v262
  %v865 = vunpack.c.h.b16 %v262
  %v866 = vunpack.c.l.b16 %v263
  %v867 = vunpack.c.h.b16 %v263
  %v868 = vunpack.c.l.b16 %v264
  %v869 = vunpack.c.h.b16 %v264
  %v870 = vunpack.c.l.b16 %v265
  %v871 = vunpack.c.h.b16 %v265
  %v872 = vunpack.c.l.b16 %v266
  %v873 = vunpack.c.h.b16 %v266
  %v874 = vunpack.c.l.b16 %v267
  %v875 = vunpack.c.h.b16 %v267
  %v876 = vunpack.c.l.b16 %v268
  %v877 = vunpack.c.h.b16 %v268
  %v878 = vunpack.c.l.b16 %v269
  %v879 = vunpack.c.h.b16 %v269
  %v880 = vunpack.c.l.b16 %v270
  %v881 = vunpack.c.h.b16 %v270
  %v882 = vunpack.c.l.b16 %v271
  %v883 = vunpack.c.h.b16 %v271
  %v884 = vunpack.c.l.b16 %v272
  %v885 = vunpack.c.h.b16 %v272
  %v886 = vunpack.c.l.b16 %v273
  %v887 = vunpack.c.h.b16 %v273
  %v888 = vunpack.c.l.b16 %v274
  %v889 = vunpack.c.h.b16 %v274
  %v890 = vunpack.c.l.b16 %v275
  %v891 = vunpack.c.h.b16 %v275
  %v892 = vunpack.c.l.b16 %v276
  %v893 = vunpack.c.h.b16 %v276
  %v894 = vunpack.c.l.b16 %v277
  %v895 = vunpack.c.h.b16 %v277
  %v896 = vunpack.c.l.b16 %v278
  %v897 = vunpack.c.h.b16 %v278
  %v898 = vunpack.c.l.b16 %v279
  %v899 = vunpack.c.h.b16 %v279
  %v900 = vunpack.c.l.b16 %v280
  %v901 = vunpack.c.h.b16 %v280
  %v902 = vunpack.c.l.b16 %v281
  %v903 = vunpack.c.h.b16 %v281
  %v904 = vunpack.c.l.b16 %v282
  %v905 = vunpack.c.h.b16 %v282
  %v906 = vunpack.c.l.b16 %v283
  %v907 = vunpack.c.h.b16 %v283
  %v908 = vunpack.c.l.b16 %v284
  %v909 = vunpack.c.h.b16 %v284
  %v910 = vunpack.c.l.b16 %v285
  %v911 = vunpack.c.h.b16 %v285
  %v912 = vunpack.c.l.b16 %v286
  %v913 = vunpack.c.h.b16 %v286
  %v914 = vunpack.c.l.b16 %v287
  %v915 = vunpack.c.h.b16 %v287
  %v916 = vunpack.c.l.b16 %v288
  %v917 = vunpack.c.h.b16 %v288
  %v918 = vunpack.c.l.b16 %v289
  %v919 = vunpack.c.h.b16 %v289
  %v920 = vunpack.c.l.b16 %v290
  %v921 = vunpack.c.h.b16 %v290
  %v922 = vunpack.c.l.b16 %v291
  %v923 = vunpack.c.h.b16 %v291
  %v924 = vunpack.c.l.b16 %v292
  %v925 = vunpack.c.h.b16 %v292
  %v926 = vunpack.c.l.b16 %v293
  %v927 = vunpack.c.h.b16 %v293
  %v928 = vunpack.c.l.b16 %v294
  %v929 = vunpack.c.h.b16 %v294
  %v930 = vunpack.c.l.b16 %v295
  %v931 = vunpack.c.h.b16 %v295
  %v932 = vunpack.c.l.b16 %v296
  %v933 = vunpack.c.h.b16 %v296
  %v934 = vunpack.c.l.b16 %v297
  %v935 = vunpack.c.h.b16 %v297
  %v936 = vunpack.c.l.b16 %v298
  %v937 = vunpack.c.h.b16 %v298
  %v938 = vunpack.c.l.b16 %v299
  %v939 = vunpack.c.h.b16 %v299
  %v940 = vunpack.c.l.b16 %v300
  %v941 = vunpack.c.h.b16 %v300
  %v942 = vunpack.c.l.b16 %v301
  %v943 = vunpack.c.h.b16 %v301
  %v944 = vunpack.c.l.b16 %v302
  %v945 = vunpack.c.h.b16 %v302
  %v946 = vunpack.c.l.b16 %v303
  %v947 = vunpack.c.h.b16 %v303
  %v948 = vunpack.c.l.b16 %v304
  %v949 = vunpack.c.h.b16 %v304
  %v950 = vunpack.c.l.b16 %v305
  %v951 = vunpack.c.h.b16 %v305
  %v952 = vunpack.c.l.b16 %v306
  %v953 = vunpack.c.h.b16 %v306
  %v954 = vunpack.c.l.b16 %v307
  %v955 = vunpack.c.h.b16 %v307
  %v956 = vunpack.c.l.b16 %v308
  %v957 = vunpack.c.h.b16 %v308
  %v958 = vunpack.c.l.b16 %v309
  %v959 = vunpack.c.h.b16 %v309
  %v960 = vunpack.c.l.b16 %v310
  %v961 = vunpack.c.h.b16 %v310
  %v962 = vunpack.c.l.b16 %v311
  %v963 = vunpack.c.h.b16 %v311
  %v964 = vunpack.c.l.b16 %v312
  %v965 = vunpack.c.h.b16 %v312
  %v966 = vunpack.c.l.b16 %v313
  %v967 = vunpack.c.h.b16 %v313
  %v968 = vunpack.c.l.b16 %v314
  %v969 = vunpack.c.h.b16 %v314
  %v970 = vunpack.c.l.b16 %v315
  %v971 = vunpack.c.h.b16 %v315
  %v972 = vunpack.c.l.b16 %v316
  %v973 = vunpack.c.h.b16 %v316
  %v974 = vunpack.c.l.b16 %v317
  %v975 = vunpack.c.h.b16 %v317
  %v976 = vunpack.c.l.b16 %v318
  %v977 = vunpack.c.h.b16 %v318
  %v978 = vunpack.c.l.b16 %v319
  %v979 = vunpack.c.h.b16 %v319
  %v980 = vunpack.c.l.b16 %v320
  %v981 = vunpack.c.h.b16 %v320
  %v982 = vunpack.c.l.b16 %v321
  %v983 = vunpack.c.h.b16 %v321
  %v984 = vunpack.c.l.b16 %v322
  %v985 = vunpack.c.h.b16 %v322
  %v986 = vunpack.c.l.b16 %v323
  %v987 = vunpack.c.h.b16 %v323
  %v988 = vunpack.c.l.b16 %v324
  %v989 = vunpack.c.h.b16 %v324
  %v990 = vunpack.c.l.b16 %v325
  %v991 = vunpack.c.h.b16 %v325
  %v992 = vunpack.c.l.b16 %v326
  %v993 = vunpack.c.h.b16 %v326
  %v994 = vunpack.c.l.b16 %v327
  %v995 = vunpack.c.h.b16 %v327
  %v996 = vunpack.c.l.b16 %v328
  %v997 = vunpack.c.h.b16 %v328
  %v998 = vunpack.c.l.b16 %v329
  %v999 = vunpack.c.h.b16 %v329
  %v1000 = vunpack.c.l.b16 %v330
  %v1001 = vunpack.c.h.b16 %v330
  %v1002 = vunpack.c.l.b16 %v331
  %v1003 = vunpack.c.h.b16 %v331
  %v1004 = vunpack.c.l.b16 %v332
  %v1005 = vunpack.c.h.b16 %v332
  %v1006 = vunpack.c.l.b16 %v333
  %v1007 = vunpack.c.h.b16 %v333
  %v1008 = vunpack.c.l.b16 %v334
  %v1009 = vunpack.c.h.b16 %v334
  %v1010 = vunpack.c.l.b16 %v335
  %v1011 = vunpack.c.h.b16 %v335
  %v1012 = vunpack.c.l.b16 %v336
  %v1013 = vunpack.c.h.b16 %v336
  %v1014 = vunpack.c.l.b16 %v337
  %v1015 = vunpack.c.h.b16 %v337
  %v1016 = vunpack.c.l.b16 %v338
  %v1017 = vunpack.c.h.b16 %v338
  %v1018 = vunpack.c.l.b16 %v339
  %v1019 = vunpack.c.h.b16 %v339
  %v1020 = vunpack.c.l.b16 %v340
  %v1021 = vunpack.c.h.b16 %v340
  %v1022 = vunpack.c.l.b16 %v341
  %v1023 = vunpack.c.h.b16 %v341
  %v1024 = vunpack.c.l.b16 %v342
  %v1025 = vunpack.c.h.b16 %v342
  %v1026 = vunpack.c.l.b16 %v343
  %v1027 = vunpack.c.h.b16 %v343
  %v1028 = vunpack.c.l.b16 %v344
  %v1029 = vunpack.c.h.b16 %v344
  %v1030 = vunpack.c.l.b16 %v345
  %v1031 = vunpack.c.h.b16 %v345
  %v1032 = vunpack.c.l.b16 %v346
  %v1033 = vunpack.c.h.b16 %v346
  %v1034 = vunpack.c.l.b16 %v347
  %v1035 = vunpack.c.h.b16 %v347
  %v1036 = vunpack.c.l.b16 %v348
  %v1037 = vunpack.c.h.b16 %v348
  %v1038 = vunpack.c.l.b16 %v349
  %v1039 = vunpack.c.h.b16 %v349
  %v1040 = vunpack.c.l.b16 %v350
  %v1041 = vunpack.c.h.b16 %v350
  %v1042 = vunpack.c.l.b16 %v351
  %v1043 = vunpack.c.h.b16 %v351
  %v1044 = vunpack.c.l.b16 %v352
  %v1045 = vunpack.c.h.b16 %v352
  %v1046 = vunpack.c.l.b16 %v353
  %v1047 = vunpack.c.h.b16 %v353
  %v1048 = vunpack.c.l.b16 %v354
  %v1049 = vunpack.c.h.b16 %v354
  %v1050 = vunpack.c.l.b16 %v355
  %v1051 = vunpack.c.h.b16 %v355
  %v1052 = vunpack.c.l.b16 %v356
  %v1053 = vunpack.c.h.b16 %v356
  %v1054 = vunpack.c.l.b16 %v357
  %v1055 = vunpack.c.h.b16 %v357
  %v1056 = vunpack.c.l.b16 %v358
  %v1057 = vunpack.c.h.b16 %v358
  %v1058 = vunpack.c.l.b16 %v359
  %v1059 = vunpack.c.h.b16 %v359
  %v1060 = vunpack.c.l.b16 %v360
  %v1061 = vunpack.c.h.b16 %v360
  %v1062 = vunpack.c.l.b16 %v361
  %v1063 = vunpack.c.h.b16 %v361
  %v1064 = vunpack.c.l.b16 %v362
  %v1065 = vunpack.c.h.b16 %v362
  %v1066 = vunpack.c.l.b16 %v363
  %v1067 = vunpack.c.h.b16 %v363
  %v1068 = vunpack.c.l.b16 %v364
  %v1069 = vunpack.c.h.b16 %v364
  %v1070 = vunpack.c.l.b16 %v365
  %v1071 = vunpack.c.h.b16 %v365
  %v1072 = vunpack.c.l.b16 %v366
  %v1073 = vunpack.c.h.b16 %v366
  %v1074 = vunpack.c.l.b16 %v367
  %v1075 = vunpack.c.h.b16 %v367
  %v1076 = vunpack.c.l.b16 %v368
  %v1077 = vunpack.c.h.b16 %v368
  %v1078 = vunpack.c.l.b16 %v369
  %v1079 = vunpack.c.h.b16 %v369
  %v1080 = vunpack.c.l.b16 %v370
  %v1081 = vunpack.c.h.b16 %v370
  %v1082 = vunpack.c.l.b16 %v371
  %v1083 = vunpack.c.h.b16 %v371
  %v1084 = vunpack.c.l.b16 %v372
  %v1085 = vunpack.c.h.b16 %v372
  %v1086 = vunpack.c.l.b16 %v373
  %v1087 = vunpack.c.h.b16 %v373
  %v1088 = vunpack.c.l.b16 %v374
  %v1089 = vunpack.c.h.b16 %v374
  %v1090 = vunpack.c.l.b16 %v375
  %v1091 = vunpack.c.h.b16 %v375
  %v1092 = vunpack.c.l.b16 %v376
  %v1093 = vunpack.c.h.b16 %v376
  %v1094 = vunpack.c.l.b16 %v377
  %v1095 = vunpack.c.h.b16 %v377
  %v1096 = vunpack.c.l.b16 %v378
  %v1097 = vunpack.c.h.b16 %v378
  %v1098 = vunpack.c.l.b16 %v379
  %v1099 = vunpack.c.h.b16 %v379
  %v1100 = vunpack.c.l.b16 %v380
  %v1101 = vunpack.c.h.b16 %v380
  %v1102 = vunpack.c.l.b16 %v381
  %v1103 = vunpack.c.h.b16 %v381
  %v1104 = vunpack.c.l.b16 %v382
  %v1105 = vunpack.c.h.b16 %v382
  %v1106 = vunpack.c.l.b16 %v383
  %v1107 = vunpack.c.h.b16 %v383
  %v1108 = vunpack.c.l.b16 %v384
  %v1109 = vunpack.c.h.b16 %v384
  %v1110 = vunpack.c.l.b16 %v385
  %v1111 = vunpack.c.h.b16 %v385
  %v1112 = vunpack.c.l.b16 %v386
  %v1113 = vunpack.c.h.b16 %v386
  %v1114 = vunpack.c.l.b16 %v387
  %v1115 = vunpack.c.h.b16 %v387
  %v1116 = vunpack.c.l.b16 %v388
  %v1117 = vunpack.c.h.b16 %v388
  %v1118 = vunpack.c.l.b16 %v389
  %v1119 = vunpack.c.h.b16 %v389
  %v1120 = vunpack.c.l.b16 %v390
  %v1121 = vunpack.c.h.b16 %v390
  %v1122 = vunpack.c.l.b16 %v391
  %v1123 = vunpack.c.h.b16 %v391
  %v1124 = vunpack.c.l.b16 %v392
  %v1125 = vunpack.c.h.b16 %v392
  %v1126 = vunpack.c.l.b16 %v393
  %v1127 = vunpack.c.h.b16 %v393
  %v1128 = vunpack.c.l.b16 %v394
  %v1129 = vunpack.c.h.b16 %v394
  %v1130 = vunpack.c.l.b16 %v395
  %v1131 = vunpack.c.h.b16 %v395
  %v1132 = vunpack.c.l.b16 %v396
  %v1133 = vunpack.c.h.b16 %v396
  %v1134 = vunpack.c.l.b16 %v397
  %v1135 = vunpack.c.h.b16 %v397
  %v1136 = vunpack.c.l.b16 %v398
  %v1137 = vunpack.c.h.b16 %v398
  %v1138 = vunpack.c.l.b16 %v399
  %v1139 = vunpack.c.h.b16 %v399
  %v1140 = vunpack.c.l.b16 %v400
  %v1141 = vunpack.c.h.b16 %v400
  %v1142 = vunpack.c.l.b16 %v401
  %v1143 = vunpack.c.h.b16 %v401
  %v1144 = vunpack.c.l.b16 %v402
  %v1145 = vunpack.c.h.b16 %v402
  %v1146 = vunpack.c.l.b16 %v403
  %v1147 = vunpack.c.h.b16 %v403
  %v1148 = vunpack.c.l.b16 %v404
  %v1149 = vunpack.c.h.b16 %v404
  %v1150 = vunpack.c.l.b16 %v405
  %v1151 = vunpack.c.h.b16 %v405
  %v1152 = vunpack.c.l.b16 %v406
  %v1153 = vunpack.c.h.b16 %v406
  %v1154 = vunpack.c.l.b16 %v407
  %v1155 = vunpack.c.h.b16 %v407
  %v1156 = vunpack.c.l.b16 %v408
  %v1157 = vunpack.c.h.b16 %v408
  %v1158 = vunpack.c.l.b16 %v409
  %v1159 = vunpack.c.h.b16 %v409
  %v1160 = vunpack.c.l.b16 %v410
  %v1161 = vunpack.c.h.b16 %v410
  %v1162 = vunpack.c.l.b16 %v411
  %v1163 = vunpack.c.h.b16 %v411
  %v1164 = vunpack.c.l.b16 %v412
  %v1165 = vunpack.c.h.b16 %v412
  %v1166 = vunpack.c.l.b16 %v413
  %v1167 = vunpack.c.h.b16 %v413
  %v1168 = vunpack.c.l.b16 %v414
  %v1169 = vunpack.c.h.b16 %v414
  %v1170 = vunpack.c.l.b16 %v415
  %v1171 = vunpack.c.h.b16 %v415
  %v1172 = vunpack.c.l.b16 %v416
  %v1173 = vunpack.c.h.b16 %v416
  %v1174 = vunpack.c.l.b16 %v417
  %v1175 = vunpack.c.h.b16 %v417
  %v1176 = vunpack.c.l.b16 %v418
  %v1177 = vunpack.c.h.b16 %v418
  %v1178 = vunpack.c.l.b16 %v419
  %v1179 = vunpack.c.h.b16 %v419
  %v1180 = vunpack.c.l.b16 %v420
  %v1181 = vunpack.c.h.b16 %v420
  %v1182 = vunpack.c.l.b16 %v421
  %v1183 = vunpack.c.h.b16 %v421
  %v1184 = vunpack.c.l.b16 %v422
  %v1185 = vunpack.c.h.b16 %v422
  %v1186 = vunpack.c.l.b16 %v423
  %v1187 = vunpack.c.h.b16 %v423
  %v1188 = vunpack.c.l.b16 %v424
  %v1189 = vunpack.c.h.b16 %v424
  %v1190 = vunpack.c.l.b16 %v425
  %v1191 = vunpack.c.h.b16 %v425
  %v1192 = vunpack.c.l.b16 %v426
  %v1193 = vunpack.c.h.b16 %v426
  %v1194 = vunpack.c.l.b16 %v427
  %v1195 = vunpack.c.h.b16 %v427
  %v1196 = vunpack.c.l.b16 %v428
  %v1197 = vunpack.c.h.b16 %v428
  %v1198 = vunpack.c.l.b16 %v429
  %v1199 = vunpack.c.h.b16 %v429
  %v1200 = vunpack.c.l.b16 %v430
  %v1201 = vunpack.c.h.b16 %v430
  %v1202 = vunpack.c.l.b16 %v431
  %v1203 = vunpack.c.h.b16 %v431
  %v1204 = vunpack.c.l.b16 %v432
  %v1205 = vunpack.c.h.b16 %v432
  %v1206 = vunpack.c.l.b16 %v433
  %v1207 = vunpack.c.h.b16 %v433
  %v1208 = vunpack.c.l.b16 %v434
  %v1209 = vunpack.c.h.b16 %v434
  %v1210 = vunpack.c.l.b16 %v435
  %v1211 = vunpack.c.h.b16 %v435
  %v1212 = vunpack.c.l.b16 %v436
  %v1213 = vunpack.c.h.b16 %v436
  %v1214 = vunpack.c.l.b16 %v437
  %v1215 = vunpack.c.h.b16 %v437
  %v1216 = vunpack.c.l.b16 %v438
  %v1217 = vunpack.c.h.b16 %v438
  %v1218 = vunpack.c.l.b16 %v439
  %v1219 = vunpack.c.h.b16 %v439
  %v1220 = vunpack.c.l.b16 %v440
  %v1221 = vunpack.c.h.b16 %v440
  %v1222 = vunpack.c.l.b16 %v441
  %v1223 = vunpack.c.h.b16 %v441
  %v1224 = vunpack.c.l.b16 %v442
  %v1225 = vunpack.c.h.b16 %v442
  %v1226 = vunpack.c.l.b16 %v443
  %v1227 = vunpack.c.h.b16 %v443
  %v1228 = vunpack.c.l.b16 %v444
  %v1229 = vunpack.c.h.b16 %v444
  %v1230 = vunpack.c.l.b16 %v445
  %v1231 = vunpack.c.h.b16 %v445
  %v1232 = vunpack.c.l.b16 %v446
  %v1233 = vunpack.c.h.b16 %v446
  %v1234 = vunpack.c.l.b16 %v447
  %v1235 = vunpack.c.h.b16 %v447
  %v1236 = vunpack.c.l.b16 %v448
  %v1237 = vunpack.c.h.b16 %v448
  %v1238 = vunpack.c.l.b16 %v449
  %v1239 = vunpack.c.h.b16 %v449
  %v1240 = vpack.c.b16 %v732, %v728
  %v1241 = vpack.c.b16 %v733, %v729
  %v1242 = vpack.c.b16 %v734, %v730
  %v1243 = vpack.c.b16 %v735, %v731
  %v1244 = vpack.c.b16 %v740, %v736
  %v1245 = vpack.c.b16 %v741, %v737
  %v1246 = vpack.c.b16 %v742, %v738
  %v1247 = vpack.c.b16 %v743, %v739
  %v1248 = vpack.c.b16 %v748, %v744
  %v1249 = vpack.c.b16 %v749, %v745
  %v1250 = vpack.c.b16 %v750, %v746
  %v1251 = vpack.c.b16 %v751, %v747
  %v1252 = vpack.c.b16 %v756, %v752
  %v1253 = vpack.c.b16 %v757, %v753
  %v1254 = vpack.c.b16 %v758, %v754
  %v1255 = vpack.c.b16 %v759, %v755
  %v1256 = vpack.c.b16 %v764, %v760
  %v1257 = vpack.c.b16 %v765, %v761
  %v1258 = vpack.c.b16 %v766, %v762
  %v1259 = vpack.c.b16 %v767, %v763
  %v1260 = vpack.c.b16 %v772, %v768
  %v1261 = vpack.c.b16 %v773, %v769
  %v1262 = vpack.c.b16 %v774, %v770
  %v1263 = vpack.c.b16 %v775, %v771
  %v1264 = vpack.c.b16 %v780, %v776
  %v1265 = vpack.c.b16 %v781, %v777
  %v1266 = vpack.c.b16 %v782, %v778
  %v1267 = vpack.c.b16 %v783, %v779
  %v1268 = vpack.c.b16 %v788, %v784
  %v1269 = vpack.c.b16 %v789, %v785
  %v1270 = vpack.c.b16 %v790, %v786
  %v1271 = vpack.c.b16 %v791, %v787
  %v1272 = vpack.c.b16 %v796, %v792
  %v1273 = vpack.c.b16 %v797, %v793
  %v1274 = vpack.c.b16 %v798, %v794
  %v1275 = vpack.c.b16 %v799, %v795
  %v1276 = vpack.c.b16 %v804, %v800
  %v1277 = vpack.c.b16 %v805, %v801
  %v1278 = vpack.c.b16 %v806, %v802
  %v1279 = vpack.c.b16 %v807, %v803
  %v1280 = vpack.c.b16 %v812, %v808
  %v1281 = vpack.c.b16 %v813, %v809
  %v1282 = vpack.c.b16 %v814, %v810
  %v1283 = vpack.c.b16 %v815, %v811
  %v1284 = vpack.c.b16 %v820, %v816
  %v1285 = vpack.c.b16 %v821, %v817
  %v1286 = vpack.c.b16 %v822, %v818
  %v1287 = vpack.c.b16 %v823, %v819
  %v1288 = vpack.c.b16 %v828, %v824
  %v1289 = vpack.c.b16 %v829, %v825
  %v1290 = vpack.c.b16 %v830, %v826
  %v1291 = vpack.c.b16 %v831, %v827
  %v1292 = vpack.c.b16 %v836, %v832
  %v1293 = vpack.c.b16 %v837, %v833
  %v1294 = vpack.c.b16 %v838, %v834
  %v1295 = vpack.c.b16 %v839, %v835
  %v1296 = vpack.c.b16 %v844, %v840
  %v1297 = vpack.c.b16 %v845, %v841
  %v1298 = vpack.c.b16 %v846, %v842
  %v1299 = vpack.c.b16 %v847, %v843
  %v1300 = vpack.c.b16 %v852, %v848
  %v1301 = vpack.c.b16 %v853, %v849
  %v1302 = vpack.c.b16 %v854, %v850
  %v1303 = vpack.c.b16 %v855, %v851
  %v1304 = vpack.c.b16 %v860, %v856
  %v1305 = vpack.c.b16 %v861, %v857
  %v1306 = vpack.c.b16 %v862, %v858
  %v1307 = vpack.c.b16 %v863, %v859
  %v1308 = vpack.c.b16 %v868, %v864
  %v1309 = vpack.c.b16 %v869, %v865
  %v1310 = vpack.c.b16 %v870, %v866
  %v1311 = vpack.c.b16 %v871, %v867
  %v1312 = vpack.c.b16 %v876, %v872
  %v1313 = vpack.c.b16 %v877, %v873
  %v1314 = vpack.c.b16 %v878, %v874
  %v1315 = vpack.c.b16 %v879, %v875
  %v1316 = vpack.c.b16 %v884, %v880
  %v1317 = vpack.c.b16 %v885, %v881
  %v1318 = vpack.c.b16 %v886, %v882
  %v1319 = vpack.c.b16 %v887, %v883
  %v1320 = vpack.c.b16 %v892, %v888
  %v1321 = vpack.c.b16 %v893, %v889
  %v1322 = vpack.c.b16 %v894, %v890
  %v1323 = vpack.c.b16 %v895, %v891
  %v1324 = vpack.c.b16 %v900, %v896
  %v1325 = vpack.c.b16 %v901, %v897
  %v1326 = vpack.c.b16 %v902, %v898
  %v1327 = vpack.c.b16 %v903, %v899
  %v1328 = vpack.c.b16 %v908, %v904
  %v1329 = vpack.c.b16 %v909, %v905
  %v1330 = vpack.c.b16 %v910, %v906
  %v1331 = vpack.c.b16 %v911, %v907
  %v1332 = vpack.c.b16 %v916, %v912
  %v1333 = vpack.c.b16 %v917, %v913
  %v1334 = vpack.c.b16 %v918, %v914
  %v1335 = vpack.c.b16 %v919, %v915
  %v1336 = vpack.c.b16 %v924, %v920
  %v1337 = vpack.c.b16 %v925, %v921
  %v1338 = vpack.c.b16 %v926, %v922
  %v1339 = vpack.c.b16 %v927, %v923
  %v1340 = vpack.c.b16 %v932, %v928
  %v1341 = vpack.c.b16 %v933, %v929
  %v1342 = vpack.c.b16 %v934, %v930
  %v1343 = vpack.c.b16 %v935, %v931
  %v1344 = vpack.c.b16 %v940, %v936
  %v1345 = vpack.c.b16 %v941, %v937
  %v1346 = vpack.c.b16 %v942, %v938
  %v1347 = vpack.c.b16 %v943, %v939
  %v1348 = vpack.c.b16 %v948, %v944
  %v1349 = vpack.c.b16 %v949, %v945
  %v1350 = vpack.c.b16 %v950, %v946
  %v1351 = vpack.c.b16 %v951, %v947
  %v1352 = vpack.c.b16 %v956, %v952
  %v1353 = vpack.c.b16 %v957, %v953
  %v1354 = vpack.c.b16 %v958, %v954
  %v1355 = vpack.c.b16 %v959, %v955
  %v1356 = vpack.c.b16 %v964, %v960
  %v1357 = vpack.c.b16 %v965, %v961
  %v1358 = vpack.c.b16 %v966, %v962
  %v1359 = vpack.c.b16 %v967, %v963
  %v1360 = vpack.c.b16 %v972, %v968
  %v1361 = vpack.c.b16 %v973, %v969
  %v1362 = vpack.c.b16 %v974, %v970
  %v1363 = vpack.c.b16 %v975, %v971
  %v1364 = vpack.c.b16 %v980, %v976
  %v1365 = vpack.c.b16 %v981, %v977
  %v1366 = vpack.c.b16 %v982, %v978
  %v1367 = vpack.c.b16 %v983, %v979
  %v1368 = vpack.c.b16 %v988, %v984
  %v1369 = vpack.c.b16 %v989, %v985
  %v1370 = vpack.c.b16 %v990, %v986
  %v1371 = vpack.c.b16 %v991, %v987
  %v1372 = vpack.c.b16 %v996, %v992
  %v1373 = vpack.c.b16 %v997, %v993
  %v1374 = vpack.c.b16 %v998, %v994
  %v1375 = vpack.c.b16 %v999, %v995
  %v1376 = vpack.c.b16 %v1004, %v1000
  %v1377 = vpack.c.b16 %v1005, %v1001
  %v1378 = vpack.c.b16 %v1006, %v1002
  %v1379 = vpack.c.b16 %v1007, %v1003
  %v1380 = vpack.c.b16 %v1012, %v1008
  %v1381 = vpack.c.b16 %v1013, %v1009
  %v1382 = vpack.c.b16 %v1014, %v1010
  %v1383 = vpack.c.b16 %v1015, %v1011
  %v1384 = vpack.c.b16 %v1020, %v1016
  %v1385 = vpack.c.b16 %v1021, %v1017
  %v1386 = vpack.c.b16 %v1022, %v1018
  %v1387 = vpack.c.b16 %v1023, %v1019
  %v1388 = vpack.c.b16 %v1028, %v1024
  %v1389 = vpack.c.b16 %v1029, %v1025
  %v1390 = vpack.c.b16 %v1030, %v1026
  %v1391 = vpack.c.b16 %v1031, %v1027
  %v1392 = vpack.c.b16 %v1036, %v1032
  %v1393 = vpack.c.b16 %v1037, %v1033
  %v1394 = vpack.c.b16 %v1038, %v1034
  %v1395 = vpack.c.b16 %v1039, %v1035
  %v1396 = vpack.c.b16 %v1044, %v1040
  %v1397 = vpack.c.b16 %v1045, %v1041
  %v1398 = vpack.c.b16 %v1046, %v1042
  %v1399 = vpack.c.b16 %v1047, %v1043
  %v1400 = vpack.c.b16 %v1052, %v1048
  %v1401 = vpack.c.b16 %v1053, %v1049
  %v1402 = vpack.c.b16 %v1054, %v1050
  %v1403 = vpack.c.b16 %v1055, %v1051
  %v1404 = vpack.c.b16 %v1060, %v1056
  %v1405 = vpack.c.b16 %v1061, %v1057
  %v1406 = vpack.c.b16 %v1062, %v1058
  %v1407 = vpack.c.b16 %v1063, %v1059
  %v1408 = vpack.c.b16 %v1068, %v1064
  %v1409 = vpack.c.b16 %v1069, %v1065
  %v1410 = vpack.c.b16 %v1070, %v1066
  %v1411 = vpack.c.b16 %v1071, %v1067
  %v1412 = vpack.c.b16 %v1076, %v1072
  %v1413 = vpack.c.b16 %v1077, %v1073
  %v1414 = vpack.c.b16 %v1078, %v1074
  %v1415 = vpack.c.b16 %v1079, %v1075
  %v1416 = vpack.c.b16 %v1084, %v1080
  %v1417 = vpack.c.b16 %v1085, %v1081
  %v1418 = vpack.c.b16 %v1086, %v1082
  %v1419 = vpack.c.b16 %v1087, %v1083
  %v1420 = vpack.c.b16 %v1092, %v1088
  %v1421 = vpack.c.b16 %v1093, %v1089
  %v1422 = vpack.c.b16 %v1094, %v1090
  %v1423 = vpack.c.b16 %v1095, %v1091
  %v1424 = vpack.c.b16 %v1100, %v1096
  %v1425 = vpack.c.b16 %v1101, %v1097
  %v1426 = vpack.c.b16 %v1102, %v1098
  %v1427 = vpack.c.b16 %v1103, %v1099
  %v1428 = vpack.c.b16 %v1108, %v1104
  %v1429 = vpack.c.b16 %v1109, %v1105
  %v1430 = vpack.c.b16 %v1110, %v1106
  %v1431 = vpack.c.b16 %v1111, %v1107
  %v1432 = vpack.c.b16 %v1116, %v1112
  %v1433 = vpack.c.b16 %v1117, %v1113
  %v1434 = vpack.c.b16 %v1118, %v1114
  %v1435 = vpack.c.b16 %v1119, %v1115
  %v1436 = vpack.c.b16 %v1124, %v1120
  %v1437 = vpack.c.b16 %v1125, %v1121
  %v1438 = vpack.c.b16 %v1126, %v1122
  %v1439 = vpack.c.b16 %v1127, %v1123
  %v1440 = vpack.c.b16 %v1132, %v1128
  %v1441 = vpack.c.b16 %v1133, %v1129
  %v1442 = vpack.c.b16 %v1134, %v1130
  %v1443 = vpack.c.b16 %v1135, %v1131
  %v1444 = vpack.c.b16 %v1140, %v1136
  %v1445 = vpack.c.b16 %v1141, %v1137
  %v1446 = vpack.c.b16 %v1142, %v1138
  %v1447 = vpack.c.b16 %v1143, %v1139
  %v1448 = vpack.c.b16 %v1148, %v1144
  %v1449 = vpack.c.b16 %v1149, %v1145
  %v1450 = vpack.c.b16 %v1150, %v1146
  %v1451 = vpack.c.b16 %v1151, %v1147
  %v1452 = vpack.c.b16 %v1156, %v1152
  %v1453 = vpack.c.b16 %v1157, %v1153
  %v1454 = vpack.c.b16 %v1158, %v1154
  %v1455 = vpack.c.b16 %v1159, %v1155
  %v1456 = vpack.c.b16 %v1164, %v1160
  %v1457 = vpack.c.b16 %v1165, %v1161
  %v1458 = vpack.c.b16 %v1166, %v1162
  %v1459 = vpack.c.b16 %v1167, %v1163
  %v1460 = vpack.c.b16 %v1172, %v1168
  %v1461 = vpack.c.b16 %v1173, %v1169
  %v1462 = vpack.c.b16 %v1174, %v1170
  %v1463 = vpack.c.b16 %v1175, %v1171
  %v1464 = vpack.c.b16 %v1180, %v1176
  %v1465 = vpack.c.b16 %v1181, %v1177
  %v1466 = vpack.c.b16 %v1182, %v1178
  %v1467 = vpack.c.b16 %v1183, %v1179
  %v1468 = vpack.c.b16 %v1188, %v1184
  %v1469 = vpack.c.b16 %v1189, %v1185
  %v1470 = vpack.c.b16 %v1190, %v1186
  %v1471 = vpack.c.b16 %v1191, %v1187
  %v1472 = vpack.c.b16 %v1196, %v1192
  %v1473 = vpack.c.b16 %v1197, %v1193
  %v1474 = vpack.c.b16 %v1198, %v1194
  %v1475 = vpack.c.b16 %v1199, %v1195
  %v1476 = vpack.c.b16 %v1204, %v1200
  %v1477 = vpack.c.b16 %v1205, %v1201
  %v1478 = vpack.c.b16 %v1206, %v1202
  %v1479 = vpack.c.b16 %v1207, %v1203
  %v1480 = vpack.c.b16 %v1212, %v1208
  %v1481 = vpack.c.b16 %v1213, %v1209
  %v1482 = vpack.c.b16 %v1214, %v1210
  %v1483 = vpack.c.b16 %v1215, %v1211
  %v1484 = vpack.c.b16 %v1220, %v1216
  %v1485 = vpack.c.b16 %v1221, %v1217
  %v1486 = vpack.c.b16 %v1222, %v1218
  %v1487 = vpack.c.b16 %v1223, %v1219
  %v1488 = vpack.c.b16 %v1228, %v1224
  %v1489 = vpack.c.b16 %v1229, %v1225
  %v1490 = vpack.c.b16 %v1230, %v1226
  %v1491 = vpack.c.b16 %v1231, %v1227
  %v1492 = vpack.c.b16 %v1236, %v1232
  %v1493 = vpack.c.b16 %v1237, %v1233
  %v1494 = vpack.c.b16 %v1238, %v1234
  %v1495 = vpack.c.b16 %v1239, %v1235
  %1752 = vmatprep.subr.bf16.mxu0 %v1241
  %1753 = vmatpush1.bf16.msra.mxu0 %v1240
  %1754 = vmatprep.subr.bf16.mxu0 %v1245
  %1755 = vmatpush1.bf16.msra.mxu0 %v1244
  %1756 = vmatprep.subr.bf16.mxu0 %v1249
  %1757 = vmatpush1.bf16.msra.mxu0 %v1248
  %1758 = vmatprep.subr.bf16.mxu0 %v1253
  %1759 = vmatpush1.bf16.msra.mxu0 %v1252
  %1760 = vmatprep.subr.bf16.mxu0 %v1257
  %1761 = vmatpush1.bf16.msra.mxu0 %v1256
  %1762 = vmatprep.subr.bf16.mxu0 %v1261
  %1763 = vmatpush1.bf16.msra.mxu0 %v1260
  %1764 = vmatprep.subr.bf16.mxu0 %v1265
  %1765 = vmatpush1.bf16.msra.mxu0 %v1264
  %1766 = vmatprep.subr.bf16.mxu0 %v1269
  %1767 = vmatpush1.bf16.msra.mxu0 %v1268
  %1768 = vmatprep.subr.bf16.mxu0 %v1273
  %1769 = vmatpush1.bf16.msra.mxu0 %v1272
  %1770 = vmatprep.subr.bf16.mxu0 %v1277
  %1771 = vmatpush1.bf16.msra.mxu0 %v1276
  %1772 = vmatprep.subr.bf16.mxu0 %v1281
  %1773 = vmatpush1.bf16.msra.mxu0 %v1280
  %1774 = vmatprep.subr.bf16.mxu0 %v1285
  %1775 = vmatpush1.bf16.msra.mxu0 %v1284
  %1776 = vmatprep.subr.bf16.mxu0 %v1289
  %1777 = vmatpush1.bf16.msra.mxu0 %v1288
  %1778 = vmatprep.subr.bf16.mxu0 %v1293
  %1779 = vmatpush1.bf16.msra.mxu0 %v1292
  %1780 = vmatprep.subr.bf16.mxu0 %v1297
  %1781 = vmatpush1.bf16.msra.mxu0 %v1296
  %1782 = vmatprep.subr.bf16.mxu0 %v1301
  %1783 = vmatpush1.bf16.msra.mxu0 %v1300
  %1784 = vmatprep.mubr.bf16.mxu0 %v163
  %1785 = vmatmul.mubr.bf16.gmra.mrb[0].mxu0 %v162
  %v1786 = vpop.f32.mrb[0].mxu0
  %v1787 = vadd.f32 %v455, %v1786
  %v1788 = vpop.f32.mrb[0].mxu0
  %v1789 = vadd.f32 %v459, %v1788
  %v1790 = vpop.f32.mrb[0].mxu0
  %v1791 = vadd.f32 %v455, %v1790
  %v1792 = vpop.f32.mrb[0].mxu0
  %v1793 = vadd.f32 %v459, %v1792
  %1794 = vmatprep.mubr.bf16.mxu0 %v171
  %1795 = vmatmul.mubr.bf16.gmra.mrb[0].mxu0 %v170
  %v1796 = vpop.f32.mrb[0].mxu0
  %v1797 = vadd.f32 %v455, %v1796
  %v1798 = vpop.f32.mrb[0].mxu0
  %v1799 = vadd.f32 %v459, %v1798
  %v1800 = vpop.f32.mrb[0].mxu0
  %v1801 = vadd.f32 %v455, %v1800
  %v1802 = vpop.f32.mrb[0].mxu0
  %v1803 = vadd.f32 %v459, %v1802
  %1804 = vmatprep.mubr.bf16.mxu0 %v179
  %1805 = vmatmul.mubr.bf16.gmra.mrb[0].mxu0 %v178
  %v1806 = vpop.f32.mrb[0].mxu0
  %v1807 = vadd.f32 %v455, %v1806
  %v1808 = vpop.f32.mrb[0].mxu0
  %v1809 = vadd.f32 %v459, %v1808
  %v1810 = vpop.f32.mrb[0].mxu0
  %v1811 = vadd.f32 %v455, %v1810
  %v1812 = vpop.f32.mrb[0].mxu0
  %v1813 = vadd.f32 %v459, %v1812
  %1814 = vmatprep.mubr.bf16.mxu0 %v187
  %1815 = vmatmul.mubr.bf16.gmra.mrb[0].mxu0 %v186
  %v1816 = vpop.f32.mrb[0].mxu0
  %v1817 = vadd.f32 %v455, %v1816
  %v1818 = vpop.f32.mrb[0].mxu0
  %v1819 = vadd.f32 %v459, %v1818
  %v1820 = vpop.f32.mrb[0].mxu0
  %v1821 = vadd.f32 %v455, %v1820
  %v1822 = vpop.f32.mrb[0].mxu0
  %v1823 = vadd.f32 %v459, %v1822
  %1824 = vdwg.mxu0
  %1825 = vmatprep.subr.bf16.mxu0 %v1305
  %1826 = vmatpush1.bf16.msra.mxu0 %v1304
  %1827 = vmatprep.subr.bf16.mxu0 %v1309
  %1828 = vmatpush1.bf16.msra.mxu0 %v1308
  %1829 = vmatprep.subr.bf16.mxu0 %v1313
  %1830 = vmatpush1.bf16.msra.mxu0 %v1312
  %1831 = vmatprep.subr.bf16.mxu0 %v1317
  %1832 = vmatpush1.bf16.msra.mxu0 %v1316
  %1833 = vmatprep.subr.bf16.mxu0 %v1321
  %1834 = vmatpush1.bf16.msra.mxu0 %v1320
  %1835 = vmatprep.subr.bf16.mxu0 %v1325
  %1836 = vmatpush1.bf16.msra.mxu0 %v1324
  %1837 = vmatprep.subr.bf16.mxu0 %v1329
  %1838 = vmatpush1.bf16.msra.mxu0 %v1328
  %1839 = vmatprep.subr.bf16.mxu0 %v1333
  %1840 = vmatpush1.bf16.msra.mxu0 %v1332
  %1841 = vmatprep.subr.bf16.mxu0 %v1337
  %1842 = vmatpush1.bf16.msra.mxu0 %v1336
  %1843 = vmatprep.subr.bf16.mxu0 %v1341
  %1844 = vmatpush1.bf16.msra.mxu0 %v1340
  %1845 = vmatprep.subr.bf16.mxu0 %v1345
  %1846 = vmatpush1.bf16.msra.mxu0 %v1344
  %1847 = vmatprep.subr.bf16.mxu0 %v1349
  %1848 = vmatpush1.bf16.msra.mxu0 %v1348
  %1849 = vmatprep.subr.bf16.mxu0 %v1353
  %1850 = vmatpush1.bf16.msra.mxu0 %v1352
  %1851 = vmatprep.subr.bf16.mxu0 %v1357
  %1852 = vmatpush1.bf16.msra.mxu0 %v1356
  %1853 = vmatprep.subr.bf16.mxu0 %v1361
  %1854 = vmatpush1.bf16.msra.mxu0 %v1360
  %1855 = vmatprep.subr.bf16.mxu0 %v1365
  %1856 = vmatpush1.bf16.msra.mxu0 %v1364
  %1857 = vmatprep.mubr.bf16.mxu0 %v165
  %1858 = vmatmul.mubr.bf16.gmra.mrb[0].mxu0 %v164
  %v1859 = vpop.f32.mrb[0].mxu0
  %v1860 = vadd.f32 %v1787, %v1859
  %v1861 = vpop.f32.mrb[0].mxu0
  %v1862 = vadd.f32 %v1789, %v1861
  %v1863 = vpop.f32.mrb[0].mxu0
  %v1864 = vadd.f32 %v1791, %v1863
  %v1865 = vpop.f32.mrb[0].mxu0
  %v1866 = vadd.f32 %v1793, %v1865
  %1867 = vmatprep.mubr.bf16.mxu0 %v173
  %1868 = vmatmul.mubr.bf16.gmra.mrb[0].mxu0 %v172
  %v1869 = vpop.f32.mrb[0].mxu0
  %v1870 = vadd.f32 %v1797, %v1869
  %v1871 = vpop.f32.mrb[0].mxu0
  %v1872 = vadd.f32 %v1799, %v1871
  %v1873 = vpop.f32.mrb[0].mxu0
  %v1874 = vadd.f32 %v1801, %v1873
  %v1875 = vpop.f32.mrb[0].mxu0
  %v1876 = vadd.f32 %v1803, %v1875
  %1877 = vmatprep.mubr.bf16.mxu0 %v181
  %1878 = vmatmul.mubr.bf16.gmra.mrb[0].mxu0 %v180
  %v1879 = vpop.f32.mrb[0].mxu0
  %v1880 = vadd.f32 %v1807, %v1879
  %v1881 = vpop.f32.mrb[0].mxu0
  %v1882 = vadd.f32 %v1809, %v1881
  %v1883 = vpop.f32.mrb[0].mxu0
  %v1884 = vadd.f32 %v1811, %v1883
  %v1885 = vpop.f32.mrb[0].mxu0
  %v1886 = vadd.f32 %v1813, %v1885
  %1887 = vmatprep.mubr.bf16.mxu0 %v189
  %1888 = vmatmul.mubr.bf16.gmra.mrb[0].mxu0 %v188
  %v1889 = vpop.f32.mrb[0].mxu0
  %v1890 = vadd.f32 %v1817, %v1889
  %v1891 = vpop.f32.mrb[0].mxu0
  %v1892 = vadd.f32 %v1819, %v1891
  %v1893 = vpop.f32.mrb[0].mxu0
  %v1894 = vadd.f32 %v1821, %v1893
  %v1895 = vpop.f32.mrb[0].mxu0
  %v1896 = vadd.f32 %v1823, %v1895
  %1897 = vdwg.mxu0
  %1898 = vmatprep.subr.bf16.mxu0 %v1369
  %1899 = vmatpush1.bf16.msra.mxu0 %v1368
  %1900 = vmatprep.subr.bf16.mxu0 %v1373
  %1901 = vmatpush1.bf16.msra.mxu0 %v1372
  %1902 = vmatprep.subr.bf16.mxu0 %v1377
  %1903 = vmatpush1.bf16.msra.mxu0 %v1376
  %1904 = vmatprep.subr.bf16.mxu0 %v1381
  %1905 = vmatpush1.bf16.msra.mxu0 %v1380
  %1906 = vmatprep.subr.bf16.mxu0 %v1385
  %1907 = vmatpush1.bf16.msra.mxu0 %v1384
  %1908 = vmatprep.subr.bf16.mxu0 %v1389
  %1909 = vmatpush1.bf16.msra.mxu0 %v1388
  %1910 = vmatprep.subr.bf16.mxu0 %v1393
  %1911 = vmatpush1.bf16.msra.mxu0 %v1392
  %1912 = vmatprep.subr.bf16.mxu0 %v1397
  %1913 = vmatpush1.bf16.msra.mxu0 %v1396
  %1914 = vmatprep.subr.bf16.mxu0 %v1401
  %1915 = vmatpush1.bf16.msra.mxu0 %v1400
  %1916 = vmatprep.subr.bf16.mxu0 %v1405
  %1917 = vmatpush1.bf16.msra.mxu0 %v1404
  %1918 = vmatprep.subr.bf16.mxu0 %v1409
  %1919 = vmatpush1.bf16.msra.mxu0 %v1408
  %1920 = vmatprep.subr.bf16.mxu0 %v1413
  %1921 = vmatpush1.bf16.msra.mxu0 %v1412
  %1922 = vmatprep.subr.bf16.mxu0 %v1417
  %1923 = vmatpush1.bf16.msra.mxu0 %v1416
  %1924 = vmatprep.subr.bf16.mxu0 %v1421
  %1925 = vmatpush1.bf16.msra.mxu0 %v1420
  %1926 = vmatprep.subr.bf16.mxu0 %v1425
  %1927 = vmatpush1.bf16.msra.mxu0 %v1424
  %1928 = vmatprep.subr.bf16.mxu0 %v1429
  %1929 = vmatpush1.bf16.msra.mxu0 %v1428
  %1930 = vmatprep.mubr.bf16.mxu0 %v167
  %1931 = vmatmul.mubr.bf16.gmra.mrb[0].mxu0 %v166
  %v1932 = vpop.f32.mrb[0].mxu0
  %v1933 = vadd.f32 %v1860, %v1932
  %v1934 = vpop.f32.mrb[0].mxu0
  %v1935 = vadd.f32 %v1862, %v1934
  %v1936 = vpop.f32.mrb[0].mxu0
  %v1937 = vadd.f32 %v1864, %v1936
  %v1938 = vpop.f32.mrb[0].mxu0
  %v1939 = vadd.f32 %v1866, %v1938
  %1940 = vmatprep.mubr.bf16.mxu0 %v175
  %1941 = vmatmul.mubr.bf16.gmra.mrb[0].mxu0 %v174
  %v1942 = vpop.f32.mrb[0].mxu0
  %v1943 = vadd.f32 %v1870, %v1942
  %v1944 = vpop.f32.mrb[0].mxu0
  %v1945 = vadd.f32 %v1872, %v1944
  %v1946 = vpop.f32.mrb[0].mxu0
  %v1947 = vadd.f32 %v1874, %v1946
  %v1948 = vpop.f32.mrb[0].mxu0
  %v1949 = vadd.f32 %v1876, %v1948
  %1950 = vmatprep.mubr.bf16.mxu0 %v183
  %1951 = vmatmul.mubr.bf16.gmra.mrb[0].mxu0 %v182
  %v1952 = vpop.f32.mrb[0].mxu0
  %v1953 = vadd.f32 %v1880, %v1952
  %v1954 = vpop.f32.mrb[0].mxu0
  %v1955 = vadd.f32 %v1882, %v1954
  %v1956 = vpop.f32.mrb[0].mxu0
  %v1957 = vadd.f32 %v1884, %v1956
  %v1958 = vpop.f32.mrb[0].mxu0
  %v1959 = vadd.f32 %v1886, %v1958
  %1960 = vmatprep.mubr.bf16.mxu0 %v191
  %1961 = vmatmul.mubr.bf16.gmra.mrb[0].mxu0 %v190
  %v1962 = vpop.f32.mrb[0].mxu0
  %v1963 = vadd.f32 %v1890, %v1962
  %v1964 = vpop.f32.mrb[0].mxu0
  %v1965 = vadd.f32 %v1892, %v1964
  %v1966 = vpop.f32.mrb[0].mxu0
  %v1967 = vadd.f32 %v1894, %v1966
  %v1968 = vpop.f32.mrb[0].mxu0
  %v1969 = vadd.f32 %v1896, %v1968
  %1970 = vdwg.mxu0
  %1971 = vmatprep.subr.bf16.mxu0 %v1433
  %1972 = vmatpush1.bf16.msra.mxu0 %v1432
  %1973 = vmatprep.subr.bf16.mxu0 %v1437
  %1974 = vmatpush1.bf16.msra.mxu0 %v1436
  %1975 = vmatprep.subr.bf16.mxu0 %v1441
  %1976 = vmatpush1.bf16.msra.mxu0 %v1440
  %1977 = vmatprep.subr.bf16.mxu0 %v1445
  %1978 = vmatpush1.bf16.msra.mxu0 %v1444
  %1979 = vmatprep.subr.bf16.mxu0 %v1449
  %1980 = vmatpush1.bf16.msra.mxu0 %v1448
  %1981 = vmatprep.subr.bf16.mxu0 %v1453
  %1982 = vmatpush1.bf16.msra.mxu0 %v1452
  %1983 = vmatprep.subr.bf16.mxu0 %v1457
  %1984 = vmatpush1.bf16.msra.mxu0 %v1456
  %1985 = vmatprep.subr.bf16.mxu0 %v1461
  %1986 = vmatpush1.bf16.msra.mxu0 %v1460
  %1987 = vmatprep.subr.bf16.mxu0 %v1465
  %1988 = vmatpush1.bf16.msra.mxu0 %v1464
  %1989 = vmatprep.subr.bf16.mxu0 %v1469
  %1990 = vmatpush1.bf16.msra.mxu0 %v1468
  %1991 = vmatprep.subr.bf16.mxu0 %v1473
  %1992 = vmatpush1.bf16.msra.mxu0 %v1472
  %1993 = vmatprep.subr.bf16.mxu0 %v1477
  %1994 = vmatpush1.bf16.msra.mxu0 %v1476
  %1995 = vmatprep.subr.bf16.mxu0 %v1481
  %1996 = vmatpush1.bf16.msra.mxu0 %v1480
  %1997 = vmatprep.subr.bf16.mxu0 %v1485
  %1998 = vmatpush1.bf16.msra.mxu0 %v1484
  %1999 = vmatprep.subr.bf16.mxu0 %v1489
  %2000 = vmatpush1.bf16.msra.mxu0 %v1488
  %2001 = vmatprep.subr.bf16.mxu0 %v1493
  %2002 = vmatpush1.bf16.msra.mxu0 %v1492
  %2003 = vmatprep.mubr.bf16.mxu0 %v169
  %2004 = vmatmul.mubr.bf16.gmra.mrb[0].mxu0 %v168
  %v2005 = vpop.f32.mrb[0].mxu0
  %v2006 = vadd.f32 %v1933, %v2005
  %v2007 = vpop.f32.mrb[0].mxu0
  %v2008 = vadd.f32 %v1935, %v2007
  %v2009 = vpop.f32.mrb[0].mxu0
  %v2010 = vadd.f32 %v1937, %v2009
  %v2011 = vpop.f32.mrb[0].mxu0
  %v2012 = vadd.f32 %v1939, %v2011
  %2013 = vmatprep.mubr.bf16.mxu0 %v177
  %2014 = vmatmul.mubr.bf16.gmra.mrb[0].mxu0 %v176
  %v2015 = vpop.f32.mrb[0].mxu0
  %v2016 = vadd.f32 %v1943, %v2015
  %v2017 = vpop.f32.mrb[0].mxu0
  %v2018 = vadd.f32 %v1945, %v2017
  %v2019 = vpop.f32.mrb[0].mxu0
  %v2020 = vadd.f32 %v1947, %v2019
  %v2021 = vpop.f32.mrb[0].mxu0
  %v2022 = vadd.f32 %v1949, %v2021
  %2023 = vmatprep.mubr.bf16.mxu0 %v185
  %2024 = vmatmul.mubr.bf16.gmra.mrb[0].mxu0 %v184
  %v2025 = vpop.f32.mrb[0].mxu0
  %v2026 = vadd.f32 %v1953, %v2025
  %v2027 = vpop.f32.mrb[0].mxu0
  %v2028 = vadd.f32 %v1955, %v2027
  %v2029 = vpop.f32.mrb[0].mxu0
  %v2030 = vadd.f32 %v1957, %v2029
  %v2031 = vpop.f32.mrb[0].mxu0
  %v2032 = vadd.f32 %v1959, %v2031
  %2033 = vmatprep.mubr.bf16.mxu0 %v193
  %2034 = vmatmul.mubr.bf16.gmra.mrb[0].mxu0 %v192
  %v2035 = vpop.f32.mrb[0].mxu0
  %v2036 = vadd.f32 %v1963, %v2035
  %v2037 = vpop.f32.mrb[0].mxu0
  %v2038 = vadd.f32 %v1965, %v2037
  %v2039 = vpop.f32.mrb[0].mxu0
  %v2040 = vadd.f32 %v1967, %v2039
  %v2041 = vpop.f32.mrb[0].mxu0
  %v2042 = vadd.f32 %v1969, %v2041
  %2043 = vdwg.mxu0
  %2044 = vmatprep.subr.bf16.mxu0 %v1243
  %2045 = vmatpush1.bf16.msra.mxu0 %v1242
  %2046 = vmatprep.subr.bf16.mxu0 %v1247
  %2047 = vmatpush1.bf16.msra.mxu0 %v1246
  %2048 = vmatprep.subr.bf16.mxu0 %v1251
  %2049 = vmatpush1.bf16.msra.mxu0 %v1250
  %2050 = vmatprep.subr.bf16.mxu0 %v1255
  %2051 = vmatpush1.bf16.msra.mxu0 %v1254
  %2052 = vmatprep.subr.bf16.mxu0 %v1259
  %2053 = vmatpush1.bf16.msra.mxu0 %v1258
  %2054 = vmatprep.subr.bf16.mxu0 %v1263
  %2055 = vmatpush1.bf16.msra.mxu0 %v1262
  %2056 = vmatprep.subr.bf16.mxu0 %v1267
  %2057 = vmatpush1.bf16.msra.mxu0 %v1266
  %2058 = vmatprep.subr.bf16.mxu0 %v1271
  %2059 = vmatpush1.bf16.msra.mxu0 %v1270
  %2060 = vmatprep.subr.bf16.mxu0 %v1275
  %2061 = vmatpush1.bf16.msra.mxu0 %v1274
  %2062 = vmatprep.subr.bf16.mxu0 %v1279
  %2063 = vmatpush1.bf16.msra.mxu0 %v1278
  %2064 = vmatprep.subr.bf16.mxu0 %v1283
  %2065 = vmatpush1.bf16.msra.mxu0 %v1282
  %2066 = vmatprep.subr.bf16.mxu0 %v1287
  %2067 = vmatpush1.bf16.msra.mxu0 %v1286
  %2068 = vmatprep.subr.bf16.mxu0 %v1291
  %2069 = vmatpush1.bf16.msra.mxu0 %v1290
  %2070 = vmatprep.subr.bf16.mxu0 %v1295
  %2071 = vmatpush1.bf16.msra.mxu0 %v1294
  %2072 = vmatprep.subr.bf16.mxu0 %v1299
  %2073 = vmatpush1.bf16.msra.mxu0 %v1298
  %2074 = vmatprep.subr.bf16.mxu0 %v1303
  %2075 = vmatpush1.bf16.msra.mxu0 %v1302
  %2076 = vmatprep.mubr.bf16.mxu0 %v163
  %2077 = vmatmul.mubr.bf16.gmra.mrb[0].mxu0 %v162
  %v2078 = vpop.f32.mrb[0].mxu0
  %v2079 = vadd.f32 %v463, %v2078
  %v2080 = vpop.f32.mrb[0].mxu0
  %v2081 = vadd.f32 %v467, %v2080
  %v2082 = vpop.f32.mrb[0].mxu0
  %v2083 = vadd.f32 %v463, %v2082
  %v2084 = vpop.f32.mrb[0].mxu0
  %v2085 = vadd.f32 %v467, %v2084
  %2086 = vmatprep.mubr.bf16.mxu0 %v171
  %2087 = vmatmul.mubr.bf16.gmra.mrb[0].mxu0 %v170
  %v2088 = vpop.f32.mrb[0].mxu0
  %v2089 = vadd.f32 %v463, %v2088
  %v2090 = vpop.f32.mrb[0].mxu0
  %v2091 = vadd.f32 %v467, %v2090
  %v2092 = vpop.f32.mrb[0].mxu0
  %v2093 = vadd.f32 %v463, %v2092
  %v2094 = vpop.f32.mrb[0].mxu0
  %v2095 = vadd.f32 %v467, %v2094
  %2096 = vmatprep.mubr.bf16.mxu0 %v179
  %2097 = vmatmul.mubr.bf16.gmra.mrb[0].mxu0 %v178
  %v2098 = vpop.f32.mrb[0].mxu0
  %v2099 = vadd.f32 %v463, %v2098
  %v2100 = vpop.f32.mrb[0].mxu0
  %v2101 = vadd.f32 %v467, %v2100
  %v2102 = vpop.f32.mrb[0].mxu0
  %v2103 = vadd.f32 %v463, %v2102
  %v2104 = vpop.f32.mrb[0].mxu0
  %v2105 = vadd.f32 %v467, %v2104
  %2106 = vmatprep.mubr.bf16.mxu0 %v187
  %2107 = vmatmul.mubr.bf16.gmra.mrb[0].mxu0 %v186
  %v2108 = vpop.f32.mrb[0].mxu0
  %v2109 = vadd.f32 %v463, %v2108
  %v2110 = vpop.f32.mrb[0].mxu0
  %v2111 = vadd.f32 %v467, %v2110
  %v2112 = vpop.f32.mrb[0].mxu0
  %v2113 = vadd.f32 %v463, %v2112
  %v2114 = vpop.f32.mrb[0].mxu0
  %v2115 = vadd.f32 %v467, %v2114
  %2116 = vdwg.mxu0
  %2117 = vmatprep.subr.bf16.mxu0 %v1307
  %2118 = vmatpush1.bf16.msra.mxu0 %v1306
  %2119 = vmatprep.subr.bf16.mxu0 %v1311
  %2120 = vmatpush1.bf16.msra.mxu0 %v1310
  %2121 = vmatprep.subr.bf16.mxu0 %v1315
  %2122 = vmatpush1.bf16.msra.mxu0 %v1314
  %2123 = vmatprep.subr.bf16.mxu0 %v1319
  %2124 = vmatpush1.bf16.msra.mxu0 %v1318
  %2125 = vmatprep.subr.bf16.mxu0 %v1323
  %2126 = vmatpush1.bf16.msra.mxu0 %v1322
  %2127 = vmatprep.subr.bf16.mxu0 %v1327
  %2128 = vmatpush1.bf16.msra.mxu0 %v1326
  %2129 = vmatprep.subr.bf16.mxu0 %v1331
  %2130 = vmatpush1.bf16.msra.mxu0 %v1330
  %2131 = vmatprep.subr.bf16.mxu0 %v1335
  %2132 = vmatpush1.bf16.msra.mxu0 %v1334
  %2133 = vmatprep.subr.bf16.mxu0 %v1339
  %2134 = vmatpush1.bf16.msra.mxu0 %v1338
  %2135 = vmatprep.subr.bf16.mxu0 %v1343
  %2136 = vmatpush1.bf16.msra.mxu0 %v1342
  %2137 = vmatprep.subr.bf16.mxu0 %v1347
  %2138 = vmatpush1.bf16.msra.mxu0 %v1346
  %2139 = vmatprep.subr.bf16.mxu0 %v1351
  %2140 = vmatpush1.bf16.msra.mxu0 %v1350
  %2141 = vmatprep.subr.bf16.mxu0 %v1355
  %2142 = vmatpush1.bf16.msra.mxu0 %v1354
  %2143 = vmatprep.subr.bf16.mxu0 %v1359
  %2144 = vmatpush1.bf16.msra.mxu0 %v1358
  %2145 = vmatprep.subr.bf16.mxu0 %v1363
  %2146 = vmatpush1.bf16.msra.mxu0 %v1362
  %2147 = vmatprep.subr.bf16.mxu0 %v1367
  %2148 = vmatpush1.bf16.msra.mxu0 %v1366
  %2149 = vmatprep.mubr.bf16.mxu0 %v165
  %2150 = vmatmul.mubr.bf16.gmra.mrb[0].mxu0 %v164
  %v2151 = vpop.f32.mrb[0].mxu0
  %v2152 = vadd.f32 %v2079, %v2151
  %v2153 = vpop.f32.mrb[0].mxu0
  %v2154 = vadd.f32 %v2081, %v2153
  %v2155 = vpop.f32.mrb[0].mxu0
  %v2156 = vadd.f32 %v2083, %v2155
  %v2157 = vpop.f32.mrb[0].mxu0
  %v2158 = vadd.f32 %v2085, %v2157
  %2159 = vmatprep.mubr.bf16.mxu0 %v173
  %2160 = vmatmul.mubr.bf16.gmra.mrb[0].mxu0 %v172
  %v2161 = vpop.f32.mrb[0].mxu0
  %v2162 = vadd.f32 %v2089, %v2161
  %v2163 = vpop.f32.mrb[0].mxu0
  %v2164 = vadd.f32 %v2091, %v2163
  %v2165 = vpop.f32.mrb[0].mxu0
  %v2166 = vadd.f32 %v2093, %v2165
  %v2167 = vpop.f32.mrb[0].mxu0
  %v2168 = vadd.f32 %v2095, %v2167
  %2169 = vmatprep.mubr.bf16.mxu0 %v181
  %2170 = vmatmul.mubr.bf16.gmra.mrb[0].mxu0 %v180
  %v2171 = vpop.f32.mrb[0].mxu0
  %v2172 = vadd.f32 %v2099, %v2171
  %v2173 = vpop.f32.mrb[0].mxu0
  %v2174 = vadd.f32 %v2101, %v2173
  %v2175 = vpop.f32.mrb[0].mxu0
  %v2176 = vadd.f32 %v2103, %v2175
  %v2177 = vpop.f32.mrb[0].mxu0
  %v2178 = vadd.f32 %v2105, %v2177
  %2179 = vmatprep.mubr.bf16.mxu0 %v189
  %2180 = vmatmul.mubr.bf16.gmra.mrb[0].mxu0 %v188
  %v2181 = vpop.f32.mrb[0].mxu0
  %v2182 = vadd.f32 %v2109, %v2181
  %v2183 = vpop.f32.mrb[0].mxu0
  %v2184 = vadd.f32 %v2111, %v2183
  %v2185 = vpop.f32.mrb[0].mxu0
  %v2186 = vadd.f32 %v2113, %v2185
  %v2187 = vpop.f32.mrb[0].mxu0
  %v2188 = vadd.f32 %v2115, %v2187
  %2189 = vdwg.mxu0
  %2190 = vmatprep.subr.bf16.mxu0 %v1371
  %2191 = vmatpush1.bf16.msra.mxu0 %v1370
  %2192 = vmatprep.subr.bf16.mxu0 %v1375
  %2193 = vmatpush1.bf16.msra.mxu0 %v1374
  %2194 = vmatprep.subr.bf16.mxu0 %v1379
  %2195 = vmatpush1.bf16.msra.mxu0 %v1378
  %2196 = vmatprep.subr.bf16.mxu0 %v1383
  %2197 = vmatpush1.bf16.msra.mxu0 %v1382
  %2198 = vmatprep.subr.bf16.mxu0 %v1387
  %2199 = vmatpush1.bf16.msra.mxu0 %v1386
  %2200 = vmatprep.subr.bf16.mxu0 %v1391
  %2201 = vmatpush1.bf16.msra.mxu0 %v1390
  %2202 = vmatprep.subr.bf16.mxu0 %v1395
  %2203 = vmatpush1.bf16.msra.mxu0 %v1394
  %2204 = vmatprep.subr.bf16.mxu0 %v1399
  %2205 = vmatpush1.bf16.msra.mxu0 %v1398
  %2206 = vmatprep.subr.bf16.mxu0 %v1403
  %2207 = vmatpush1.bf16.msra.mxu0 %v1402
  %2208 = vmatprep.subr.bf16.mxu0 %v1407
  %2209 = vmatpush1.bf16.msra.mxu0 %v1406
  %2210 = vmatprep.subr.bf16.mxu0 %v1411
  %2211 = vmatpush1.bf16.msra.mxu0 %v1410
  %2212 = vmatprep.subr.bf16.mxu0 %v1415
  %2213 = vmatpush1.bf16.msra.mxu0 %v1414
  %2214 = vmatprep.subr.bf16.mxu0 %v1419
  %2215 = vmatpush1.bf16.msra.mxu0 %v1418
  %2216 = vmatprep.subr.bf16.mxu0 %v1423
  %2217 = vmatpush1.bf16.msra.mxu0 %v1422
  %2218 = vmatprep.subr.bf16.mxu0 %v1427
  %2219 = vmatpush1.bf16.msra.mxu0 %v1426
  %2220 = vmatprep.subr.bf16.mxu0 %v1431
  %2221 = vmatpush1.bf16.msra.mxu0 %v1430
  %2222 = vmatprep.mubr.bf16.mxu0 %v167
  %2223 = vmatmul.mubr.bf16.gmra.mrb[0].mxu0 %v166
  %v2224 = vpop.f32.mrb[0].mxu0
  %v2225 = vadd.f32 %v2152, %v2224
  %v2226 = vpop.f32.mrb[0].mxu0
  %v2227 = vadd.f32 %v2154, %v2226
  %v2228 = vpop.f32.mrb[0].mxu0
  %v2229 = vadd.f32 %v2156, %v2228
  %v2230 = vpop.f32.mrb[0].mxu0
  %v2231 = vadd.f32 %v2158, %v2230
  %2232 = vmatprep.mubr.bf16.mxu0 %v175
  %2233 = vmatmul.mubr.bf16.gmra.mrb[0].mxu0 %v174
  %v2234 = vpop.f32.mrb[0].mxu0
  %v2235 = vadd.f32 %v2162, %v2234
  %v2236 = vpop.f32.mrb[0].mxu0
  %v2237 = vadd.f32 %v2164, %v2236
  %v2238 = vpop.f32.mrb[0].mxu0
  %v2239 = vadd.f32 %v2166, %v2238
  %v2240 = vpop.f32.mrb[0].mxu0
  %v2241 = vadd.f32 %v2168, %v2240
  %2242 = vmatprep.mubr.bf16.mxu0 %v183
  %2243 = vmatmul.mubr.bf16.gmra.mrb[0].mxu0 %v182
  %v2244 = vpop.f32.mrb[0].mxu0
  %v2245 = vadd.f32 %v2172, %v2244
  %v2246 = vpop.f32.mrb[0].mxu0
  %v2247 = vadd.f32 %v2174, %v2246
  %v2248 = vpop.f32.mrb[0].mxu0
  %v2249 = vadd.f32 %v2176, %v2248
  %v2250 = vpop.f32.mrb[0].mxu0
  %v2251 = vadd.f32 %v2178, %v2250
  %2252 = vmatprep.mubr.bf16.mxu0 %v191
  %2253 = vmatmul.mubr.bf16.gmra.mrb[0].mxu0 %v190
  %v2254 = vpop.f32.mrb[0].mxu0
  %v2255 = vadd.f32 %v2182, %v2254
  %v2256 = vpop.f32.mrb[0].mxu0
  %v2257 = vadd.f32 %v2184, %v2256
  %v2258 = vpop.f32.mrb[0].mxu0
  %v2259 = vadd.f32 %v2186, %v2258
  %v2260 = vpop.f32.mrb[0].mxu0
  %v2261 = vadd.f32 %v2188, %v2260
  %2262 = vdwg.mxu0
  %2263 = vmatprep.subr.bf16.mxu0 %v1435
  %2264 = vmatpush1.bf16.msra.mxu0 %v1434
  %2265 = vmatprep.subr.bf16.mxu0 %v1439
  %2266 = vmatpush1.bf16.msra.mxu0 %v1438
  %2267 = vmatprep.subr.bf16.mxu0 %v1443
  %2268 = vmatpush1.bf16.msra.mxu0 %v1442
  %2269 = vmatprep.subr.bf16.mxu0 %v1447
  %2270 = vmatpush1.bf16.msra.mxu0 %v1446
  %2271 = vmatprep.subr.bf16.mxu0 %v1451
  %2272 = vmatpush1.bf16.msra.mxu0 %v1450
  %2273 = vmatprep.subr.bf16.mxu0 %v1455
  %2274 = vmatpush1.bf16.msra.mxu0 %v1454
  %2275 = vmatprep.subr.bf16.mxu0 %v1459
  %2276 = vmatpush1.bf16.msra.mxu0 %v1458
  %2277 = vmatprep.subr.bf16.mxu0 %v1463
  %2278 = vmatpush1.bf16.msra.mxu0 %v1462
  %2279 = vmatprep.subr.bf16.mxu0 %v1467
  %2280 = vmatpush1.bf16.msra.mxu0 %v1466
  %2281 = vmatprep.subr.bf16.mxu0 %v1471
  %2282 = vmatpush1.bf16.msra.mxu0 %v1470
  %2283 = vmatprep.subr.bf16.mxu0 %v1475
  %2284 = vmatpush1.bf16.msra.mxu0 %v1474
  %2285 = vmatprep.subr.bf16.mxu0 %v1479
  %2286 = vmatpush1.bf16.msra.mxu0 %v1478
  %2287 = vmatprep.subr.bf16.mxu0 %v1483
  %2288 = vmatpush1.bf16.msra.mxu0 %v1482
  %2289 = vmatprep.subr.bf16.mxu0 %v1487
  %2290 = vmatpush1.bf16.msra.mxu0 %v1486
  %2291 = vmatprep.subr.bf16.mxu0 %v1491
  %2292 = vmatpush1.bf16.msra.mxu0 %v1490
  %2293 = vmatprep.subr.bf16.mxu0 %v1495
  %2294 = vmatpush1.bf16.msra.mxu0 %v1494
  %2295 = vmatprep.mubr.bf16.mxu0 %v169
  %2296 = vmatmul.mubr.bf16.gmra.mrb[0].mxu0 %v168
  %v2297 = vpop.f32.mrb[0].mxu0
  %v2298 = vadd.f32 %v2225, %v2297
  %v2299 = vpop.f32.mrb[0].mxu0
  %v2300 = vadd.f32 %v2227, %v2299
  %v2301 = vpop.f32.mrb[0].mxu0
  %v2302 = vadd.f32 %v2229, %v2301
  %v2303 = vpop.f32.mrb[0].mxu0
  %v2304 = vadd.f32 %v2231, %v2303
  %2305 = vmatprep.mubr.bf16.mxu0 %v177
  %2306 = vmatmul.mubr.bf16.gmra.mrb[0].mxu0 %v176
  %v2307 = vpop.f32.mrb[0].mxu0
  %v2308 = vadd.f32 %v2235, %v2307
  %v2309 = vpop.f32.mrb[0].mxu0
  %v2310 = vadd.f32 %v2237, %v2309
  %v2311 = vpop.f32.mrb[0].mxu0
  %v2312 = vadd.f32 %v2239, %v2311
  %v2313 = vpop.f32.mrb[0].mxu0
  %v2314 = vadd.f32 %v2241, %v2313
  %2315 = vmatprep.mubr.bf16.mxu0 %v185
  %2316 = vmatmul.mubr.bf16.gmra.mrb[0].mxu0 %v184
  %v2317 = vpop.f32.mrb[0].mxu0
  %v2318 = vadd.f32 %v2245, %v2317
  %v2319 = vpop.f32.mrb[0].mxu0
  %v2320 = vadd.f32 %v2247, %v2319
  %v2321 = vpop.f32.mrb[0].mxu0
  %v2322 = vadd.f32 %v2249, %v2321
  %v2323 = vpop.f32.mrb[0].mxu0
  %v2324 = vadd.f32 %v2251, %v2323
  %2325 = vmatprep.mubr.bf16.mxu0 %v193
  %2326 = vmatmul.mubr.bf16.gmra.mrb[0].mxu0 %v192
  %v2327 = vpop.f32.mrb[0].mxu0
  %v2328 = vadd.f32 %v2255, %v2327
  %v2329 = vpop.f32.mrb[0].mxu0
  %v2330 = vadd.f32 %v2257, %v2329
  %v2331 = vpop.f32.mrb[0].mxu0
  %v2332 = vadd.f32 %v2259, %v2331
  %v2333 = vpop.f32.mrb[0].mxu0
  %v2334 = vadd.f32 %v2261, %v2333
  %2335 = vdwg.mxu0
  %v2336 = vmax.f32 %v2006, 0.0
  %v2337 = vmax.f32 %v2008, 0.0
  %v2338 = vmax.f32 %v2298, 0.0
  %v2339 = vmax.f32 %v2300, 0.0
  %v2340 = vmax.f32 %v2010, 0.0
  %v2341 = vmax.f32 %v2012, 0.0
  %v2342 = vmax.f32 %v2302, 0.0
  %v2343 = vmax.f32 %v2304, 0.0
  %v2344 = vmax.f32 %v2016, 0.0
  %v2345 = vmax.f32 %v2018, 0.0
  %v2346 = vmax.f32 %v2308, 0.0
  %v2347 = vmax.f32 %v2310, 0.0
  %v2348 = vmax.f32 %v2020, 0.0
  %v2349 = vmax.f32 %v2022, 0.0
  %v2350 = vmax.f32 %v2312, 0.0
  %v2351 = vmax.f32 %v2314, 0.0
  %v2352 = vmax.f32 %v2026, 0.0
  %v2353 = vmax.f32 %v2028, 0.0
  %v2354 = vmax.f32 %v2318, 0.0
  %v2355 = vmax.f32 %v2320, 0.0
  %v2356 = vmax.f32 %v2030, 0.0
  %v2357 = vmax.f32 %v2032, 0.0
  %v2358 = vmax.f32 %v2322, 0.0
  %v2359 = vmax.f32 %v2324, 0.0
  %v2360 = vmax.f32 %v2036, 0.0
  %v2361 = vmax.f32 %v2038, 0.0
  %v2362 = vmax.f32 %v2328, 0.0
  %v2363 = vmax.f32 %v2330, 0.0
  %v2364 = vmax.f32 %v2040, 0.0
  %v2365 = vmax.f32 %v2042, 0.0
  %v2366 = vmax.f32 %v2332, 0.0
  %v2367 = vmax.f32 %v2334, 0.0
  %v2368 = vpack.c.bf16 %v2340, %v2336
  %v2369 = vpack.c.bf16 %v2341, %v2337
  %v2370 = vpack.c.bf16 %v2342, %v2338
  %v2371 = vpack.c.bf16 %v2343, %v2339
  %v2372 = vpack.c.bf16 %v2348, %v2344
  %v2373 = vpack.c.bf16 %v2349, %v2345
  %v2374 = vpack.c.bf16 %v2350, %v2346
  %v2375 = vpack.c.bf16 %v2351, %v2347
  %v2376 = vpack.c.bf16 %v2356, %v2352
  %v2377 = vpack.c.bf16 %v2357, %v2353
  %v2378 = vpack.c.bf16 %v2358, %v2354
  %v2379 = vpack.c.bf16 %v2359, %v2355
  %v2380 = vpack.c.bf16 %v2364, %v2360
  %v2381 = vpack.c.bf16 %v2365, %v2361
  %v2382 = vpack.c.bf16 %v2366, %v2362
  %v2383 = vpack.c.bf16 %v2367, %v2363
  %v2384 = vld [vmem:[%s4] sm:$0xff]
  %v2385 = vld [vmem:[%s4 + $0x8] sm:$0xff]
  %v2386 = vld [vmem:[%s4 + $0x10] sm:$0xf]
  %v2387 = vld [vmem:[%s4 + $0x14] sm:$0xff]
  %v2388 = vld [vmem:[%s4 + $0x1c] sm:$0xff]
  %v2389 = vld [vmem:[%s4 + $0x24] sm:$0xf]
  %v2390 = vld [vmem:[%s4 + $0x28] sm:$0xff]
  %v2391 = vld [vmem:[%s4 + $0x30] sm:$0xff]
  %v2392 = vld [vmem:[%s4 + $0x38] sm:$0xf]
  %v2393 = vld [vmem:[%s4 + $0x3c] sm:$0xff]
  %v2394 = vld [vmem:[%s4 + $0x44] sm:$0xff]
  %v2395 = vld [vmem:[%s4 + $0x4c] sm:$0xf]
  %v2396 = vld [vmem:[%s4 + $0x50] sm:$0xff]
  %v2397 = vld [vmem:[%s4 + $0x58] sm:$0xff]
  %v2398 = vld [vmem:[%s4 + $0x60] sm:$0xf]
  %v2399 = vld [vmem:[%s4 + $0x64] sm:$0xff]
  %v2400 = vld [vmem:[%s4 + $0x6c] sm:$0xff]
  %v2401 = vld [vmem:[%s4 + $0x74] sm:$0xf]
  %v2402 = vld [vmem:[%s4 + $0x78] sm:$0xff]
  %v2403 = vld [vmem:[%s4 + $0x80] sm:$0xff]
  %v2404 = vld [vmem:[%s4 + $0x88] sm:$0xf]
  %v2405 = vld [vmem:[%s4 + $0x8c] sm:$0xff]
  %v2406 = vld [vmem:[%s4 + $0x94] sm:$0xff]
  %v2407 = vld [vmem:[%s4 + $0x9c] sm:$0xf]
  %v2408 = vld [vmem:[%s4 + $0xa0] sm:$0xff]
  %v2409 = vld [vmem:[%s4 + $0xa8] sm:$0xff]
  %v2410 = vld [vmem:[%s4 + $0xb0] sm:$0xf]
  %v2411 = vld [vmem:[%s4 + $0xb4] sm:$0xff]
  %v2412 = vld [vmem:[%s4 + $0xbc] sm:$0xff]
  %v2413 = vld [vmem:[%s4 + $0xc4] sm:$0xf]
  %v2414 = vld [vmem:[%s4 + $0xc8] sm:$0xff]
  %v2415 = vld [vmem:[%s4 + $0xd0] sm:$0xff]
  %v2416 = vld [vmem:[%s4 + $0xd8] sm:$0xf]
  %v2417 = vld [vmem:[%s4 + $0xdc] sm:$0xff]
  %v2418 = vld [vmem:[%s4 + $0xe4] sm:$0xff]
  %v2419 = vld [vmem:[%s4 + $0xec] sm:$0xf]
  %v2420 = vld [vmem:[%s4 + $0xf0] sm:$0xff]
  %v2421 = vld [vmem:[%s4 + $0xf8] sm:$0xff]
  %v2422 = vld [vmem:[%s4 + $0x100] sm:$0xf]
  %v2423 = vld [vmem:[%s4 + $0x104] sm:$0xff]
  %v2424 = vld [vmem:[%s4 + $0x10c] sm:$0xff]
  %v2425 = vld [vmem:[%s4 + $0x114] sm:$0xf]
  %v2426 = vld [vmem:[%s4 + $0x118] sm:$0xff]
  %v2427 = vld [vmem:[%s4 + $0x120] sm:$0xff]
  %v2428 = vld [vmem:[%s4 + $0x128] sm:$0xf]
  %v2429 = vld [vmem:[%s4 + $0x12c] sm:$0xff]
  %v2430 = vld [vmem:[%s4 + $0x134] sm:$0xff]
  %v2431 = vld [vmem:[%s4 + $0x13c] sm:$0xf]
  %v2432 = vld [vmem:[%s4 + $0x140] sm:$0xff]
  %v2433 = vld [vmem:[%s4 + $0x148] sm:$0xff]
  %v2434 = vld [vmem:[%s4 + $0x150] sm:$0xf]
  %v2435 = vld [vmem:[%s4 + $0x154] sm:$0xff]
  %v2436 = vld [vmem:[%s4 + $0x15c] sm:$0xff]
  %v2437 = vld [vmem:[%s4 + $0x164] sm:$0xf]
  %v2438 = vld [vmem:[%s4 + $0x168] sm:$0xff]
  %v2439 = vld [vmem:[%s4 + $0x170] sm:$0xff]
  %v2440 = vld [vmem:[%s4 + $0x178] sm:$0xf]
  %v2441 = vld [vmem:[%s4 + $0x17c] sm:$0xff]
  %v2442 = vld [vmem:[%s4 + $0x184] sm:$0xff]
  %v2443 = vld [vmem:[%s4 + $0x18c] sm:$0xf]
  %v2444 = vld [vmem:[%s4 + $0x190] sm:$0xff]
  %v2445 = vld [vmem:[%s4 + $0x198] sm:$0xff]
  %v2446 = vld [vmem:[%s4 + $0x1a0] sm:$0xf]
  %v2447 = vld [vmem:[%s4 + $0x1a4] sm:$0xff]
  %v2448 = vld [vmem:[%s4 + $0x1ac] sm:$0xff]
  %v2449 = vld [vmem:[%s4 + $0x1b4] sm:$0xf]
  %v2450 = vld [vmem:[%s4 + $0x1b8] sm:$0xff]
  %v2451 = vld [vmem:[%s4 + $0x1c0] sm:$0xff]
  %v2452 = vld [vmem:[%s4 + $0x1c8] sm:$0xf]
  %v2453 = vld [vmem:[%s4 + $0x1cc] sm:$0xff]
  %v2454 = vld [vmem:[%s4 + $0x1d4] sm:$0xff]
  %v2455 = vld [vmem:[%s4 + $0x1dc] sm:$0xf]
  %v2456 = vld [vmem:[%s4 + $0x1e0] sm:$0xff]
  %v2457 = vld [vmem:[%s4 + $0x1e8] sm:$0xff]
  %v2458 = vld [vmem:[%s4 + $0x1f0] sm:$0xf]
  %v2459 = vld [vmem:[%s4 + $0x1f4] sm:$0xff]
  %v2460 = vld [vmem:[%s4 + $0x1fc] sm:$0xff]
  %v2461 = vld [vmem:[%s4 + $0x204] sm:$0xf]
  %v2462 = vld [vmem:[%s4 + $0x208] sm:$0xff]
  %v2463 = vld [vmem:[%s4 + $0x210] sm:$0xff]
  %v2464 = vld [vmem:[%s4 + $0x218] sm:$0xf]
  %v2465 = vld [vmem:[%s4 + $0x21c] sm:$0xff]
  %v2466 = vld [vmem:[%s4 + $0x224] sm:$0xff]
  %v2467 = vld [vmem:[%s4 + $0x22c] sm:$0xf]
  %v2468 = vld [vmem:[%s4 + $0x230] sm:$0xff]
  %v2469 = vld [vmem:[%s4 + $0x238] sm:$0xff]
  %v2470 = vld [vmem:[%s4 + $0x240] sm:$0xf]
  %v2471 = vld [vmem:[%s4 + $0x244] sm:$0xff]
  %v2472 = vld [vmem:[%s4 + $0x24c] sm:$0xff]
  %v2473 = vld [vmem:[%s4 + $0x254] sm:$0xf]
  %v2474 = vld [vmem:[%s4 + $0x258] sm:$0xff]
  %v2475 = vld [vmem:[%s4 + $0x260] sm:$0xff]
  %v2476 = vld [vmem:[%s4 + $0x268] sm:$0xf]
  %v2477 = vld [vmem:[%s4 + $0x26c] sm:$0xff]
  %v2478 = vld [vmem:[%s4 + $0x274] sm:$0xff]
  %v2479 = vld [vmem:[%s4 + $0x27c] sm:$0xf]
  %v2480 = vld [vmem:[%s4 + $0x280] sm:$0xff]
  %v2481 = vld [vmem:[%s4 + $0x288] sm:$0xff]
  %v2482 = vld [vmem:[%s4 + $0x290] sm:$0xf]
  %v2483 = vld [vmem:[%s4 + $0x294] sm:$0xff]
  %v2484 = vld [vmem:[%s4 + $0x29c] sm:$0xff]
  %v2485 = vld [vmem:[%s4 + $0x2a4] sm:$0xf]
  %v2486 = vld [vmem:[%s4 + $0x2a8] sm:$0xff]
  %v2487 = vld [vmem:[%s4 + $0x2b0] sm:$0xff]
  %v2488 = vld [vmem:[%s4 + $0x2b8] sm:$0xf]
  %v2489 = vld [vmem:[%s4 + $0x2bc] sm:$0xff]
  %v2490 = vld [vmem:[%s4 + $0x2c4] sm:$0xff]
  %v2491 = vld [vmem:[%s4 + $0x2cc] sm:$0xf]
  %v2492 = vld [vmem:[%s4 + $0x2d0] sm:$0xff]
  %v2493 = vld [vmem:[%s4 + $0x2d8] sm:$0xff]
  %v2494 = vld [vmem:[%s4 + $0x2e0] sm:$0xf]
  %v2495 = vld [vmem:[%s4 + $0x2e4] sm:$0xff]
  %v2496 = vld [vmem:[%s4 + $0x2ec] sm:$0xff]
  %v2497 = vld [vmem:[%s4 + $0x2f4] sm:$0xf]
  %v2498 = vld [vmem:[%s4 + $0x2f8] sm:$0xff]
  %v2499 = vld [vmem:[%s4 + $0x300] sm:$0xff]
  %v2500 = vld [vmem:[%s4 + $0x308] sm:$0xf]
  %v2501 = vld [vmem:[%s4 + $0x30c] sm:$0xff]
  %v2502 = vld [vmem:[%s4 + $0x314] sm:$0xff]
  %v2503 = vld [vmem:[%s4 + $0x31c] sm:$0xf]
  %v2504 = vld [vmem:[%s4 + $0x320] sm:$0xff]
  %v2505 = vld [vmem:[%s4 + $0x328] sm:$0xff]
  %v2506 = vld [vmem:[%s4 + $0x330] sm:$0xf]
  %v2507 = vld [vmem:[%s4 + $0x334] sm:$0xff]
  %v2508 = vld [vmem:[%s4 + $0x33c] sm:$0xff]
  %v2509 = vld [vmem:[%s4 + $0x344] sm:$0xf]
  %v2510 = vld [vmem:[%s4 + $0x348] sm:$0xff]
  %v2511 = vld [vmem:[%s4 + $0x350] sm:$0xff]
  %v2512 = vld [vmem:[%s4 + $0x358] sm:$0xf]
  %v2513 = vld [vmem:[%s4 + $0x35c] sm:$0xff]
  %v2514 = vld [vmem:[%s4 + $0x364] sm:$0xff]
  %v2515 = vld [vmem:[%s4 + $0x36c] sm:$0xf]
  %v2516 = vld [vmem:[%s4 + $0x370] sm:$0xff]
  %v2517 = vld [vmem:[%s4 + $0x378] sm:$0xff]
  %v2518 = vld [vmem:[%s4 + $0x380] sm:$0xf]
  %v2519 = vld [vmem:[%s4 + $0x384] sm:$0xff]
  %v2520 = vld [vmem:[%s4 + $0x38c] sm:$0xff]
  %v2521 = vld [vmem:[%s4 + $0x394] sm:$0xf]
  %v2522 = vld [vmem:[%s4 + $0x398] sm:$0xff]
  %v2523 = vld [vmem:[%s4 + $0x3a0] sm:$0xff]
  %v2524 = vld [vmem:[%s4 + $0x3a8] sm:$0xf]
  %v2525 = vld [vmem:[%s4 + $0x3ac] sm:$0xff]
  %v2526 = vld [vmem:[%s4 + $0x3b4] sm:$0xff]
  %v2527 = vld [vmem:[%s4 + $0x3bc] sm:$0xf]
  %v2528 = vld [vmem:[%s4 + $0x3c0] sm:$0xff]
  %v2529 = vld [vmem:[%s4 + $0x3c8] sm:$0xff]
  %v2530 = vld [vmem:[%s4 + $0x3d0] sm:$0xf]
  %v2531 = vld [vmem:[%s4 + $0x3d4] sm:$0xff]
  %v2532 = vld [vmem:[%s4 + $0x3dc] sm:$0xff]
  %v2533 = vld [vmem:[%s4 + $0x3e4] sm:$0xf]
  %v2534 = vld [vmem:[%s4 + $0x3e8] sm:$0xff]
  %v2535 = vld [vmem:[%s4 + $0x3f0] sm:$0xff]
  %v2536 = vld [vmem:[%s4 + $0x3f8] sm:$0xf]
  %v2537 = vld [vmem:[%s4 + $0x3fc] sm:$0xff]
  %v2538 = vld [vmem:[%s4 + $0x404] sm:$0xff]
  %v2539 = vld [vmem:[%s4 + $0x40c] sm:$0xf]
  %v2540 = vld [vmem:[%s4 + $0x410] sm:$0xff]
  %v2541 = vld [vmem:[%s4 + $0x418] sm:$0xff]
  %v2542 = vld [vmem:[%s4 + $0x420] sm:$0xf]
  %v2543 = vld [vmem:[%s4 + $0x424] sm:$0xff]
  %v2544 = vld [vmem:[%s4 + $0x42c] sm:$0xff]
  %v2545 = vld [vmem:[%s4 + $0x434] sm:$0xf]
  %v2546 = vld [vmem:[%s4 + $0x438] sm:$0xff]
  %v2547 = vld [vmem:[%s4 + $0x440] sm:$0xff]
  %v2548 = vld [vmem:[%s4 + $0x448] sm:$0xf]
  %v2549 = vld [vmem:[%s4 + $0x44c] sm:$0xff]
  %v2550 = vld [vmem:[%s4 + $0x454] sm:$0xff]
  %v2551 = vld [vmem:[%s4 + $0x45c] sm:$0xf]
  %v2552 = vld [vmem:[%s4 + $0x460] sm:$0xff]
  %v2553 = vld [vmem:[%s4 + $0x468] sm:$0xff]
  %v2554 = vld [vmem:[%s4 + $0x470] sm:$0xf]
  %v2555 = vld [vmem:[%s4 + $0x474] sm:$0xff]
  %v2556 = vld [vmem:[%s4 + $0x47c] sm:$0xff]
  %v2557 = vld [vmem:[%s4 + $0x484] sm:$0xf]
  %v2558 = vld [vmem:[%s4 + $0x488] sm:$0xff]
  %v2559 = vld [vmem:[%s4 + $0x490] sm:$0xff]
  %v2560 = vld [vmem:[%s4 + $0x498] sm:$0xf]
  %v2561 = vld [vmem:[%s4 + $0x49c] sm:$0xff]
  %v2562 = vld [vmem:[%s4 + $0x4a4] sm:$0xff]
  %v2563 = vld [vmem:[%s4 + $0x4ac] sm:$0xf]
  %v2564 = vld [vmem:[%s4 + $0x4b0] sm:$0xff]
  %v2565 = vld [vmem:[%s4 + $0x4b8] sm:$0xff]
  %v2566 = vld [vmem:[%s4 + $0x4c0] sm:$0xf]
  %v2567 = vld [vmem:[%s4 + $0x4c4] sm:$0xff]
  %v2568 = vld [vmem:[%s4 + $0x4cc] sm:$0xff]
  %v2569 = vld [vmem:[%s4 + $0x4d4] sm:$0xf]
  %v2570 = vld [vmem:[%s4 + $0x4d8] sm:$0xff]
  %v2571 = vld [vmem:[%s4 + $0x4e0] sm:$0xff]
  %v2572 = vld [vmem:[%s4 + $0x4e8] sm:$0xf]
  %v2573 = vld [vmem:[%s4 + $0x4ec] sm:$0xff]
  %v2574 = vld [vmem:[%s4 + $0x4f4] sm:$0xff]
  %v2575 = vld [vmem:[%s4 + $0x4fc] sm:$0xf]
  %v2576 = vld [vmem:[%s5] sm:$0x1f]
  %v2578 = vlaneseq
  %v2579 = vshrl.u32 %v2578, 7
  %v2580 = vsub.s32 0, %v2579
  %v2581 = vrot.slane %v2576, %v2580
  %v2582 = vlaneseq
  %v2583 = vshrl.u32 %v2582, 7
  %v2584 = vsub.s32 1, %v2583
  %v2585 = vrot.slane %v2576, %v2584
  %v2586 = vlaneseq
  %v2587 = vshrl.u32 %v2586, 7
  %v2588 = vsub.s32 2, %v2587
  %v2589 = vrot.slane %v2576, %v2588
  %v2590 = vlaneseq
  %v2591 = vshrl.u32 %v2590, 7
  %v2592 = vsub.s32 3, %v2591
  %v2593 = vrot.slane %v2576, %v2592
  %v2594 = vlaneseq
  %v2595 = vshrl.u32 %v2594, 7
  %v2596 = vsub.s32 4, %v2595
  %v2597 = vrot.slane %v2576, %v2596
  %v2795 = vunpack.c.l.b16 %v2384
  %v2796 = vunpack.c.h.b16 %v2384
  %v2797 = vunpack.c.l.b16 %v2385
  %v2798 = vunpack.c.h.b16 %v2385
  %v2799 = vunpack.c.l.b16 %v2386
  %v2800 = vunpack.c.l.b16 %v2387
  %v2801 = vunpack.c.h.b16 %v2387
  %v2802 = vunpack.c.l.b16 %v2388
  %v2803 = vunpack.c.h.b16 %v2388
  %v2804 = vunpack.c.l.b16 %v2389
  %v2805 = vunpack.c.l.b16 %v2390
  %v2806 = vunpack.c.h.b16 %v2390
  %v2807 = vunpack.c.l.b16 %v2391
  %v2808 = vunpack.c.h.b16 %v2391
  %v2809 = vunpack.c.l.b16 %v2392
  %v2810 = vunpack.c.l.b16 %v2393
  %v2811 = vunpack.c.h.b16 %v2393
  %v2812 = vunpack.c.l.b16 %v2394
  %v2813 = vunpack.c.h.b16 %v2394
  %v2814 = vunpack.c.l.b16 %v2395
  %v2815 = vunpack.c.l.b16 %v2396
  %v2816 = vunpack.c.h.b16 %v2396
  %v2817 = vunpack.c.l.b16 %v2397
  %v2818 = vunpack.c.h.b16 %v2397
  %v2819 = vunpack.c.l.b16 %v2398
  %v2820 = vunpack.c.l.b16 %v2399
  %v2821 = vunpack.c.h.b16 %v2399
  %v2822 = vunpack.c.l.b16 %v2400
  %v2823 = vunpack.c.h.b16 %v2400
  %v2824 = vunpack.c.l.b16 %v2401
  %v2825 = vunpack.c.l.b16 %v2402
  %v2826 = vunpack.c.h.b16 %v2402
  %v2827 = vunpack.c.l.b16 %v2403
  %v2828 = vunpack.c.h.b16 %v2403
  %v2829 = vunpack.c.l.b16 %v2404
  %v2830 = vunpack.c.l.b16 %v2405
  %v2831 = vunpack.c.h.b16 %v2405
  %v2832 = vunpack.c.l.b16 %v2406
  %v2833 = vunpack.c.h.b16 %v2406
  %v2834 = vunpack.c.l.b16 %v2407
  %v2835 = vunpack.c.l.b16 %v2408
  %v2836 = vunpack.c.h.b16 %v2408
  %v2837 = vunpack.c.l.b16 %v2409
  %v2838 = vunpack.c.h.b16 %v2409
  %v2839 = vunpack.c.l.b16 %v2410
  %v2840 = vunpack.c.l.b16 %v2411
  %v2841 = vunpack.c.h.b16 %v2411
  %v2842 = vunpack.c.l.b16 %v2412
  %v2843 = vunpack.c.h.b16 %v2412
  %v2844 = vunpack.c.l.b16 %v2413
  %v2845 = vunpack.c.l.b16 %v2414
  %v2846 = vunpack.c.h.b16 %v2414
  %v2847 = vunpack.c.l.b16 %v2415
  %v2848 = vunpack.c.h.b16 %v2415
  %v2849 = vunpack.c.l.b16 %v2416
  %v2850 = vunpack.c.l.b16 %v2417
  %v2851 = vunpack.c.h.b16 %v2417
  %v2852 = vunpack.c.l.b16 %v2418
  %v2853 = vunpack.c.h.b16 %v2418
  %v2854 = vunpack.c.l.b16 %v2419
  %v2855 = vunpack.c.l.b16 %v2420
  %v2856 = vunpack.c.h.b16 %v2420
  %v2857 = vunpack.c.l.b16 %v2421
  %v2858 = vunpack.c.h.b16 %v2421
  %v2859 = vunpack.c.l.b16 %v2422
  %v2860 = vunpack.c.l.b16 %v2423
  %v2861 = vunpack.c.h.b16 %v2423
  %v2862 = vunpack.c.l.b16 %v2424
  %v2863 = vunpack.c.h.b16 %v2424
  %v2864 = vunpack.c.l.b16 %v2425
  %v2865 = vunpack.c.l.b16 %v2426
  %v2866 = vunpack.c.h.b16 %v2426
  %v2867 = vunpack.c.l.b16 %v2427
  %v2868 = vunpack.c.h.b16 %v2427
  %v2869 = vunpack.c.l.b16 %v2428
  %v2870 = vunpack.c.l.b16 %v2429
  %v2871 = vunpack.c.h.b16 %v2429
  %v2872 = vunpack.c.l.b16 %v2430
  %v2873 = vunpack.c.h.b16 %v2430
  %v2874 = vunpack.c.l.b16 %v2431
  %v2875 = vunpack.c.l.b16 %v2432
  %v2876 = vunpack.c.h.b16 %v2432
  %v2877 = vunpack.c.l.b16 %v2433
  %v2878 = vunpack.c.h.b16 %v2433
  %v2879 = vunpack.c.l.b16 %v2434
  %v2880 = vunpack.c.l.b16 %v2435
  %v2881 = vunpack.c.h.b16 %v2435
  %v2882 = vunpack.c.l.b16 %v2436
  %v2883 = vunpack.c.h.b16 %v2436
  %v2884 = vunpack.c.l.b16 %v2437
  %v2885 = vunpack.c.l.b16 %v2438
  %v2886 = vunpack.c.h.b16 %v2438
  %v2887 = vunpack.c.l.b16 %v2439
  %v2888 = vunpack.c.h.b16 %v2439
  %v2889 = vunpack.c.l.b16 %v2440
  %v2890 = vunpack.c.l.b16 %v2441
  %v2891 = vunpack.c.h.b16 %v2441
  %v2892 = vunpack.c.l.b16 %v2442
  %v2893 = vunpack.c.h.b16 %v2442
  %v2894 = vunpack.c.l.b16 %v2443
  %v2895 = vunpack.c.l.b16 %v2444
  %v2896 = vunpack.c.h.b16 %v2444
  %v2897 = vunpack.c.l.b16 %v2445
  %v2898 = vunpack.c.h.b16 %v2445
  %v2899 = vunpack.c.l.b16 %v2446
  %v2900 = vunpack.c.l.b16 %v2447
  %v2901 = vunpack.c.h.b16 %v2447
  %v2902 = vunpack.c.l.b16 %v2448
  %v2903 = vunpack.c.h.b16 %v2448
  %v2904 = vunpack.c.l.b16 %v2449
  %v2905 = vunpack.c.l.b16 %v2450
  %v2906 = vunpack.c.h.b16 %v2450
  %v2907 = vunpack.c.l.b16 %v2451
  %v2908 = vunpack.c.h.b16 %v2451
  %v2909 = vunpack.c.l.b16 %v2452
  %v2910 = vunpack.c.l.b16 %v2453
  %v2911 = vunpack.c.h.b16 %v2453
  %v2912 = vunpack.c.l.b16 %v2454
  %v2913 = vunpack.c.h.b16 %v2454
  %v2914 = vunpack.c.l.b16 %v2455
  %v2915 = vunpack.c.l.b16 %v2456
  %v2916 = vunpack.c.h.b16 %v2456
  %v2917 = vunpack.c.l.b16 %v2457
  %v2918 = vunpack.c.h.b16 %v2457
  %v2919 = vunpack.c.l.b16 %v2458
  %v2920 = vunpack.c.l.b16 %v2459
  %v2921 = vunpack.c.h.b16 %v2459
  %v2922 = vunpack.c.l.b16 %v2460
  %v2923 = vunpack.c.h.b16 %v2460
  %v2924 = vunpack.c.l.b16 %v2461
  %v2925 = vunpack.c.l.b16 %v2462
  %v2926 = vunpack.c.h.b16 %v2462
  %v2927 = vunpack.c.l.b16 %v2463
  %v2928 = vunpack.c.h.b16 %v2463
  %v2929 = vunpack.c.l.b16 %v2464
  %v2930 = vunpack.c.l.b16 %v2465
  %v2931 = vunpack.c.h.b16 %v2465
  %v2932 = vunpack.c.l.b16 %v2466
  %v2933 = vunpack.c.h.b16 %v2466
  %v2934 = vunpack.c.l.b16 %v2467
  %v2935 = vunpack.c.l.b16 %v2468
  %v2936 = vunpack.c.h.b16 %v2468
  %v2937 = vunpack.c.l.b16 %v2469
  %v2938 = vunpack.c.h.b16 %v2469
  %v2939 = vunpack.c.l.b16 %v2470
  %v2940 = vunpack.c.l.b16 %v2471
  %v2941 = vunpack.c.h.b16 %v2471
  %v2942 = vunpack.c.l.b16 %v2472
  %v2943 = vunpack.c.h.b16 %v2472
  %v2944 = vunpack.c.l.b16 %v2473
  %v2945 = vunpack.c.l.b16 %v2474
  %v2946 = vunpack.c.h.b16 %v2474
  %v2947 = vunpack.c.l.b16 %v2475
  %v2948 = vunpack.c.h.b16 %v2475
  %v2949 = vunpack.c.l.b16 %v2476
  %v2950 = vunpack.c.l.b16 %v2477
  %v2951 = vunpack.c.h.b16 %v2477
  %v2952 = vunpack.c.l.b16 %v2478
  %v2953 = vunpack.c.h.b16 %v2478
  %v2954 = vunpack.c.l.b16 %v2479
  %v2955 = vunpack.c.l.b16 %v2480
  %v2956 = vunpack.c.h.b16 %v2480
  %v2957 = vunpack.c.l.b16 %v2481
  %v2958 = vunpack.c.h.b16 %v2481
  %v2959 = vunpack.c.l.b16 %v2482
  %v2960 = vunpack.c.l.b16 %v2483
  %v2961 = vunpack.c.h.b16 %v2483
  %v2962 = vunpack.c.l.b16 %v2484
  %v2963 = vunpack.c.h.b16 %v2484
  %v2964 = vunpack.c.l.b16 %v2485
  %v2965 = vunpack.c.l.b16 %v2486
  %v2966 = vunpack.c.h.b16 %v2486
  %v2967 = vunpack.c.l.b16 %v2487
  %v2968 = vunpack.c.h.b16 %v2487
  %v2969 = vunpack.c.l.b16 %v2488
  %v2970 = vunpack.c.l.b16 %v2489
  %v2971 = vunpack.c.h.b16 %v2489
  %v2972 = vunpack.c.l.b16 %v2490
  %v2973 = vunpack.c.h.b16 %v2490
  %v2974 = vunpack.c.l.b16 %v2491
  %v2975 = vunpack.c.l.b16 %v2492
  %v2976 = vunpack.c.h.b16 %v2492
  %v2977 = vunpack.c.l.b16 %v2493
  %v2978 = vunpack.c.h.b16 %v2493
  %v2979 = vunpack.c.l.b16 %v2494
  %v2980 = vunpack.c.l.b16 %v2495
  %v2981 = vunpack.c.h.b16 %v2495
  %v2982 = vunpack.c.l.b16 %v2496
  %v2983 = vunpack.c.h.b16 %v2496
  %v2984 = vunpack.c.l.b16 %v2497
  %v2985 = vunpack.c.l.b16 %v2498
  %v2986 = vunpack.c.h.b16 %v2498
  %v2987 = vunpack.c.l.b16 %v2499
  %v2988 = vunpack.c.h.b16 %v2499
  %v2989 = vunpack.c.l.b16 %v2500
  %v2990 = vunpack.c.l.b16 %v2501
  %v2991 = vunpack.c.h.b16 %v2501
  %v2992 = vunpack.c.l.b16 %v2502
  %v2993 = vunpack.c.h.b16 %v2502
  %v2994 = vunpack.c.l.b16 %v2503
  %v2995 = vunpack.c.l.b16 %v2504
  %v2996 = vunpack.c.h.b16 %v2504
  %v2997 = vunpack.c.l.b16 %v2505
  %v2998 = vunpack.c.h.b16 %v2505
  %v2999 = vunpack.c.l.b16 %v2506
  %v3000 = vunpack.c.l.b16 %v2507
  %v3001 = vunpack.c.h.b16 %v2507
  %v3002 = vunpack.c.l.b16 %v2508
  %v3003 = vunpack.c.h.b16 %v2508
  %v3004 = vunpack.c.l.b16 %v2509
  %v3005 = vunpack.c.l.b16 %v2510
  %v3006 = vunpack.c.h.b16 %v2510
  %v3007 = vunpack.c.l.b16 %v2511
  %v3008 = vunpack.c.h.b16 %v2511
  %v3009 = vunpack.c.l.b16 %v2512
  %v3010 = vunpack.c.l.b16 %v2513
  %v3011 = vunpack.c.h.b16 %v2513
  %v3012 = vunpack.c.l.b16 %v2514
  %v3013 = vunpack.c.h.b16 %v2514
  %v3014 = vunpack.c.l.b16 %v2515
  %v3015 = vunpack.c.l.b16 %v2516
  %v3016 = vunpack.c.h.b16 %v2516
  %v3017 = vunpack.c.l.b16 %v2517
  %v3018 = vunpack.c.h.b16 %v2517
  %v3019 = vunpack.c.l.b16 %v2518
  %v3020 = vunpack.c.l.b16 %v2519
  %v3021 = vunpack.c.h.b16 %v2519
  %v3022 = vunpack.c.l.b16 %v2520
  %v3023 = vunpack.c.h.b16 %v2520
  %v3024 = vunpack.c.l.b16 %v2521
  %v3025 = vunpack.c.l.b16 %v2522
  %v3026 = vunpack.c.h.b16 %v2522
  %v3027 = vunpack.c.l.b16 %v2523
  %v3028 = vunpack.c.h.b16 %v2523
  %v3029 = vunpack.c.l.b16 %v2524
  %v3030 = vunpack.c.l.b16 %v2525
  %v3031 = vunpack.c.h.b16 %v2525
  %v3032 = vunpack.c.l.b16 %v2526
  %v3033 = vunpack.c.h.b16 %v2526
  %v3034 = vunpack.c.l.b16 %v2527
  %v3035 = vunpack.c.l.b16 %v2528
  %v3036 = vunpack.c.h.b16 %v2528
  %v3037 = vunpack.c.l.b16 %v2529
  %v3038 = vunpack.c.h.b16 %v2529
  %v3039 = vunpack.c.l.b16 %v2530
  %v3040 = vunpack.c.l.b16 %v2531
  %v3041 = vunpack.c.h.b16 %v2531
  %v3042 = vunpack.c.l.b16 %v2532
  %v3043 = vunpack.c.h.b16 %v2532
  %v3044 = vunpack.c.l.b16 %v2533
  %v3045 = vunpack.c.l.b16 %v2534
  %v3046 = vunpack.c.h.b16 %v2534
  %v3047 = vunpack.c.l.b16 %v2535
  %v3048 = vunpack.c.h.b16 %v2535
  %v3049 = vunpack.c.l.b16 %v2536
  %v3050 = vunpack.c.l.b16 %v2537
  %v3051 = vunpack.c.h.b16 %v2537
  %v3052 = vunpack.c.l.b16 %v2538
  %v3053 = vunpack.c.h.b16 %v2538
  %v3054 = vunpack.c.l.b16 %v2539
  %v3055 = vunpack.c.l.b16 %v2540
  %v3056 = vunpack.c.h.b16 %v2540
  %v3057 = vunpack.c.l.b16 %v2541
  %v3058 = vunpack.c.h.b16 %v2541
  %v3059 = vunpack.c.l.b16 %v2542
  %v3060 = vunpack.c.l.b16 %v2543
  %v3061 = vunpack.c.h.b16 %v2543
  %v3062 = vunpack.c.l.b16 %v2544
  %v3063 = vunpack.c.h.b16 %v2544
  %v3064 = vunpack.c.l.b16 %v2545
  %v3065 = vunpack.c.l.b16 %v2546
  %v3066 = vunpack.c.h.b16 %v2546
  %v3067 = vunpack.c.l.b16 %v2547
  %v3068 = vunpack.c.h.b16 %v2547
  %v3069 = vunpack.c.l.b16 %v2548
  %v3070 = vunpack.c.l.b16 %v2549
  %v3071 = vunpack.c.h.b16 %v2549
  %v3072 = vunpack.c.l.b16 %v2550
  %v3073 = vunpack.c.h.b16 %v2550
  %v3074 = vunpack.c.l.b16 %v2551
  %v3075 = vunpack.c.l.b16 %v2552
  %v3076 = vunpack.c.h.b16 %v2552
  %v3077 = vunpack.c.l.b16 %v2553
  %v3078 = vunpack.c.h.b16 %v2553
  %v3079 = vunpack.c.l.b16 %v2554
  %v3080 = vunpack.c.l.b16 %v2555
  %v3081 = vunpack.c.h.b16 %v2555
  %v3082 = vunpack.c.l.b16 %v2556
  %v3083 = vunpack.c.h.b16 %v2556
  %v3084 = vunpack.c.l.b16 %v2557
  %v3085 = vunpack.c.l.b16 %v2558
  %v3086 = vunpack.c.h.b16 %v2558
  %v3087 = vunpack.c.l.b16 %v2559
  %v3088 = vunpack.c.h.b16 %v2559
  %v3089 = vunpack.c.l.b16 %v2560
  %v3090 = vunpack.c.l.b16 %v2561
  %v3091 = vunpack.c.h.b16 %v2561
  %v3092 = vunpack.c.l.b16 %v2562
  %v3093 = vunpack.c.h.b16 %v2562
  %v3094 = vunpack.c.l.b16 %v2563
  %v3095 = vunpack.c.l.b16 %v2564
  %v3096 = vunpack.c.h.b16 %v2564
  %v3097 = vunpack.c.l.b16 %v2565
  %v3098 = vunpack.c.h.b16 %v2565
  %v3099 = vunpack.c.l.b16 %v2566
  %v3100 = vunpack.c.l.b16 %v2567
  %v3101 = vunpack.c.h.b16 %v2567
  %v3102 = vunpack.c.l.b16 %v2568
  %v3103 = vunpack.c.h.b16 %v2568
  %v3104 = vunpack.c.l.b16 %v2569
  %v3105 = vunpack.c.l.b16 %v2570
  %v3106 = vunpack.c.h.b16 %v2570
  %v3107 = vunpack.c.l.b16 %v2571
  %v3108 = vunpack.c.h.b16 %v2571
  %v3109 = vunpack.c.l.b16 %v2572
  %v3110 = vunpack.c.l.b16 %v2573
  %v3111 = vunpack.c.h.b16 %v2573
  %v3112 = vunpack.c.l.b16 %v2574
  %v3113 = vunpack.c.h.b16 %v2574
  %v3114 = vunpack.c.l.b16 %v2575
  %v3115 = vpack.c.b16 %v2800, %v2795
  %v3116 = vpack.c.b16 %v2801, %v2796
  %v3117 = vpack.c.b16 %v2802, %v2797
  %v3118 = vpack.c.b16 %v2803, %v2798
  %v3119 = vpack.c.b16 %v2804, %v2799
  %v3120 = vpack.c.b16 %v2810, %v2805
  %v3121 = vpack.c.b16 %v2811, %v2806
  %v3122 = vpack.c.b16 %v2812, %v2807
  %v3123 = vpack.c.b16 %v2813, %v2808
  %v3124 = vpack.c.b16 %v2814, %v2809
  %v3125 = vpack.c.b16 %v2820, %v2815
  %v3126 = vpack.c.b16 %v2821, %v2816
  %v3127 = vpack.c.b16 %v2822, %v2817
  %v3128 = vpack.c.b16 %v2823, %v2818
  %v3129 = vpack.c.b16 %v2824, %v2819
  %v3130 = vpack.c.b16 %v2830, %v2825
  %v3131 = vpack.c.b16 %v2831, %v2826
  %v3132 = vpack.c.b16 %v2832, %v2827
  %v3133 = vpack.c.b16 %v2833, %v2828
  %v3134 = vpack.c.b16 %v2834, %v2829
  %v3135 = vpack.c.b16 %v2840, %v2835
  %v3136 = vpack.c.b16 %v2841, %v2836
  %v3137 = vpack.c.b16 %v2842, %v2837
  %v3138 = vpack.c.b16 %v2843, %v2838
  %v3139 = vpack.c.b16 %v2844, %v2839
  %v3140 = vpack.c.b16 %v2850, %v2845
  %v3141 = vpack.c.b16 %v2851, %v2846
  %v3142 = vpack.c.b16 %v2852, %v2847
  %v3143 = vpack.c.b16 %v2853, %v2848
  %v3144 = vpack.c.b16 %v2854, %v2849
  %v3145 = vpack.c.b16 %v2860, %v2855
  %v3146 = vpack.c.b16 %v2861, %v2856
  %v3147 = vpack.c.b16 %v2862, %v2857
  %v3148 = vpack.c.b16 %v2863, %v2858
  %v3149 = vpack.c.b16 %v2864, %v2859
  %v3150 = vpack.c.b16 %v2870, %v2865
  %v3151 = vpack.c.b16 %v2871, %v2866
  %v3152 = vpack.c.b16 %v2872, %v2867
  %v3153 = vpack.c.b16 %v2873, %v2868
  %v3154 = vpack.c.b16 %v2874, %v2869
  %v3155 = vpack.c.b16 %v2880, %v2875
  %v3156 = vpack.c.b16 %v2881, %v2876
  %v3157 = vpack.c.b16 %v2882, %v2877
  %v3158 = vpack.c.b16 %v2883, %v2878
  %v3159 = vpack.c.b16 %v2884, %v2879
  %v3160 = vpack.c.b16 %v2890, %v2885
  %v3161 = vpack.c.b16 %v2891, %v2886
  %v3162 = vpack.c.b16 %v2892, %v2887
  %v3163 = vpack.c.b16 %v2893, %v2888
  %v3164 = vpack.c.b16 %v2894, %v2889
  %v3165 = vpack.c.b16 %v2900, %v2895
  %v3166 = vpack.c.b16 %v2901, %v2896
  %v3167 = vpack.c.b16 %v2902, %v2897
  %v3168 = vpack.c.b16 %v2903, %v2898
  %v3169 = vpack.c.b16 %v2904, %v2899
  %v3170 = vpack.c.b16 %v2910, %v2905
  %v3171 = vpack.c.b16 %v2911, %v2906
  %v3172 = vpack.c.b16 %v2912, %v2907
  %v3173 = vpack.c.b16 %v2913, %v2908
  %v3174 = vpack.c.b16 %v2914, %v2909
  %v3175 = vpack.c.b16 %v2920, %v2915
  %v3176 = vpack.c.b16 %v2921, %v2916
  %v3177 = vpack.c.b16 %v2922, %v2917
  %v3178 = vpack.c.b16 %v2923, %v2918
  %v3179 = vpack.c.b16 %v2924, %v2919
  %v3180 = vpack.c.b16 %v2930, %v2925
  %v3181 = vpack.c.b16 %v2931, %v2926
  %v3182 = vpack.c.b16 %v2932, %v2927
  %v3183 = vpack.c.b16 %v2933, %v2928
  %v3184 = vpack.c.b16 %v2934, %v2929
  %v3185 = vpack.c.b16 %v2940, %v2935
  %v3186 = vpack.c.b16 %v2941, %v2936
  %v3187 = vpack.c.b16 %v2942, %v2937
  %v3188 = vpack.c.b16 %v2943, %v2938
  %v3189 = vpack.c.b16 %v2944, %v2939
  %v3190 = vpack.c.b16 %v2950, %v2945
  %v3191 = vpack.c.b16 %v2951, %v2946
  %v3192 = vpack.c.b16 %v2952, %v2947
  %v3193 = vpack.c.b16 %v2953, %v2948
  %v3194 = vpack.c.b16 %v2954, %v2949
  %v3195 = vpack.c.b16 %v2960, %v2955
  %v3196 = vpack.c.b16 %v2961, %v2956
  %v3197 = vpack.c.b16 %v2962, %v2957
  %v3198 = vpack.c.b16 %v2963, %v2958
  %v3199 = vpack.c.b16 %v2964, %v2959
  %v3200 = vpack.c.b16 %v2970, %v2965
  %v3201 = vpack.c.b16 %v2971, %v2966
  %v3202 = vpack.c.b16 %v2972, %v2967
  %v3203 = vpack.c.b16 %v2973, %v2968
  %v3204 = vpack.c.b16 %v2974, %v2969
  %v3205 = vpack.c.b16 %v2980, %v2975
  %v3206 = vpack.c.b16 %v2981, %v2976
  %v3207 = vpack.c.b16 %v2982, %v2977
  %v3208 = vpack.c.b16 %v2983, %v2978
  %v3209 = vpack.c.b16 %v2984, %v2979
  %v3210 = vpack.c.b16 %v2990, %v2985
  %v3211 = vpack.c.b16 %v2991, %v2986
  %v3212 = vpack.c.b16 %v2992, %v2987
  %v3213 = vpack.c.b16 %v2993, %v2988
  %v3214 = vpack.c.b16 %v2994, %v2989
  %v3215 = vpack.c.b16 %v3000, %v2995
  %v3216 = vpack.c.b16 %v3001, %v2996
  %v3217 = vpack.c.b16 %v3002, %v2997
  %v3218 = vpack.c.b16 %v3003, %v2998
  %v3219 = vpack.c.b16 %v3004, %v2999
  %v3220 = vpack.c.b16 %v3010, %v3005
  %v3221 = vpack.c.b16 %v3011, %v3006
  %v3222 = vpack.c.b16 %v3012, %v3007
  %v3223 = vpack.c.b16 %v3013, %v3008
  %v3224 = vpack.c.b16 %v3014, %v3009
  %v3225 = vpack.c.b16 %v3020, %v3015
  %v3226 = vpack.c.b16 %v3021, %v3016
  %v3227 = vpack.c.b16 %v3022, %v3017
  %v3228 = vpack.c.b16 %v3023, %v3018
  %v3229 = vpack.c.b16 %v3024, %v3019
  %v3230 = vpack.c.b16 %v3030, %v3025
  %v3231 = vpack.c.b16 %v3031, %v3026
  %v3232 = vpack.c.b16 %v3032, %v3027
  %v3233 = vpack.c.b16 %v3033, %v3028
  %v3234 = vpack.c.b16 %v3034, %v3029
  %v3235 = vpack.c.b16 %v3040, %v3035
  %v3236 = vpack.c.b16 %v3041, %v3036
  %v3237 = vpack.c.b16 %v3042, %v3037
  %v3238 = vpack.c.b16 %v3043, %v3038
  %v3239 = vpack.c.b16 %v3044, %v3039
  %v3240 = vpack.c.b16 %v3050, %v3045
  %v3241 = vpack.c.b16 %v3051, %v3046
  %v3242 = vpack.c.b16 %v3052, %v3047
  %v3243 = vpack.c.b16 %v3053, %v3048
  %v3244 = vpack.c.b16 %v3054, %v3049
  %v3245 = vpack.c.b16 %v3060, %v3055
  %v3246 = vpack.c.b16 %v3061, %v3056
  %v3247 = vpack.c.b16 %v3062, %v3057
  %v3248 = vpack.c.b16 %v3063, %v3058
  %v3249 = vpack.c.b16 %v3064, %v3059
  %v3250 = vpack.c.b16 %v3070, %v3065
  %v3251 = vpack.c.b16 %v3071, %v3066
  %v3252 = vpack.c.b16 %v3072, %v3067
  %v3253 = vpack.c.b16 %v3073, %v3068
  %v3254 = vpack.c.b16 %v3074, %v3069
  %v3255 = vpack.c.b16 %v3080, %v3075
  %v3256 = vpack.c.b16 %v3081, %v3076
  %v3257 = vpack.c.b16 %v3082, %v3077
  %v3258 = vpack.c.b16 %v3083, %v3078
  %v3259 = vpack.c.b16 %v3084, %v3079
  %v3260 = vpack.c.b16 %v3090, %v3085
  %v3261 = vpack.c.b16 %v3091, %v3086
  %v3262 = vpack.c.b16 %v3092, %v3087
  %v3263 = vpack.c.b16 %v3093, %v3088
  %v3264 = vpack.c.b16 %v3094, %v3089
  %v3265 = vpack.c.b16 %v3100, %v3095
  %v3266 = vpack.c.b16 %v3101, %v3096
  %v3267 = vpack.c.b16 %v3102, %v3097
  %v3268 = vpack.c.b16 %v3103, %v3098
  %v3269 = vpack.c.b16 %v3104, %v3099
  %v3270 = vpack.c.b16 %v3110, %v3105
  %v3271 = vpack.c.b16 %v3111, %v3106
  %v3272 = vpack.c.b16 %v3112, %v3107
  %v3273 = vpack.c.b16 %v3113, %v3108
  %v3274 = vpack.c.b16 %v3114, %v3109
  %3435 = vmatprep.subr.bf16.mxu0 %v3116
  %3436 = vmatpush1.bf16.msra.mxu0 %v3115
  %3437 = vmatprep.subr.bf16.mxu0 %v3121
  %3438 = vmatpush1.bf16.msra.mxu0 %v3120
  %3439 = vmatprep.subr.bf16.mxu0 %v3126
  %3440 = vmatpush1.bf16.msra.mxu0 %v3125
  %3441 = vmatprep.subr.bf16.mxu0 %v3131
  %3442 = vmatpush1.bf16.msra.mxu0 %v3130
  %3443 = vmatprep.subr.bf16.mxu0 %v3136
  %3444 = vmatpush1.bf16.msra.mxu0 %v3135
  %3445 = vmatprep.subr.bf16.mxu0 %v3141
  %3446 = vmatpush1.bf16.msra.mxu0 %v3140
  %3447 = vmatprep.subr.bf16.mxu0 %v3146
  %3448 = vmatpush1.bf16.msra.mxu0 %v3145
  %3449 = vmatprep.subr.bf16.mxu0 %v3151
  %3450 = vmatpush1.bf16.msra.mxu0 %v3150
  %3451 = vmatprep.subr.bf16.mxu0 %v3156
  %3452 = vmatpush1.bf16.msra.mxu0 %v3155
  %3453 = vmatprep.subr.bf16.mxu0 %v3161
  %3454 = vmatpush1.bf16.msra.mxu0 %v3160
  %3455 = vmatprep.subr.bf16.mxu0 %v3166
  %3456 = vmatpush1.bf16.msra.mxu0 %v3165
  %3457 = vmatprep.subr.bf16.mxu0 %v3171
  %3458 = vmatpush1.bf16.msra.mxu0 %v3170
  %3459 = vmatprep.subr.bf16.mxu0 %v3176
  %3460 = vmatpush1.bf16.msra.mxu0 %v3175
  %3461 = vmatprep.subr.bf16.mxu0 %v3181
  %3462 = vmatpush1.bf16.msra.mxu0 %v3180
  %3463 = vmatprep.subr.bf16.mxu0 %v3186
  %3464 = vmatpush1.bf16.msra.mxu0 %v3185
  %3465 = vmatprep.subr.bf16.mxu0 %v3191
  %3466 = vmatpush1.bf16.msra.mxu0 %v3190
  %3467 = vmatprep.mubr.bf16.mxu0 %v2369
  %3468 = vmatmul.mubr.bf16.gmra.mrb[0].mxu0 %v2368
  %v3469 = vpop.f32.mrb[0].mxu0
  %v3470 = vadd.f32 %v2581, %v3469
  %v3471 = vpop.f32.mrb[0].mxu0
  %v3472 = vadd.f32 %v2585, %v3471
  %v3473 = vpop.f32.mrb[0].mxu0
  %v3474 = vadd.f32 %v2581, %v3473
  %v3475 = vpop.f32.mrb[0].mxu0
  %v3476 = vadd.f32 %v2585, %v3475
  %3477 = vmatprep.mubr.bf16.mxu0 %v2373
  %3478 = vmatmul.mubr.bf16.gmra.mrb[0].mxu0 %v2372
  %v3479 = vpop.f32.mrb[0].mxu0
  %v3480 = vadd.f32 %v2581, %v3479
  %v3481 = vpop.f32.mrb[0].mxu0
  %v3482 = vadd.f32 %v2585, %v3481
  %v3483 = vpop.f32.mrb[0].mxu0
  %v3484 = vadd.f32 %v2581, %v3483
  %v3485 = vpop.f32.mrb[0].mxu0
  %v3486 = vadd.f32 %v2585, %v3485
  %3487 = vmatprep.mubr.bf16.mxu0 %v2377
  %3488 = vmatmul.mubr.bf16.gmra.mrb[0].mxu0 %v2376
  %v3489 = vpop.f32.mrb[0].mxu0
  %v3490 = vadd.f32 %v2581, %v3489
  %v3491 = vpop.f32.mrb[0].mxu0
  %v3492 = vadd.f32 %v2585, %v3491
  %v3493 = vpop.f32.mrb[0].mxu0
  %v3494 = vadd.f32 %v2581, %v3493
  %v3495 = vpop.f32.mrb[0].mxu0
  %v3496 = vadd.f32 %v2585, %v3495
  %3497 = vmatprep.mubr.bf16.mxu0 %v2381
  %3498 = vmatmul.mubr.bf16.gmra.mrb[0].mxu0 %v2380
  %v3499 = vpop.f32.mrb[0].mxu0
  %v3500 = vadd.f32 %v2581, %v3499
  %v3501 = vpop.f32.mrb[0].mxu0
  %v3502 = vadd.f32 %v2585, %v3501
  %v3503 = vpop.f32.mrb[0].mxu0
  %v3504 = vadd.f32 %v2581, %v3503
  %v3505 = vpop.f32.mrb[0].mxu0
  %v3506 = vadd.f32 %v2585, %v3505
  %3507 = vdwg.mxu0
  %3508 = vmatprep.subr.bf16.mxu0 %v3196
  %3509 = vmatpush1.bf16.msra.mxu0 %v3195
  %3510 = vmatprep.subr.bf16.mxu0 %v3201
  %3511 = vmatpush1.bf16.msra.mxu0 %v3200
  %3512 = vmatprep.subr.bf16.mxu0 %v3206
  %3513 = vmatpush1.bf16.msra.mxu0 %v3205
  %3514 = vmatprep.subr.bf16.mxu0 %v3211
  %3515 = vmatpush1.bf16.msra.mxu0 %v3210
  %3516 = vmatprep.subr.bf16.mxu0 %v3216
  %3517 = vmatpush1.bf16.msra.mxu0 %v3215
  %3518 = vmatprep.subr.bf16.mxu0 %v3221
  %3519 = vmatpush1.bf16.msra.mxu0 %v3220
  %3520 = vmatprep.subr.bf16.mxu0 %v3226
  %3521 = vmatpush1.bf16.msra.mxu0 %v3225
  %3522 = vmatprep.subr.bf16.mxu0 %v3231
  %3523 = vmatpush1.bf16.msra.mxu0 %v3230
  %3524 = vmatprep.subr.bf16.mxu0 %v3236
  %3525 = vmatpush1.bf16.msra.mxu0 %v3235
  %3526 = vmatprep.subr.bf16.mxu0 %v3241
  %3527 = vmatpush1.bf16.msra.mxu0 %v3240
  %3528 = vmatprep.subr.bf16.mxu0 %v3246
  %3529 = vmatpush1.bf16.msra.mxu0 %v3245
  %3530 = vmatprep.subr.bf16.mxu0 %v3251
  %3531 = vmatpush1.bf16.msra.mxu0 %v3250
  %3532 = vmatprep.subr.bf16.mxu0 %v3256
  %3533 = vmatpush1.bf16.msra.mxu0 %v3255
  %3534 = vmatprep.subr.bf16.mxu0 %v3261
  %3535 = vmatpush1.bf16.msra.mxu0 %v3260
  %3536 = vmatprep.subr.bf16.mxu0 %v3266
  %3537 = vmatpush1.bf16.msra.mxu0 %v3265
  %3538 = vmatprep.subr.bf16.mxu0 %v3271
  %3539 = vmatpush1.bf16.msra.mxu0 %v3270
  %3540 = vmatprep.mubr.bf16.mxu0 %v2371
  %3541 = vmatmul.mubr.bf16.gmra.mrb[0].mxu0 %v2370
  %v3542 = vpop.f32.mrb[0].mxu0
  %v3543 = vadd.f32 %v3470, %v3542
  %v3544 = vpop.f32.mrb[0].mxu0
  %v3545 = vadd.f32 %v3472, %v3544
  %v3546 = vpop.f32.mrb[0].mxu0
  %v3547 = vadd.f32 %v3474, %v3546
  %v3548 = vpop.f32.mrb[0].mxu0
  %v3549 = vadd.f32 %v3476, %v3548
  %3550 = vmatprep.mubr.bf16.mxu0 %v2375
  %3551 = vmatmul.mubr.bf16.gmra.mrb[0].mxu0 %v2374
  %v3552 = vpop.f32.mrb[0].mxu0
  %v3553 = vadd.f32 %v3480, %v3552
  %v3554 = vpop.f32.mrb[0].mxu0
  %v3555 = vadd.f32 %v3482, %v3554
  %v3556 = vpop.f32.mrb[0].mxu0
  %v3557 = vadd.f32 %v3484, %v3556
  %v3558 = vpop.f32.mrb[0].mxu0
  %v3559 = vadd.f32 %v3486, %v3558
  %3560 = vmatprep.mubr.bf16.mxu0 %v2379
  %3561 = vmatmul.mubr.bf16.gmra.mrb[0].mxu0 %v2378
  %v3562 = vpop.f32.mrb[0].mxu0
  %v3563 = vadd.f32 %v3490, %v3562
  %v3564 = vpop.f32.mrb[0].mxu0
  %v3565 = vadd.f32 %v3492, %v3564
  %v3566 = vpop.f32.mrb[0].mxu0
  %v3567 = vadd.f32 %v3494, %v3566
  %v3568 = vpop.f32.mrb[0].mxu0
  %v3569 = vadd.f32 %v3496, %v3568
  %3570 = vmatprep.mubr.bf16.mxu0 %v2383
  %3571 = vmatmul.mubr.bf16.gmra.mrb[0].mxu0 %v2382
  %v3572 = vpop.f32.mrb[0].mxu0
  %v3573 = vadd.f32 %v3500, %v3572
  %v3574 = vpop.f32.mrb[0].mxu0
  %v3575 = vadd.f32 %v3502, %v3574
  %v3576 = vpop.f32.mrb[0].mxu0
  %v3577 = vadd.f32 %v3504, %v3576
  %v3578 = vpop.f32.mrb[0].mxu0
  %v3579 = vadd.f32 %v3506, %v3578
  %3580 = vdwg.mxu0
  %3581 = vmatprep.subr.bf16.mxu0 %v3118
  %3582 = vmatpush1.bf16.msra.mxu0 %v3117
  %3583 = vmatprep.subr.bf16.mxu0 %v3123
  %3584 = vmatpush1.bf16.msra.mxu0 %v3122
  %3585 = vmatprep.subr.bf16.mxu0 %v3128
  %3586 = vmatpush1.bf16.msra.mxu0 %v3127
  %3587 = vmatprep.subr.bf16.mxu0 %v3133
  %3588 = vmatpush1.bf16.msra.mxu0 %v3132
  %3589 = vmatprep.subr.bf16.mxu0 %v3138
  %3590 = vmatpush1.bf16.msra.mxu0 %v3137
  %3591 = vmatprep.subr.bf16.mxu0 %v3143
  %3592 = vmatpush1.bf16.msra.mxu0 %v3142
  %3593 = vmatprep.subr.bf16.mxu0 %v3148
  %3594 = vmatpush1.bf16.msra.mxu0 %v3147
  %3595 = vmatprep.subr.bf16.mxu0 %v3153
  %3596 = vmatpush1.bf16.msra.mxu0 %v3152
  %3597 = vmatprep.subr.bf16.mxu0 %v3158
  %3598 = vmatpush1.bf16.msra.mxu0 %v3157
  %3599 = vmatprep.subr.bf16.mxu0 %v3163
  %3600 = vmatpush1.bf16.msra.mxu0 %v3162
  %3601 = vmatprep.subr.bf16.mxu0 %v3168
  %3602 = vmatpush1.bf16.msra.mxu0 %v3167
  %3603 = vmatprep.subr.bf16.mxu0 %v3173
  %3604 = vmatpush1.bf16.msra.mxu0 %v3172
  %3605 = vmatprep.subr.bf16.mxu0 %v3178
  %3606 = vmatpush1.bf16.msra.mxu0 %v3177
  %3607 = vmatprep.subr.bf16.mxu0 %v3183
  %3608 = vmatpush1.bf16.msra.mxu0 %v3182
  %3609 = vmatprep.subr.bf16.mxu0 %v3188
  %3610 = vmatpush1.bf16.msra.mxu0 %v3187
  %3611 = vmatprep.subr.bf16.mxu0 %v3193
  %3612 = vmatpush1.bf16.msra.mxu0 %v3192
  %3613 = vmatprep.mubr.bf16.mxu0 %v2369
  %3614 = vmatmul.mubr.bf16.gmra.mrb[0].mxu0 %v2368
  %v3615 = vpop.f32.mrb[0].mxu0
  %v3616 = vadd.f32 %v2589, %v3615
  %v3617 = vpop.f32.mrb[0].mxu0
  %v3618 = vadd.f32 %v2593, %v3617
  %v3619 = vpop.f32.mrb[0].mxu0
  %v3620 = vadd.f32 %v2589, %v3619
  %v3621 = vpop.f32.mrb[0].mxu0
  %v3622 = vadd.f32 %v2593, %v3621
  %3623 = vmatprep.mubr.bf16.mxu0 %v2373
  %3624 = vmatmul.mubr.bf16.gmra.mrb[0].mxu0 %v2372
  %v3625 = vpop.f32.mrb[0].mxu0
  %v3626 = vadd.f32 %v2589, %v3625
  %v3627 = vpop.f32.mrb[0].mxu0
  %v3628 = vadd.f32 %v2593, %v3627
  %v3629 = vpop.f32.mrb[0].mxu0
  %v3630 = vadd.f32 %v2589, %v3629
  %v3631 = vpop.f32.mrb[0].mxu0
  %v3632 = vadd.f32 %v2593, %v3631
  %3633 = vmatprep.mubr.bf16.mxu0 %v2377
  %3634 = vmatmul.mubr.bf16.gmra.mrb[0].mxu0 %v2376
  %v3635 = vpop.f32.mrb[0].mxu0
  %v3636 = vadd.f32 %v2589, %v3635
  %v3637 = vpop.f32.mrb[0].mxu0
  %v3638 = vadd.f32 %v2593, %v3637
  %v3639 = vpop.f32.mrb[0].mxu0
  %v3640 = vadd.f32 %v2589, %v3639
  %v3641 = vpop.f32.mrb[0].mxu0
  %v3642 = vadd.f32 %v2593, %v3641
  %3643 = vmatprep.mubr.bf16.mxu0 %v2381
  %3644 = vmatmul.mubr.bf16.gmra.mrb[0].mxu0 %v2380
  %v3645 = vpop.f32.mrb[0].mxu0
  %v3646 = vadd.f32 %v2589, %v3645
  %v3647 = vpop.f32.mrb[0].mxu0
  %v3648 = vadd.f32 %v2593, %v3647
  %v3649 = vpop.f32.mrb[0].mxu0
  %v3650 = vadd.f32 %v2589, %v3649
  %v3651 = vpop.f32.mrb[0].mxu0
  %v3652 = vadd.f32 %v2593, %v3651
  %3653 = vdwg.mxu0
  %3654 = vmatprep.subr.bf16.mxu0 %v3198
  %3655 = vmatpush1.bf16.msra.mxu0 %v3197
  %3656 = vmatprep.subr.bf16.mxu0 %v3203
  %3657 = vmatpush1.bf16.msra.mxu0 %v3202
  %3658 = vmatprep.subr.bf16.mxu0 %v3208
  %3659 = vmatpush1.bf16.msra.mxu0 %v3207
  %3660 = vmatprep.subr.bf16.mxu0 %v3213
  %3661 = vmatpush1.bf16.msra.mxu0 %v3212
  %3662 = vmatprep.subr.bf16.mxu0 %v3218
  %3663 = vmatpush1.bf16.msra.mxu0 %v3217
  %3664 = vmatprep.subr.bf16.mxu0 %v3223
  %3665 = vmatpush1.bf16.msra.mxu0 %v3222
  %3666 = vmatprep.subr.bf16.mxu0 %v3228
  %3667 = vmatpush1.bf16.msra.mxu0 %v3227
  %3668 = vmatprep.subr.bf16.mxu0 %v3233
  %3669 = vmatpush1.bf16.msra.mxu0 %v3232
  %3670 = vmatprep.subr.bf16.mxu0 %v3238
  %3671 = vmatpush1.bf16.msra.mxu0 %v3237
  %3672 = vmatprep.subr.bf16.mxu0 %v3243
  %3673 = vmatpush1.bf16.msra.mxu0 %v3242
  %3674 = vmatprep.subr.bf16.mxu0 %v3248
  %3675 = vmatpush1.bf16.msra.mxu0 %v3247
  %3676 = vmatprep.subr.bf16.mxu0 %v3253
  %3677 = vmatpush1.bf16.msra.mxu0 %v3252
  %3678 = vmatprep.subr.bf16.mxu0 %v3258
  %3679 = vmatpush1.bf16.msra.mxu0 %v3257
  %3680 = vmatprep.subr.bf16.mxu0 %v3263
  %3681 = vmatpush1.bf16.msra.mxu0 %v3262
  %3682 = vmatprep.subr.bf16.mxu0 %v3268
  %3683 = vmatpush1.bf16.msra.mxu0 %v3267
  %3684 = vmatprep.subr.bf16.mxu0 %v3273
  %3685 = vmatpush1.bf16.msra.mxu0 %v3272
  %3686 = vmatprep.mubr.bf16.mxu0 %v2371
  %3687 = vmatmul.mubr.bf16.gmra.mrb[0].mxu0 %v2370
  %v3688 = vpop.f32.mrb[0].mxu0
  %v3689 = vadd.f32 %v3616, %v3688
  %v3690 = vpop.f32.mrb[0].mxu0
  %v3691 = vadd.f32 %v3618, %v3690
  %v3692 = vpop.f32.mrb[0].mxu0
  %v3693 = vadd.f32 %v3620, %v3692
  %v3694 = vpop.f32.mrb[0].mxu0
  %v3695 = vadd.f32 %v3622, %v3694
  %3696 = vmatprep.mubr.bf16.mxu0 %v2375
  %3697 = vmatmul.mubr.bf16.gmra.mrb[0].mxu0 %v2374
  %v3698 = vpop.f32.mrb[0].mxu0
  %v3699 = vadd.f32 %v3626, %v3698
  %v3700 = vpop.f32.mrb[0].mxu0
  %v3701 = vadd.f32 %v3628, %v3700
  %v3702 = vpop.f32.mrb[0].mxu0
  %v3703 = vadd.f32 %v3630, %v3702
  %v3704 = vpop.f32.mrb[0].mxu0
  %v3705 = vadd.f32 %v3632, %v3704
  %3706 = vmatprep.mubr.bf16.mxu0 %v2379
  %3707 = vmatmul.mubr.bf16.gmra.mrb[0].mxu0 %v2378
  %v3708 = vpop.f32.mrb[0].mxu0
  %v3709 = vadd.f32 %v3636, %v3708
  %v3710 = vpop.f32.mrb[0].mxu0
  %v3711 = vadd.f32 %v3638, %v3710
  %v3712 = vpop.f32.mrb[0].mxu0
  %v3713 = vadd.f32 %v3640, %v3712
  %v3714 = vpop.f32.mrb[0].mxu0
  %v3715 = vadd.f32 %v3642, %v3714
  %3716 = vmatprep.mubr.bf16.mxu0 %v2383
  %3717 = vmatmul.mubr.bf16.gmra.mrb[0].mxu0 %v2382
  %v3718 = vpop.f32.mrb[0].mxu0
  %v3719 = vadd.f32 %v3646, %v3718
  %v3720 = vpop.f32.mrb[0].mxu0
  %v3721 = vadd.f32 %v3648, %v3720
  %v3722 = vpop.f32.mrb[0].mxu0
  %v3723 = vadd.f32 %v3650, %v3722
  %v3724 = vpop.f32.mrb[0].mxu0
  %v3725 = vadd.f32 %v3652, %v3724
  %3726 = vdwg.mxu0
  %3727 = vmatprep.subr.bf16.mxu0 0
  %3728 = vmatpush1.bf16.msra.mxu0 %v3119
  %3729 = vmatprep.subr.bf16.mxu0 0
  %3730 = vmatpush1.bf16.msra.mxu0 %v3124
  %3731 = vmatprep.subr.bf16.mxu0 0
  %3732 = vmatpush1.bf16.msra.mxu0 %v3129
  %3733 = vmatprep.subr.bf16.mxu0 0
  %3734 = vmatpush1.bf16.msra.mxu0 %v3134
  %3735 = vmatprep.subr.bf16.mxu0 0
  %3736 = vmatpush1.bf16.msra.mxu0 %v3139
  %3737 = vmatprep.subr.bf16.mxu0 0
  %3738 = vmatpush1.bf16.msra.mxu0 %v3144
  %3739 = vmatprep.subr.bf16.mxu0 0
  %3740 = vmatpush1.bf16.msra.mxu0 %v3149
  %3741 = vmatprep.subr.bf16.mxu0 0
  %3742 = vmatpush1.bf16.msra.mxu0 %v3154
  %3743 = vmatprep.subr.bf16.mxu0 0
  %3744 = vmatpush1.bf16.msra.mxu0 %v3159
  %3745 = vmatprep.subr.bf16.mxu0 0
  %3746 = vmatpush1.bf16.msra.mxu0 %v3164
  %3747 = vmatprep.subr.bf16.mxu0 0
  %3748 = vmatpush1.bf16.msra.mxu0 %v3169
  %3749 = vmatprep.subr.bf16.mxu0 0
  %3750 = vmatpush1.bf16.msra.mxu0 %v3174
  %3751 = vmatprep.subr.bf16.mxu0 0
  %3752 = vmatpush1.bf16.msra.mxu0 %v3179
  %3753 = vmatprep.subr.bf16.mxu0 0
  %3754 = vmatpush1.bf16.msra.mxu0 %v3184
  %3755 = vmatprep.subr.bf16.mxu0 0
  %3756 = vmatpush1.bf16.msra.mxu0 %v3189
  %3757 = vmatprep.subr.bf16.mxu0 0
  %3758 = vmatpush1.bf16.msra.mxu0 %v3194
  %3759 = vmatprep.mubr.bf16.mxu0 %v2369
  %3760 = vmatmul.mubr.bf16.gmra.mrb[0].mxu0 %v2368
  %v3761 = vpop.f32.mrb[0].mxu0
  %v3762 = vadd.f32 %v2597, %v3761
  %v3763 = vpop.f32.mrb[0].mxu0
  %v3764 = vpop.f32.mrb[0].mxu0
  %v3765 = vadd.f32 %v2597, %v3764
  %v3766 = vpop.f32.mrb[0].mxu0
  %3767 = vmatprep.mubr.bf16.mxu0 %v2373
  %3768 = vmatmul.mubr.bf16.gmra.mrb[0].mxu0 %v2372
  %v3769 = vpop.f32.mrb[0].mxu0
  %v3770 = vadd.f32 %v2597, %v3769
  %v3771 = vpop.f32.mrb[0].mxu0
  %v3772 = vpop.f32.mrb[0].mxu0
  %v3773 = vadd.f32 %v2597, %v3772
  %v3774 = vpop.f32.mrb[0].mxu0
  %3775 = vmatprep.mubr.bf16.mxu0 %v2377
  %3776 = vmatmul.mubr.bf16.gmra.mrb[0].mxu0 %v2376
  %v3777 = vpop.f32.mrb[0].mxu0
  %v3778 = vadd.f32 %v2597, %v3777
  %v3779 = vpop.f32.mrb[0].mxu0
  %v3780 = vpop.f32.mrb[0].mxu0
  %v3781 = vadd.f32 %v2597, %v3780
  %v3782 = vpop.f32.mrb[0].mxu0
  %3783 = vmatprep.mubr.bf16.mxu0 %v2381
  %3784 = vmatmul.mubr.bf16.gmra.mrb[0].mxu0 %v2380
  %v3785 = vpop.f32.mrb[0].mxu0
  %v3786 = vadd.f32 %v2597, %v3785
  %v3787 = vpop.f32.mrb[0].mxu0
  %v3788 = vpop.f32.mrb[0].mxu0
  %v3789 = vadd.f32 %v2597, %v3788
  %v3790 = vpop.f32.mrb[0].mxu0
  %3791 = vdwg.mxu0
  %3792 = vmatprep.subr.bf16.mxu0 0
  %3793 = vmatpush1.bf16.msra.mxu0 %v3199
  %3794 = vmatprep.subr.bf16.mxu0 0
  %3795 = vmatpush1.bf16.msra.mxu0 %v3204
  %3796 = vmatprep.subr.bf16.mxu0 0
  %3797 = vmatpush1.bf16.msra.mxu0 %v3209
  %3798 = vmatprep.subr.bf16.mxu0 0
  %3799 = vmatpush1.bf16.msra.mxu0 %v3214
  %3800 = vmatprep.subr.bf16.mxu0 0
  %3801 = vmatpush1.bf16.msra.mxu0 %v3219
  %3802 = vmatprep.subr.bf16.mxu0 0
  %3803 = vmatpush1.bf16.msra.mxu0 %v3224
  %3804 = vmatprep.subr.bf16.mxu0 0
  %3805 = vmatpush1.bf16.msra.mxu0 %v3229
  %3806 = vmatprep.subr.bf16.mxu0 0
  %3807 = vmatpush1.bf16.msra.mxu0 %v3234
  %3808 = vmatprep.subr.bf16.mxu0 0
  %3809 = vmatpush1.bf16.msra.mxu0 %v3239
  %3810 = vmatprep.subr.bf16.mxu0 0
  %3811 = vmatpush1.bf16.msra.mxu0 %v3244
  %3812 = vmatprep.subr.bf16.mxu0 0
  %3813 = vmatpush1.bf16.msra.mxu0 %v3249
  %3814 = vmatprep.subr.bf16.mxu0 0
  %3815 = vmatpush1.bf16.msra.mxu0 %v3254
  %3816 = vmatprep.subr.bf16.mxu0 0
  %3817 = vmatpush1.bf16.msra.mxu0 %v3259
  %3818 = vmatprep.subr.bf16.mxu0 0
  %3819 = vmatpush1.bf16.msra.mxu0 %v3264
  %3820 = vmatprep.subr.bf16.mxu0 0
  %3821 = vmatpush1.bf16.msra.mxu0 %v3269
  %3822 = vmatprep.subr.bf16.mxu0 0
  %3823 = vmatpush1.bf16.msra.mxu0 %v3274
  %3824 = vmatprep.mubr.bf16.mxu0 %v2371
  %3825 = vmatmul.mubr.bf16.gmra.mrb[0].mxu0 %v2370
  %v3826 = vpop.f32.mrb[0].mxu0
  %v3827 = vadd.f32 %v3762, %v3826
  %v3828 = vpop.f32.mrb[0].mxu0
  %v3829 = vpop.f32.mrb[0].mxu0
  %v3830 = vadd.f32 %v3765, %v3829
  %v3831 = vpop.f32.mrb[0].mxu0
  %3832 = vmatprep.mubr.bf16.mxu0 %v2375
  %3833 = vmatmul.mubr.bf16.gmra.mrb[0].mxu0 %v2374
  %v3834 = vpop.f32.mrb[0].mxu0
  %v3835 = vadd.f32 %v3770, %v3834
  %v3836 = vpop.f32.mrb[0].mxu0
  %v3837 = vpop.f32.mrb[0].mxu0
  %v3838 = vadd.f32 %v3773, %v3837
  %v3839 = vpop.f32.mrb[0].mxu0
  %3840 = vmatprep.mubr.bf16.mxu0 %v2379
  %3841 = vmatmul.mubr.bf16.gmra.mrb[0].mxu0 %v2378
  %v3842 = vpop.f32.mrb[0].mxu0
  %v3843 = vadd.f32 %v3778, %v3842
  %v3844 = vpop.f32.mrb[0].mxu0
  %v3845 = vpop.f32.mrb[0].mxu0
  %v3846 = vadd.f32 %v3781, %v3845
  %v3847 = vpop.f32.mrb[0].mxu0
  %3848 = vmatprep.mubr.bf16.mxu0 %v2383
  %3849 = vmatmul.mubr.bf16.gmra.mrb[0].mxu0 %v2382
  %v3850 = vpop.f32.mrb[0].mxu0
  %v3851 = vadd.f32 %v3786, %v3850
  %v3852 = vpop.f32.mrb[0].mxu0
  %v3853 = vpop.f32.mrb[0].mxu0
  %v3854 = vadd.f32 %v3789, %v3853
  %v3855 = vpop.f32.mrb[0].mxu0
  %3856 = vdwg.mxu0
  %v3857 = vtanh.pop %v3543
  %v3858 = vtanh.pop %v3545
  %v3859 = vtanh.pop %v3547
  %v3860 = vtanh.pop %v3549
  %v3861 = vtanh.pop %v3553
  %v3862 = vtanh.pop %v3555
  %v3863 = vtanh.pop %v3557
  %v3864 = vtanh.pop %v3559
  %v3865 = vtanh.pop %v3563
  %v3866 = vtanh.pop %v3565
  %v3867 = vtanh.pop %v3567
  %v3868 = vtanh.pop %v3569
  %v3869 = vtanh.pop %v3573
  %v3870 = vtanh.pop %v3575
  %v3871 = vtanh.pop %v3577
  %v3872 = vtanh.pop %v3579
  %v3873 = vxor.u32 %v3689, 2147483648
  %v3874 = vxor.u32 %v3691, 2147483648
  %v3875 = vxor.u32 %v3693, 2147483648
  %v3876 = vxor.u32 %v3695, 2147483648
  %v3877 = vxor.u32 %v3699, 2147483648
  %v3878 = vxor.u32 %v3701, 2147483648
  %v3879 = vxor.u32 %v3703, 2147483648
  %v3880 = vxor.u32 %v3705, 2147483648
  %v3881 = vxor.u32 %v3709, 2147483648
  %v3882 = vxor.u32 %v3711, 2147483648
  %v3883 = vxor.u32 %v3713, 2147483648
  %v3884 = vxor.u32 %v3715, 2147483648
  %v3885 = vxor.u32 %v3719, 2147483648
  %v3886 = vxor.u32 %v3721, 2147483648
  %v3887 = vxor.u32 %v3723, 2147483648
  %v3888 = vxor.u32 %v3725, 2147483648
  %v3889 = vmul.f32 %v3873, 1.442695
  %v3890 = vpow.pop %v3889
  %v3891 = vmul.f32 %v3874, 1.442695
  %v3892 = vpow.pop %v3891
  %v3893 = vmul.f32 %v3875, 1.442695
  %v3894 = vpow.pop %v3893
  %v3895 = vmul.f32 %v3876, 1.442695
  %v3896 = vpow.pop %v3895
  %v3897 = vmul.f32 %v3877, 1.442695
  %v3898 = vpow.pop %v3897
  %v3899 = vmul.f32 %v3878, 1.442695
  %v3900 = vpow.pop %v3899
  %v3901 = vmul.f32 %v3879, 1.442695
  %v3902 = vpow.pop %v3901
  %v3903 = vmul.f32 %v3880, 1.442695
  %v3904 = vpow.pop %v3903
  %v3905 = vmul.f32 %v3881, 1.442695
  %v3906 = vpow.pop %v3905
  %v3907 = vmul.f32 %v3882, 1.442695
  %v3908 = vpow.pop %v3907
  %v3909 = vmul.f32 %v3883, 1.442695
  %v3910 = vpow.pop %v3909
  %v3911 = vmul.f32 %v3884, 1.442695
  %v3912 = vpow.pop %v3911
  %v3913 = vmul.f32 %v3885, 1.442695
  %v3914 = vpow.pop %v3913
  %v3915 = vmul.f32 %v3886, 1.442695
  %v3916 = vpow.pop %v3915
  %v3917 = vmul.f32 %v3887, 1.442695
  %v3918 = vpow.pop %v3917
  %v3919 = vmul.f32 %v3888, 1.442695
  %v3920 = vpow.pop %v3919
  %v3921 = vadd.f32 %v3890, 1.0
  %v3922 = vadd.f32 %v3892, 1.0
  %v3923 = vadd.f32 %v3894, 1.0
  %v3924 = vadd.f32 %v3896, 1.0
  %v3925 = vadd.f32 %v3898, 1.0
  %v3926 = vadd.f32 %v3900, 1.0
  %v3927 = vadd.f32 %v3902, 1.0
  %v3928 = vadd.f32 %v3904, 1.0
  %v3929 = vadd.f32 %v3906, 1.0
  %v3930 = vadd.f32 %v3908, 1.0
  %v3931 = vadd.f32 %v3910, 1.0
  %v3932 = vadd.f32 %v3912, 1.0
  %v3933 = vadd.f32 %v3914, 1.0
  %v3934 = vadd.f32 %v3916, 1.0
  %v3935 = vadd.f32 %v3918, 1.0
  %v3936 = vadd.f32 %v3920, 1.0
  %v3937 = vrcp.pop %v3921
  %v3938 = vmul.f32 1.0, %v3937
  %v3939 = vrcp.pop %v3922
  %v3940 = vmul.f32 1.0, %v3939
  %v3941 = vrcp.pop %v3923
  %v3942 = vmul.f32 1.0, %v3941
  %v3943 = vrcp.pop %v3924
  %v3944 = vmul.f32 1.0, %v3943
  %v3945 = vrcp.pop %v3925
  %v3946 = vmul.f32 1.0, %v3945
  %v3947 = vrcp.pop %v3926
  %v3948 = vmul.f32 1.0, %v3947
  %v3949 = vrcp.pop %v3927
  %v3950 = vmul.f32 1.0, %v3949
  %v3951 = vrcp.pop %v3928
  %v3952 = vmul.f32 1.0, %v3951
  %v3953 = vrcp.pop %v3929
  %v3954 = vmul.f32 1.0, %v3953
  %v3955 = vrcp.pop %v3930
  %v3956 = vmul.f32 1.0, %v3955
  %v3957 = vrcp.pop %v3931
  %v3958 = vmul.f32 1.0, %v3957
  %v3959 = vrcp.pop %v3932
  %v3960 = vmul.f32 1.0, %v3959
  %v3961 = vrcp.pop %v3933
  %v3962 = vmul.f32 1.0, %v3961
  %v3963 = vrcp.pop %v3934
  %v3964 = vmul.f32 1.0, %v3963
  %v3965 = vrcp.pop %v3935
  %v3966 = vmul.f32 1.0, %v3965
  %v3967 = vrcp.pop %v3936
  %v3968 = vmul.f32 1.0, %v3967
  %v3969 = vmul.f32 %v3857, %v3938
  %v3970 = vmul.f32 %v3858, %v3940
  %v3971 = vmul.f32 %v3859, %v3942
  %v3972 = vmul.f32 %v3860, %v3944
  %v3973 = vmul.f32 %v3861, %v3946
  %v3974 = vmul.f32 %v3862, %v3948
  %v3975 = vmul.f32 %v3863, %v3950
  %v3976 = vmul.f32 %v3864, %v3952
  %v3977 = vmul.f32 %v3865, %v3954
  %v3978 = vmul.f32 %v3866, %v3956
  %v3979 = vmul.f32 %v3867, %v3958
  %v3980 = vmul.f32 %v3868, %v3960
  %v3981 = vmul.f32 %v3869, %v3962
  %v3982 = vmul.f32 %v3870, %v3964
  %v3983 = vmul.f32 %v3871, %v3966
  %v3984 = vmul.f32 %v3872, %v3968
  %v3985 = vpack.c.bf16 %v3971, %v3969
  %v3986 = vpack.c.bf16 %v3972, %v3970
  %v3987 = vpack.c.bf16 %v3975, %v3973
  %v3988 = vpack.c.bf16 %v3976, %v3974
  %v3989 = vpack.c.bf16 %v3979, %v3977
  %v3990 = vpack.c.bf16 %v3980, %v3978
  %v3991 = vpack.c.bf16 %v3983, %v3981
  %v3992 = vpack.c.bf16 %v3984, %v3982
  %v3993 = vld [vmem:[%s6] sm:$0xf]
  %v3994 = vld [vmem:[%s6 + $0x4] sm:$0xf]
  %v3995 = vld [vmem:[%s6 + $0x8] sm:$0xf]
  %v3996 = vld [vmem:[%s6 + $0xc] sm:$0xf]
  %v3997 = vld [vmem:[%s6 + $0x10] sm:$0xf]
  %v3998 = vld [vmem:[%s6 + $0x14] sm:$0xf]
  %v3999 = vld [vmem:[%s6 + $0x18] sm:$0xf]
  %v4000 = vld [vmem:[%s6 + $0x1c] sm:$0xf]
  %v4001 = vld [vmem:[%s6 + $0x20] sm:$0xf]
  %v4002 = vld [vmem:[%s6 + $0x24] sm:$0xf]
  %v4003 = vld [vmem:[%s6 + $0x28] sm:$0xf]
  %v4004 = vld [vmem:[%s6 + $0x2c] sm:$0xf]
  %v4005 = vld [vmem:[%s6 + $0x30] sm:$0xf]
  %v4006 = vld [vmem:[%s6 + $0x34] sm:$0xf]
  %v4007 = vld [vmem:[%s6 + $0x38] sm:$0xf]
  %v4008 = vld [vmem:[%s6 + $0x3c] sm:$0xf]
  %v4009 = vld [vmem:[%s6 + $0x40] sm:$0xf]
  %v4010 = vld [vmem:[%s6 + $0x44] sm:$0xf]
  %v4011 = vld [vmem:[%s6 + $0x48] sm:$0xf]
  %v4012 = vld [vmem:[%s6 + $0x4c] sm:$0xf]
  %v4013 = vld [vmem:[%s6 + $0x50] sm:$0xf]
  %v4014 = vld [vmem:[%s6 + $0x54] sm:$0xf]
  %v4015 = vld [vmem:[%s6 + $0x58] sm:$0xf]
  %v4016 = vld [vmem:[%s6 + $0x5c] sm:$0xf]
  %v4017 = vld [vmem:[%s6 + $0x60] sm:$0xf]
  %v4018 = vld [vmem:[%s6 + $0x64] sm:$0xf]
  %v4019 = vld [vmem:[%s6 + $0x68] sm:$0xf]
  %v4020 = vld [vmem:[%s6 + $0x6c] sm:$0xf]
  %v4021 = vld [vmem:[%s6 + $0x70] sm:$0xf]
  %v4022 = vld [vmem:[%s6 + $0x74] sm:$0xf]
  %v4023 = vld [vmem:[%s6 + $0x78] sm:$0xf]
  %v4024 = vld [vmem:[%s6 + $0x7c] sm:$0xf]
  %v4025 = vld [vmem:[%s7] sm:$0x1]
  %v4027 = vlaneseq
  %v4028 = vshrl.u32 %v4027, 7
  %v4029 = vsub.s32 0, %v4028
  %v4030 = vrot.slane %v4025, %v4029
  %v4064 = vunpack.c.l.b16 %v3993
  %v4065 = vunpack.c.l.b16 %v3994
  %v4066 = vunpack.c.l.b16 %v3995
  %v4067 = vunpack.c.l.b16 %v3996
  %v4068 = vunpack.c.l.b16 %v3997
  %v4069 = vunpack.c.l.b16 %v3998
  %v4070 = vunpack.c.l.b16 %v3999
  %v4071 = vunpack.c.l.b16 %v4000
  %v4072 = vunpack.c.l.b16 %v4001
  %v4073 = vunpack.c.l.b16 %v4002
  %v4074 = vunpack.c.l.b16 %v4003
  %v4075 = vunpack.c.l.b16 %v4004
  %v4076 = vunpack.c.l.b16 %v4005
  %v4077 = vunpack.c.l.b16 %v4006
  %v4078 = vunpack.c.l.b16 %v4007
  %v4079 = vunpack.c.l.b16 %v4008
  %v4080 = vunpack.c.l.b16 %v4009
  %v4081 = vunpack.c.l.b16 %v4010
  %v4082 = vunpack.c.l.b16 %v4011
  %v4083 = vunpack.c.l.b16 %v4012
  %v4084 = vunpack.c.l.b16 %v4013
  %v4085 = vunpack.c.l.b16 %v4014
  %v4086 = vunpack.c.l.b16 %v4015
  %v4087 = vunpack.c.l.b16 %v4016
  %v4088 = vunpack.c.l.b16 %v4017
  %v4089 = vunpack.c.l.b16 %v4018
  %v4090 = vunpack.c.l.b16 %v4019
  %v4091 = vunpack.c.l.b16 %v4020
  %v4092 = vunpack.c.l.b16 %v4021
  %v4093 = vunpack.c.l.b16 %v4022
  %v4094 = vunpack.c.l.b16 %v4023
  %v4095 = vunpack.c.l.b16 %v4024
  %v4096 = vpack.c.b16 %v4065, %v4064
  %v4097 = vpack.c.b16 %v4067, %v4066
  %v4098 = vpack.c.b16 %v4069, %v4068
  %v4099 = vpack.c.b16 %v4071, %v4070
  %v4100 = vpack.c.b16 %v4073, %v4072
  %v4101 = vpack.c.b16 %v4075, %v4074
  %v4102 = vpack.c.b16 %v4077, %v4076
  %v4103 = vpack.c.b16 %v4079, %v4078
  %v4104 = vpack.c.b16 %v4081, %v4080
  %v4105 = vpack.c.b16 %v4083, %v4082
  %v4106 = vpack.c.b16 %v4085, %v4084
  %v4107 = vpack.c.b16 %v4087, %v4086
  %v4108 = vpack.c.b16 %v4089, %v4088
  %v4109 = vpack.c.b16 %v4091, %v4090
  %v4110 = vpack.c.b16 %v4093, %v4092
  %v4111 = vpack.c.b16 %v4095, %v4094
  %4128 = vmatprep.subr.bf16.mxu0 0
  %4129 = vmatpush1.bf16.msra.mxu0 %v4096
  %4130 = vmatprep.subr.bf16.mxu0 0
  %4131 = vmatpush1.bf16.msra.mxu0 %v4097
  %4132 = vmatprep.subr.bf16.mxu0 0
  %4133 = vmatpush1.bf16.msra.mxu0 %v4098
  %4134 = vmatprep.subr.bf16.mxu0 0
  %4135 = vmatpush1.bf16.msra.mxu0 %v4099
  %4136 = vmatprep.subr.bf16.mxu0 0
  %4137 = vmatpush1.bf16.msra.mxu0 %v4100
  %4138 = vmatprep.subr.bf16.mxu0 0
  %4139 = vmatpush1.bf16.msra.mxu0 %v4101
  %4140 = vmatprep.subr.bf16.mxu0 0
  %4141 = vmatpush1.bf16.msra.mxu0 %v4102
  %4142 = vmatprep.subr.bf16.mxu0 0
  %4143 = vmatpush1.bf16.msra.mxu0 %v4103
  %4144 = vmatprep.subr.bf16.mxu0 0
  %4145 = vmatpush1.bf16.msra.mxu0 %v4104
  %4146 = vmatprep.subr.bf16.mxu0 0
  %4147 = vmatpush1.bf16.msra.mxu0 %v4105
  %4148 = vmatprep.subr.bf16.mxu0 0
  %4149 = vmatpush1.bf16.msra.mxu0 %v4106
  %4150 = vmatprep.subr.bf16.mxu0 0
  %4151 = vmatpush1.bf16.msra.mxu0 %v4107
  %4152 = vmatprep.subr.bf16.mxu0 0
  %4153 = vmatpush1.bf16.msra.mxu0 %v4108
  %4154 = vmatprep.subr.bf16.mxu0 0
  %4155 = vmatpush1.bf16.msra.mxu0 %v4109
  %4156 = vmatprep.subr.bf16.mxu0 0
  %4157 = vmatpush1.bf16.msra.mxu0 %v4110
  %4158 = vmatprep.subr.bf16.mxu0 0
  %4159 = vmatpush1.bf16.msra.mxu0 %v4111
  %4160 = vmatprep.mubr.bf16.mxu0 %v3986
  %4161 = vmatmul.mubr.bf16.gmra.mrb[0].mxu0 %v3985
  %v4162 = vpop.f32.mrb[0].mxu0
  %v4163 = vadd.f32 %v4030, %v4162
  %v4164 = vpop.f32.mrb[0].mxu0
  %v4165 = vpop.f32.mrb[0].mxu0
  %v4166 = vadd.f32 %v4030, %v4165
  %v4167 = vpop.f32.mrb[0].mxu0
  %4168 = vmatprep.mubr.bf16.mxu0 %v3988
  %4169 = vmatmul.mubr.bf16.gmra.mrb[0].mxu0 %v3987
  %v4170 = vpop.f32.mrb[0].mxu0
  %v4171 = vadd.f32 %v4030, %v4170
  %v4172 = vpop.f32.mrb[0].mxu0
  %v4173 = vpop.f32.mrb[0].mxu0
  %v4174 = vadd.f32 %v4030, %v4173
  %v4175 = vpop.f32.mrb[0].mxu0
  %4176 = vmatprep.mubr.bf16.mxu0 %v3990
  %4177 = vmatmul.mubr.bf16.gmra.mrb[0].mxu0 %v3989
  %v4178 = vpop.f32.mrb[0].mxu0
  %v4179 = vadd.f32 %v4030, %v4178
  %v4180 = vpop.f32.mrb[0].mxu0
  %v4181 = vpop.f32.mrb[0].mxu0
  %v4182 = vadd.f32 %v4030, %v4181
  %v4183 = vpop.f32.mrb[0].mxu0
  %4184 = vmatprep.mubr.bf16.mxu0 %v3992
  %4185 = vmatmul.mubr.bf16.gmra.mrb[0].mxu0 %v3991
  %v4186 = vpop.f32.mrb[0].mxu0
  %v4187 = vadd.f32 %v4030, %v4186
  %v4188 = vpop.f32.mrb[0].mxu0
  %v4189 = vpop.f32.mrb[0].mxu0
  %v4190 = vadd.f32 %v4030, %v4189
  %v4191 = vpop.f32.mrb[0].mxu0
  %4192 = vdwg.mxu0
  %vm4193 = vcmask 15360
  %4194 = vst.msk [vmem:[%s83] sm:$0xff] %vm4193, %v4163
  %4195 = vst.msk [vmem:[%s83 + $0x8] sm:$0xff] %vm4193, %v4166
  %4196 = vst.msk [vmem:[%s83 + $0x10] sm:$0xff] %vm4193, %v4171
  %4197 = vst.msk [vmem:[%s83 + $0x18] sm:$0xff] %vm4193, %v4174
  %4198 = vst.msk [vmem:[%s83 + $0x20] sm:$0xff] %vm4193, %v4179
  %4199 = vst.msk [vmem:[%s83 + $0x28] sm:$0xff] %vm4193, %v4182
  %4200 = vst.msk [vmem:[%s83 + $0x30] sm:$0xff] %vm4193, %v4187
  %4201 = vst.msk [vmem:[%s83 + $0x38] sm:$0xff] %vm4193, %v4190
  %s4202 = sadd.s32 0, 0
  %v4203 = vlaneseq
  %v4204 = vshrl.u32 %v4203, 7
  %v4205 = vadd.s32 %v4204, 8
  %v4206 = vadd.s32 %v4204, 16
  %v4207 = vadd.s32 %v4204, 24
  %v4208 = vadd.s32 %v4204, 32
  %v4209 = vadd.s32 %v4204, 40
  %v4210 = vadd.s32 %v4204, 48
  %v4211 = vadd.s32 %v4204, 56
  %s4212 = smul.u32 %s4202, 64
  %v4213 = vstv %s4212
  %v4214 = vadd.s32 %v4204, %v4213
  %v4215 = vadd.s32 %v4205, %v4213
  %v4216 = vadd.s32 %v4206, %v4213
  %v4217 = vadd.s32 %v4207, %v4213
  %v4218 = vadd.s32 %v4208, %v4213
  %v4219 = vadd.s32 %v4209, %v4213
  %v4220 = vadd.s32 %v4210, %v4213
  %v4221 = vadd.s32 %v4211, %v4213
  %s4222 = sld [smem:[#allocation7]]
  %v4223 = vstv %s4222
  %vm4224 = vcmp.lt.s32.totalorder %v4214, %v4223
  %vm4225 = vcmp.lt.s32.totalorder %v4215, %v4223
  %vm4226 = vcmp.lt.s32.totalorder %v4216, %v4223
  %vm4227 = vcmp.lt.s32.totalorder %v4217, %v4223
  %vm4228 = vcmp.lt.s32.totalorder %v4218, %v4223
  %vm4229 = vcmp.lt.s32.totalorder %v4219, %v4223
  %vm4230 = vcmp.lt.s32.totalorder %v4220, %v4223
  %vm4231 = vcmp.lt.s32.totalorder %v4221, %v4223
  %v4232 = vsel %vm4224, 1, 0
  %v4233 = vsel %vm4225, 1, 0
  %v4234 = vsel %vm4226, 1, 0
  %v4235 = vsel %vm4227, 1, 0
  %v4236 = vsel %vm4228, 1, 0
  %v4237 = vsel %vm4229, 1, 0
  %v4238 = vsel %vm4230, 1, 0
  %v4239 = vsel %vm4231, 1, 0
  %vm4240 = vcmp.eq.s32.totalorder %v4232, 1
  %vm4241 = vcmp.eq.s32.totalorder %v4233, 1
  %vm4242 = vcmp.eq.s32.totalorder %v4234, 1
  %vm4243 = vcmp.eq.s32.totalorder %v4235, 1
  %vm4244 = vcmp.eq.s32.totalorder %v4236, 1
  %vm4245 = vcmp.eq.s32.totalorder %v4237, 1
  %vm4246 = vcmp.eq.s32.totalorder %v4238, 1
  %vm4247 = vcmp.eq.s32.totalorder %v4239, 1
  %v4248 = vsel %vm4240, %v4163, -inf
  %v4249 = vsel %vm4241, %v4166, -inf
  %v4250 = vsel %vm4242, %v4171, -inf
  %v4251 = vsel %vm4243, %v4174, -inf
  %v4252 = vsel %vm4244, %v4179, -inf
  %v4253 = vsel %vm4245, %v4182, -inf
  %v4254 = vsel %vm4246, %v4187, -inf
  %v4255 = vsel %vm4247, %v4190, -inf
  %v4256 = vsel %vm4240, %v4163, inf
  %v4257 = vsel %vm4241, %v4166, inf
  %v4258 = vsel %vm4242, %v4171, inf
  %v4259 = vsel %vm4243, %v4174, inf
  %v4260 = vsel %vm4244, %v4179, inf
  %v4261 = vsel %vm4245, %v4182, inf
  %v4262 = vsel %vm4246, %v4187, inf
  %v4263 = vsel %vm4247, %v4190, inf
  %v4264 = vld [vmem:[#allocation2] sm:$0x1]
  %v4265 = vsel %vm4193, %v4248, -inf
  %v4266 = vsel %vm4193, %v4249, -inf
  %v4267 = vsel %vm4193, %v4250, -inf
  %v4268 = vsel %vm4193, %v4251, -inf
  %v4269 = vsel %vm4193, %v4252, -inf
  %v4270 = vmax.f32 %v4265, %v4269
  %v4271 = vsel %vm4193, %v4253, -inf
  %v4272 = vmax.f32 %v4266, %v4271
  %v4273 = vsel %vm4193, %v4254, -inf
  %v4274 = vmax.f32 %v4267, %v4273
  %v4275 = vsel %vm4193, %v4255, -inf
  %v4276 = vmax.f32 %v4268, %v4275
  %v4277 = vmax.f32 %v4270, %v4272
  %v4278 = vmax.f32 %v4274, %v4276
  %v4279 = vmax.f32 %v4277, %v4278
  %v4280 = vrot.slane %v4279, 4
  %v4281 = vmax.f32 %v4279, %v4280
  %v4282 = vrot.slane %v4281, 2
  %v4283 = vmax.f32 %v4281, %v4282
  %v4284 = vrot.slane %v4283, 1
  %v4285 = vmax.f32 %v4283, %v4284
  %v4286 = vmax.f32 %v4264, %v4285
  %vm4287 = vcmp.eq.f32.partialorder %v4286, -inf
  %v4288 = vsub.f32 %v4264, %v4286
  %v4289 = vmul.f32 %v4288, 1.442695
  %v4290 = vpow.pop %v4289
  %v4291 = vsel %vm4287, 0.0, %v4290
  %v4293 = vlaneseq
  %v4294 = vshrl.u32 %v4293, 7
  %v4295 = vsub.s32 0, %v4294
  %v4296 = vrot.slane %v4286, %v4295
  %v4298 = vsub.f32 %v4163, %v4296
  %v4299 = vsub.f32 %v4166, %v4296
  %v4300 = vsub.f32 %v4171, %v4296
  %v4301 = vsub.f32 %v4174, %v4296
  %v4302 = vsub.f32 %v4179, %v4296
  %v4303 = vsub.f32 %v4182, %v4296
  %v4304 = vsub.f32 %v4187, %v4296
  %v4305 = vsub.f32 %v4190, %v4296
  %v4306 = vmul.f32 %v4298, 1.442695
  %v4307 = vpow.pop %v4306
  %v4308 = vmul.f32 %v4299, 1.442695
  %v4309 = vpow.pop %v4308
  %v4310 = vmul.f32 %v4300, 1.442695
  %v4311 = vpow.pop %v4310
  %v4312 = vmul.f32 %v4301, 1.442695
  %v4313 = vpow.pop %v4312
  %v4314 = vmul.f32 %v4302, 1.442695
  %v4315 = vpow.pop %v4314
  %v4316 = vmul.f32 %v4303, 1.442695
  %v4317 = vpow.pop %v4316
  %v4318 = vmul.f32 %v4304, 1.442695
  %v4319 = vpow.pop %v4318
  %v4320 = vmul.f32 %v4305, 1.442695
  %v4321 = vpow.pop %v4320
  %v4322 = vld [vmem:[#allocation3] sm:$0x1]
  %v4323 = vmul.f32 %v4291, %v4322
  %v4324 = vsel %vm4240, %v4307, 0.0
  %v4325 = vsel %vm4241, %v4309, 0.0
  %v4326 = vsel %vm4242, %v4311, 0.0
  %v4327 = vsel %vm4243, %v4313, 0.0
  %v4328 = vsel %vm4244, %v4315, 0.0
  %v4329 = vsel %vm4245, %v4317, 0.0
  %v4330 = vsel %vm4246, %v4319, 0.0
  %v4331 = vsel %vm4247, %v4321, 0.0
  %v4332 = vsel %vm4193, %v4324, 0.0
  %v4333 = vsel %vm4193, %v4325, 0.0
  %v4334 = vadd.f32 %v4332, %v4333
  %v4335 = vsel %vm4193, %v4326, 0.0
  %v4336 = vadd.f32 %v4334, %v4335
  %v4337 = vsel %vm4193, %v4327, 0.0
  %v4338 = vadd.f32 %v4336, %v4337
  %v4339 = vsel %vm4193, %v4328, 0.0
  %v4340 = vadd.f32 %v4338, %v4339
  %v4341 = vsel %vm4193, %v4329, 0.0
  %v4342 = vadd.f32 %v4340, %v4341
  %v4343 = vsel %vm4193, %v4330, 0.0
  %v4344 = vadd.f32 %v4342, %v4343
  %v4345 = vsel %vm4193, %v4331, 0.0
  %v4346 = vadd.f32 %v4344, %v4345
  %v4347 = vrot.slane %v4346, 4
  %v4348 = vadd.f32 %v4346, %v4347
  %v4349 = vrot.slane %v4348, 2
  %v4350 = vadd.f32 %v4348, %v4349
  %v4351 = vrot.slane %v4350, 1
  %v4352 = vadd.f32 %v4350, %v4351
  %v4353 = vadd.f32 %v4323, %v4352
  %vm4354 = vcmask 8192
  %4355 = vst.msk [vmem:[#allocation3] sm:$0x1] %vm4354, %v4353
  %v4356 = vld [vmem:[#allocation4] sm:$0x1]
  %v4357 = vmul.f32 %v4291, %v4356
  %v4358 = vmul.f32 %v4307, %v3827
  %v4359 = vmul.f32 %v4309, %v3830
  %v4360 = vmul.f32 %v4311, %v3835
  %v4361 = vmul.f32 %v4313, %v3838
  %v4362 = vmul.f32 %v4315, %v3843
  %v4363 = vmul.f32 %v4317, %v3846
  %v4364 = vmul.f32 %v4319, %v3851
  %v4365 = vmul.f32 %v4321, %v3854
  %v4366 = vsel %vm4240, %v4358, 0.0
  %v4367 = vsel %vm4241, %v4359, 0.0
  %v4368 = vsel %vm4242, %v4360, 0.0
  %v4369 = vsel %vm4243, %v4361, 0.0
  %v4370 = vsel %vm4244, %v4362, 0.0
  %v4371 = vsel %vm4245, %v4363, 0.0
  %v4372 = vsel %vm4246, %v4364, 0.0
  %v4373 = vsel %vm4247, %v4365, 0.0
  %v4374 = vsel %vm4193, %v4366, 0.0
  %v4375 = vsel %vm4193, %v4367, 0.0
  %v4376 = vadd.f32 %v4374, %v4375
  %v4377 = vsel %vm4193, %v4368, 0.0
  %v4378 = vadd.f32 %v4376, %v4377
  %v4379 = vsel %vm4193, %v4369, 0.0
  %v4380 = vadd.f32 %v4378, %v4379
  %v4381 = vsel %vm4193, %v4370, 0.0
  %v4382 = vadd.f32 %v4380, %v4381
  %v4383 = vsel %vm4193, %v4371, 0.0
  %v4384 = vadd.f32 %v4382, %v4383
  %v4385 = vsel %vm4193, %v4372, 0.0
  %v4386 = vadd.f32 %v4384, %v4385
  %v4387 = vsel %vm4193, %v4373, 0.0
  %v4388 = vadd.f32 %v4386, %v4387
  %v4389 = vrot.slane %v4388, 4
  %v4390 = vadd.f32 %v4388, %v4389
  %v4391 = vrot.slane %v4390, 2
  %v4392 = vadd.f32 %v4390, %v4391
  %v4393 = vrot.slane %v4392, 1
  %v4394 = vadd.f32 %v4392, %v4393
  %v4395 = vadd.f32 %v4357, %v4394
  %4396 = vst.msk [vmem:[#allocation4] sm:$0x1] %vm4354, %v4395
  %4397 = vst.msk [vmem:[#allocation2] sm:$0x1] %vm4354, %v4286
  %v4398 = vld [vmem:[#allocation5] sm:$0x1]
  %v4399 = vsel %vm4193, %v4256, inf
  %v4400 = vsel %vm4193, %v4257, inf
  %v4401 = vsel %vm4193, %v4258, inf
  %v4402 = vsel %vm4193, %v4259, inf
  %v4403 = vsel %vm4193, %v4260, inf
  %v4404 = vmin.f32 %v4399, %v4403
  %v4405 = vsel %vm4193, %v4261, inf
  %v4406 = vmin.f32 %v4400, %v4405
  %v4407 = vsel %vm4193, %v4262, inf
  %v4408 = vmin.f32 %v4401, %v4407
  %v4409 = vsel %vm4193, %v4263, inf
  %v4410 = vmin.f32 %v4402, %v4409
  %v4411 = vmin.f32 %v4404, %v4406
  %v4412 = vmin.f32 %v4408, %v4410
  %v4413 = vmin.f32 %v4411, %v4412
  %v4414 = vrot.slane %v4413, 4
  %v4415 = vmin.f32 %v4413, %v4414
  %v4416 = vrot.slane %v4415, 2
  %v4417 = vmin.f32 %v4415, %v4416
  %v4418 = vrot.slane %v4417, 1
  %v4419 = vmin.f32 %v4417, %v4418
  %v4420 = vmin.f32 %v4398, %v4419
  %4421 = vst.msk [vmem:[#allocation5] sm:$0x1] %vm4354, %v4420
  // Predicated region
  $region34: #{clam_mb_forward.1} parent=0 // pred_check
    %p4422 = pneg %p89
  $region35: #{clam_mb_forward.1} parent=0 // pred_check_branch
    %4424 = sbr.rel (%p4422) target = $region37
  $region36: #{clam_mb_forward.1} parent=0 // pred_region
    %v4425 = vld [vmem:[#allocation2] sm:$0x1]
    %4426 = vst.msk [vmem:[%s9] sm:$0x1] %vm4354, %v4425
    %v4427 = vld [vmem:[#allocation3] sm:$0x1]
    %4428 = vst.msk [vmem:[%s10] sm:$0x1] %vm4354, %v4427
    %v4429 = vld [vmem:[#allocation4] sm:$0x1]
    %4430 = vst.msk [vmem:[%s11] sm:$0x1] %vm4354, %v4429
    %v4431 = vld [vmem:[#allocation5] sm:$0x1]
    %4432 = vst.msk [vmem:[%s12] sm:$0x1] %vm4354, %v4431
  $region37: #{clam_mb_forward.1} parent=0 // pred_fallthru
    _
  %s4433 = sadd.s32 0, 0
  %p4434 = scmp.lt.s32.totalorder %s4433, 0
  %s4435 = scalar_select %p4434, %s4433, 0
  %s4436 = smul.u32 8, %s4435
  %p4437 = scmp.lt.s32.totalorder %s4436, 7
  %s4438 = scalar_select %p4437, %s4436, 7
  %s4439 = smul.addr %s4438, 8
  %s4440 = scalar_lea.vmem %s8, %s4439
  // Predicated region
  $region38: #{clam_mb_forward.1} parent=0 // pred_check
    _
  $region39: #{clam_mb_forward.1} parent=0 // pred_check_branch
    %4442 = sbr.rel (0) target = $region41
  $region40: #{clam_mb_forward.1} parent=0 // pred_region
    %s4443 = sadd.s32 0, 0
    %p4444 = scmp.lt.s32.totalorder %s4443, 0
    %s4445 = scalar_select %p4444, %s4443, 0
    %s4446 = smul.u32 8, %s4445
  $region41: #{clam_mb_forward.1} parent=0 // pred_fallthru
    _
  // Predicated region
  $region42: #{clam_mb_forward.1} parent=0 // pred_check
    _
  $region43: #{clam_mb_forward.1} parent=0 // pred_check_branch
    %4448 = sbr.rel (0) target = $region45
  $region44: #{clam_mb_forward.1} parent=0 // pred_region
    _
  $region45: #{clam_mb_forward.1} parent=0 // pred_fallthru
    _
  // Predicated region
  $region46: #{clam_mb_forward.1} parent=0 // pred_check
    _
  $region47: #{clam_mb_forward.1} parent=0 // pred_check_branch
    %4450 = sbr.rel (0) target = $region49
  $region48: #{clam_mb_forward.1} parent=0 // pred_region
    _
  $region49: #{clam_mb_forward.1} parent=0 // pred_fallthru
    _
  // Predicated region
  $region50: #{clam_mb_forward.1} parent=0 // pred_check
    _
  $region51: #{clam_mb_forward.1} parent=0 // pred_check_branch
    %4452 = sbr.rel (0) target = $region53
  $region52: #{clam_mb_forward.1} parent=0 // pred_region
    _
  $region53: #{clam_mb_forward.1} parent=0 // pred_fallthru
    _
  // Predicated region
  $region54: #{clam_mb_forward.1} parent=0 // pred_check
    _
  $region55: #{clam_mb_forward.1} parent=0 // pred_check_branch
    %4454 = sbr.rel (0) target = $region57
  $region56: #{clam_mb_forward.1} parent=0 // pred_region
    _
  $region57: #{clam_mb_forward.1} parent=0 // pred_fallthru
    _
  // Predicated region
  $region58: #{clam_mb_forward.1} parent=0 // pred_check
    _
  $region59: #{clam_mb_forward.1} parent=0 // pred_check_branch
    %4456 = sbr.rel (0) target = $region61
  $region60: #{clam_mb_forward.1} parent=0 // pred_region
    %s4457 = sadd.s32 0, 0
    %p4458 = scmp.lt.s32.totalorder %s4457, 0
    %s4459 = scalar_select %p4458, %s4457, 0
    %s4460 = smul.u32 8, %s4459
    %p4461 = scmp.lt.s32.totalorder %s4460, 7
    %s4462 = scalar_select %p4461, %s4460, 7
    %s4463 = smul.addr %s4462, 8
    %s4464 = scalar_lea.vmem %s8, %s4463
  $region61: #{clam_mb_forward.1} parent=0 // pred_fallthru
    _
  // Predicated region
  $region62: #{clam_mb_forward.1} parent=0 // pred_check
    _
  $region63: #{clam_mb_forward.1} parent=0 // pred_check_branch
    %4466 = sbr.rel (0) target = $region65
  $region64: #{clam_mb_forward.1} parent=0 // pred_region
    _
  $region65: #{clam_mb_forward.1} parent=0 // pred_fallthru
    _
  // Predicated region
  $region66: #{clam_mb_forward.1} parent=0 // pred_check
    _
  $region67: #{clam_mb_forward.1} parent=0 // pred_check_branch
    %4468 = sbr.rel (0) target = $region69
  $region68: #{clam_mb_forward.1} parent=0 // pred_region
    _
  $region69: #{clam_mb_forward.1} parent=0 // pred_fallthru
    _
  // Predicated region
  $region70: #{clam_mb_forward.1} parent=0 // pred_check
    _
  $region71: #{clam_mb_forward.1} parent=0 // pred_check_branch
    %4470 = sbr.rel (0) target = $region73
  $region72: #{clam_mb_forward.1} parent=0 // pred_region
    _
  $region73: #{clam_mb_forward.1} parent=0 // pred_fallthru
    _
  // Predicated region
  $region74: #{clam_mb_forward.1} parent=0 // pred_check
    _
  $region75: #{clam_mb_forward.1} parent=0 // pred_check_branch
    %4472 = sbr.rel (0) target = $region77
  $region76: #{clam_mb_forward.1} parent=0 // pred_region
    _
  $region77: #{clam_mb_forward.1} parent=0 // pred_fallthru
    _

</llo_original>
